<compile_context>
chip_gen: v6e
topology: v6e:2x2x1
jax: 0.10.0
libtpu: 0.0.40
codegen_flags: <defaults>
</compile_context>

<pallas_src>
import jax
import jax.numpy as jnp
from jax.experimental import pallas as pl
from jax.experimental.pallas import tpu as pltpu

EPS = 1e-5
LANE = 128


# ----------------------------------------------------------------------------- helpers


def _round_up(x, m):
    return ((x + m - 1) // m) * m


def _largest_divisor_le(n, cap):
    cap = int(max(1, min(cap, n)))
    for d in range(cap, 0, -1):
        if n % d == 0:
            return d
    return 1


def _choose_tiles(Hp, Wp, Cin, Cmp, Cop, Cout, vmem_limit):
    """Pick H-strip sizes from the per-generation VMEM budget.

    TH  : strip for stages 1/2 (unconstrained by tiling; last two block dims are full).
    TH3 : strip for stage 3 (it is the 2nd-to-last dim of the NCHW output block, so it
          must be a multiple of 8 or the full Hp).
    """
    bf = 2
    budget = int(0.45 * vmem_limit)
    fixed = 2 * bf * (9 * Cin * Cmp + 9 * Cmp * Cop) + (1 << 20)
    # per pooled-output-row VMEM (double-buffered in/out blocks + pad row + f32 acc row)
    row_s1 = 2 * (2 * Wp * 2 * Cin * bf) + 2 * (Wp * Cmp * bf) + (Wp + 2) * Cin * bf + 4 * Wp * Cmp
    row_s2 = 2 * (Wp * Cmp * bf) + 2 * (Wp * Cop * bf) + (Wp + 2) * Cmp * bf + 4 * Wp * Cop
    per_row = max(row_s1, row_s2)
    th_cap = max(1, (budget - fixed) // per_row)
    # prefer >= 2 strips per image (pipeline depth / megacore), but never tiny strips
    th = _largest_divisor_le(Hp, min(th_cap, max(Hp // 2, 1)))
    if th < min(4, Hp) and Hp <= th_cap:
        th = _largest_divisor_le(Hp, th_cap)

    row_s3 = 2 * (Wp * Cop * bf) + 2 * (Cout * Wp * 4)
    th3_cap = max(1, (budget - (1 << 20)) // row_s3)
    if Hp % 8 == 0:
        cands = [d for d in range(8, Hp + 1, 8) if Hp % d == 0 and d <= th3_cap]
        th3 = max(cands) if cands else 8
    else:
        th3 = Hp
    return th, th3


def _conv3x3_taps(pad_ref, w_ref, th, wp, cin, cop):
    """3x3 'same' conv on the zero-padded strip as 9 shifted-window MXU dots.

    pad_ref : (TH+2, Wp+2, Cin) bf16 VMEM scratch (halo rows + zero side columns)
    w_ref   : (9, Cin, Cop) bf16 weights, tap index = ky*3 + kx
    returns : (TH*Wp, Cop) f32 accumulator
    """
    p = pad_ref[...]
    acc = jnp.zeros((th * wp, cop), jnp.float32)
    for dy in range(3):                       # static 3x3 -> unrolled at trace time
        for dx in range(3):
            tap = p[dy:dy + th, dx:dx + wp, :].reshape(th * wp, cin)
            acc = acc + jnp.dot(tap, w_ref[dy * 3 + dx],
                                preferred_element_type=jnp.float32)
    return acc


def _strip_stats(acc, cnt):
    """Per-strip channel sum + mean-centered M2 (numerically stable BN partials)."""
    s = jnp.sum(acc, axis=0)                  # (C,)
    mu = s * (1.0 / cnt)
    d = acc - mu
    m2 = jnp.sum(d * d, axis=0)               # (C,)
    return s, m2


def _fold_bn(s, m2, cnt_strip, total, gamma, beta):
    """Combine per-strip (sum, M2) via Chan's formula; fold train-mode BN to scale/shift."""
    s_tot = jnp.sum(s, axis=(0, 1))                                     # (C,)
    mean = s_tot / total
    mu = s / cnt_strip                                                  # (N, S, C)
    m2_tot = jnp.sum(m2, axis=(0, 1)) + cnt_strip * jnp.sum((mu - mean) ** 2, axis=(0, 1))
    var = jnp.maximum(m2_tot / total, 0.0)                              # biased var
    scale = gamma * jax.lax.rsqrt(var + EPS)
    shift = beta - mean * scale
    return scale.reshape(1, -1), shift.reshape(1, -1)


# ----------------------------------------------------------------------------- kernels


def pool_conv1_kernel(xm_ref, xt_ref, xb_ref, w_ref, y1_ref, s1_ref, m21_ref, pad_ref):
    """MaxPool2d(2) + Conv3x3 (9 MXU dots) + BN1 partial statistics, one H-strip."""
    # xm_ref : (1, TH, 2, Wp, 2*Cin) bf16  -- H-pool pairs on axis 2, W pairs on lanes
    # xt/xb  : (1, 1, 2, Wp, 2*Cin) bf16   -- halo rows (clamped; zeroed at image edges)
    # w_ref  : (9, Cin, Cmp) bf16
    # y1_ref : (1, TH, Wp, Cmp) bf16 pre-BN conv1 output strip
    # s1/m21 : (1, 1, 1, Cmp) f32 per-strip channel sum / mean-centered M2
    _, th, _, wp, cin2 = xm_ref.shape
    cin = cin2 // 2
    cmid = y1_ref.shape[-1]
    t = pl.program_id(1)
    nt = pl.num_programs(1)

    def pool(x):                               # x: (R, 2, Wp, 2*Cin)
        h = jnp.maximum(x[:, 0], x[:, 1])      # pool over H pairs      -> (R, Wp, 2*Cin)
        return jnp.maximum(h[..., :cin], h[..., cin:])   # pool over W pairs -> (R, Wp, Cin)

    pooled = pool(xm_ref[0])                                   # (TH, Wp, Cin)
    top = pool(xt_ref[0])                                      # (1, Wp, Cin)
    bot = pool(xb_ref[0])
    top = jnp.where(t == 0, jnp.zeros_like(top), top)          # conv zero-pad at image top
    bot = jnp.where(t == nt - 1, jnp.zeros_like(bot), bot)     # ... and bottom

    # Only the two side columns need explicit zeros; tiny, and done every step so it is
    # correct even when the grid is sharded across cores (persistent per-core scratch).
    pad_ref[:, 0, :] = jnp.zeros((th + 2, cin), pad_ref.dtype)
    pad_ref[:, wp + 1, :] = jnp.zeros((th + 2, cin), pad_ref.dtype)
    pad_ref[0, 1:wp + 1, :] = top[0]
    pad_ref[th + 1, 1:wp + 1, :] = bot[0]
    pad_ref[1:th + 1, 1:wp + 1, :] = pooled

    acc = _conv3x3_taps(pad_ref, w_ref, th, wp, cin, cmid)     # (TH*Wp, Cmp) f32
    y1_ref[...] = acc.reshape(1, th, wp, cmid).astype(y1_ref.dtype)
    s, m2 = _strip_stats(acc, th * wp)
    s1_ref[...] = s.reshape(1, 1, 1, cmid)
    m21_ref[...] = m2.reshape(1, 1, 1, cmid)


def bnrelu_conv2_kernel(ym_ref, yt_ref, yb_ref, sc_ref, sh_ref, w_ref,
                        y2_ref, s2_ref, m22_ref, pad_ref):
    """BN1 (folded scale/shift) + ReLU + Conv3x3 + BN2 partial statistics, one H-strip."""
    _, th, wp, cmid = ym_ref.shape
    cout = y2_ref.shape[-1]
    t = pl.program_id(1)
    nt = pl.num_programs(1)
    sc = sc_ref[0]                                  # (Cmp,) f32
    sh = sh_ref[0]

    def act(y):                                     # bf16 -> BN+ReLU in f32 -> bf16
        return jnp.maximum(y.astype(jnp.float32) * sc + sh, 0.0).astype(pad_ref.dtype)

    a = act(ym_ref[0])                                         # (TH, Wp, Cmp)
    top = act(yt_ref[0])                                       # (1, Wp, Cmp)
    bot = act(yb_ref[0])
    top = jnp.where(t == 0, jnp.zeros_like(top), top)
    bot = jnp.where(t == nt - 1, jnp.zeros_like(bot), bot)

    pad_ref[:, 0, :] = jnp.zeros((th + 2, cmid), pad_ref.dtype)
    pad_ref[:, wp + 1, :] = jnp.zeros((th + 2, cmid), pad_ref.dtype)
    pad_ref[0, 1:wp + 1, :] = top[0]
    pad_ref[th + 1, 1:wp + 1, :] = bot[0]
    pad_ref[1:th + 1, 1:wp + 1, :] = a

    acc = _conv3x3_taps(pad_ref, w_ref, th, wp, cmid, cout)    # (TH*Wp, Cop) f32
    y2_ref[...] = acc.reshape(1, th, wp, cout).astype(y2_ref.dtype)
    s, m2 = _strip_stats(acc, th * wp)
    s2_ref[...] = s.reshape(1, 1, 1, cout)
    m22_ref[...] = m2.reshape(1, 1, 1, cout)


def bnrelu_out_kernel(y2_ref, sc_ref, sh_ref, o_ref):
    """Final BN2 (folded) + ReLU, writing NCHW directly (fused output transpose)."""
    _, th, wp, cop = y2_ref.shape
    cout = o_ref.shape[1]
    a = jnp.maximum(y2_ref[0].astype(jnp.float32) * sc_ref[0] + sh_ref[0], 0.0)
    at = a.reshape(th * wp, cop).T                  # (Cop, TH*Wp) -- XLU, hidden under DMA
    o_ref[...] = at[:cout].reshape(1, cout, th, wp)


# ----------------------------------------------------------------------------- wrapper


def down_forward(x_nchw, params):
    """Down: (N, Cin, H, W) -> (N, Cout, H/2, W/2), PyTorch layout in/out."""
    w1, g1, b1, w2, g2, b2 = params
    N, Cin, H, W = x_nchw.shape
    assert H % 2 == 0 and W % 2 == 0, "MaxPool2d(2) expects even spatial dims"
    Hp, Wp = H // 2, W // 2
    Cmid = w1.shape[-1]
    Cout = w2.shape[-1]
    Cmp = _round_up(Cmid, LANE)      # lane-dense matmul output / intermediate channels
    Cop = _round_up(Cout, LANE)

    # Per-generation VMEM budget (v5e/v6e: 128 MiB, v7x: 64 MiB per TC).
    try:
        vmem_cap = int(pltpu.get_tpu_info().vmem_capacity_bytes)
    except Exception:
        vmem_cap = 64 * 1024 * 1024
    vmem_limit = int(vmem_cap * 0.8)

    TH, TH3 = _choose_tiles(Hp, Wp, Cin, Cmp, Cop, Cout, vmem_limit)
    S, S3 = Hp // TH, Hp // TH3

    # NCHW -> NHWC + bf16 cast once (single fused XLA pass over the input); then a FREE
    # reshape packing the 2x2 pool window: H pairs on their own axis, W pairs on lanes.
    x_pack = jnp.transpose(x_nchw, (0, 2, 3, 1)).astype(jnp.bfloat16)
    x_pack = x_pack.reshape(N, Hp, 2, Wp, 2 * Cin)

    # Weights: (3,3,Ci,Co) -> (9, Ci, Co_pad) bf16, tap index = ky*3+kx; padded output
    # (and, for conv2, input) channels are zero so padded lanes stay exactly zero.
    w1c = jnp.pad(w1.reshape(9, Cin, Cmid).astype(jnp.bfloat16),
                  ((0, 0), (0, 0), (0, Cmp - Cmid)))
    w2c = jnp.pad(w2.reshape(9, Cmid, Cout).astype(jnp.bfloat16),
                  ((0, 0), (0, Cmp - Cmid), (0, Cop - Cout)))
    g1p = jnp.pad(g1.reshape(-1).astype(jnp.float32), (0, Cmp - Cmid), constant_values=1.0)
    b1p = jnp.pad(b1.reshape(-1).astype(jnp.float32), (0, Cmp - Cmid))
    g2p = jnp.pad(g2.reshape(-1).astype(jnp.float32), (0, Cop - Cout), constant_values=1.0)
    b2p = jnp.pad(b2.reshape(-1).astype(jnp.float32), (0, Cop - Cout))

    cparams = pltpu.CompilerParams(
        dimension_semantics=("parallel", "parallel"),
        vmem_limit_bytes=vmem_limit,
    )

    # ---- stage 1: maxpool + conv1 (+ BN1 partials), grid over (batch, H-strip) --------
    y1, s1, m21 = pl.pallas_call(
        pool_conv1_kernel,
        grid=(N, S),
        in_specs=[
            pl.BlockSpec((1, TH, 2, Wp, 2 * Cin), lambda n, t: (n, t, 0, 0, 0)),
            pl.BlockSpec((1, 1, 2, Wp, 2 * Cin),
                         lambda n, t: (n, jnp.maximum(t * TH - 1, 0), 0, 0, 0)),
            pl.BlockSpec((1, 1, 2, Wp, 2 * Cin),
                         lambda n, t: (n, jnp.minimum(t * TH + TH, Hp - 1), 0, 0, 0)),
            pl.BlockSpec((9, Cin, Cmp), lambda n, t: (0, 0, 0)),
        ],
        out_specs=[
            pl.BlockSpec((1, TH, Wp, Cmp), lambda n, t: (n, t, 0, 0)),
            pl.BlockSpec((1, 1, 1, Cmp), lambda n, t: (n, t, 0, 0)),
            pl.BlockSpec((1, 1, 1, Cmp), lambda n, t: (n, t, 0, 0)),
        ],
        out_shape=[
            jax.ShapeDtypeStruct((N, Hp, Wp, Cmp), jnp.bfloat16),
            jax.ShapeDtypeStruct((N, S, 1, Cmp), jnp.float32),
            jax.ShapeDtypeStruct((N, S, 1, Cmp), jnp.float32),
        ],
        scratch_shapes=[pltpu.VMEM((TH + 2, Wp + 2, Cin), jnp.bfloat16)],
        compiler_params=cparams,
    )(x_pack, x_pack, x_pack, w1c)

    sc1, sh1 = _fold_bn(s1[:, :, 0, :], m21[:, :, 0, :], TH * Wp, N * Hp * Wp, g1p, b1p)

    # ---- stage 2: BN1 + ReLU + conv2 (+ BN2 partials) ----------------------------------
    y2, s2, m22 = pl.pallas_call(
        bnrelu_conv2_kernel,
        grid=(N, S),
        in_specs=[
            pl.BlockSpec((1, TH, Wp, Cmp), lambda n, t: (n, t, 0, 0)),
            pl.BlockSpec((1, 1, Wp, Cmp),
                         lambda n, t: (n, jnp.maximum(t * TH - 1, 0), 0, 0)),
            pl.BlockSpec((1, 1, Wp, Cmp),
                         lambda n, t: (n, jnp.minimum(t * TH + TH, Hp - 1), 0, 0)),
            pl.BlockSpec((1, Cmp), lambda n, t: (0, 0)),
            pl.BlockSpec((1, Cmp), lambda n, t: (0, 0)),
            pl.BlockSpec((9, Cmp, Cop), lambda n, t: (0, 0, 0)),
        ],
        out_specs=[
            pl.BlockSpec((1, TH, Wp, Cop), lambda n, t: (n, t, 0, 0)),
            pl.BlockSpec((1, 1, 1, Cop), lambda n, t: (n, t, 0, 0)),
            pl.BlockSpec((1, 1, 1, Cop), lambda n, t: (n, t, 0, 0)),
        ],
        out_shape=[
            jax.ShapeDtypeStruct((N, Hp, Wp, Cop), jnp.bfloat16),
            jax.ShapeDtypeStruct((N, S, 1, Cop), jnp.float32),
            jax.ShapeDtypeStruct((N, S, 1, Cop), jnp.float32),
        ],
        scratch_shapes=[pltpu.VMEM((TH + 2, Wp + 2, Cmp), jnp.bfloat16)],
        compiler_params=cparams,
    )(y1, y1, y1, sc1, sh1, w2c)

    sc2, sh2 = _fold_bn(s2[:, :, 0, :], m22[:, :, 0, :], TH * Wp, N * Hp * Wp, g2p, b2p)

    # ---- stage 3: BN2 + ReLU, writing NCHW directly -------------------------------------
    out = pl.pallas_call(
        bnrelu_out_kernel,
        grid=(N, S3),
        in_specs=[
            pl.BlockSpec((1, TH3, Wp, Cop), lambda n, t: (n, t, 0, 0)),
            pl.BlockSpec((1, Cop), lambda n, t: (0, 0)),
            pl.BlockSpec((1, Cop), lambda n, t: (0, 0)),
        ],
        out_specs=pl.BlockSpec((1, Cout, TH3, Wp), lambda n, t: (n, 0, t, 0)),
        out_shape=jax.ShapeDtypeStruct((N, Cout, Hp, Wp), jnp.float32),
        compiler_params=cparams,
    )(y2, sc2, sh2)

    return out


# ----------------------------------------------------------------------------- params


def make_params(key, in_channels, out_channels):
    """Deterministic synthetic parameters (Conv weights HWIO, BN gamma/beta).

    Conv biases are omitted: a per-channel constant added before training-mode
    BatchNorm is exactly cancelled by the mean subtraction (forward unchanged).
    """
    mid_channels = out_channels
    k1, k2, k3, k4, k5, k6 = jax.random.split(key, 6)

    def conv_w(k, cin, cout):
        w = jax.random.normal(k, (cout, cin, 3, 3), jnp.float32) * (2.0 / (cin * 9)) ** 0.5
        return jnp.transpose(w, (2, 3, 1, 0))          # (3, 3, cin, cout)

    w1 = conv_w(k1, in_channels, mid_channels)
    g1 = 1.0 + 0.1 * jax.random.normal(k2, (mid_channels,), jnp.float32)
    b1 = 0.1 * jax.random.normal(k3, (mid_channels,), jnp.float32)

    w2 = conv_w(k4, mid_channels, out_channels)
    g2 = 1.0 + 0.1 * jax.random.normal(k5, (out_channels,), jnp.float32)
    b2 = 0.1 * jax.random.normal(k6, (out_channels,), jnp.float32)

    return (w1, g1, b1, w2, g2, b2)


if __name__ == "__main__":
    key = jax.random.PRNGKey(0)
    kx, kp = jax.random.split(key)

    N, Cin, H, W = 2, 4, 16, 16
    Cout = 8
    x = jax.random.normal(kx, (N, Cin, H, W), jnp.float32)   # NCHW, like PyTorch
    params = make_params(kp, Cin, Cout)

    out = jax.jit(down_forward)(x, params)
    out = jax.block_until_ready(out)

    assert out.shape == (N, Cout, H // 2, W // 2), out.shape
    assert bool(jnp.all(jnp.isfinite(out))), "non-finite output"
    print("KERNEL_OK")
</pallas_src>

<mosaic_0001>
module attributes {stable_mosaic.version = 11 : i64} {
  func.func @pool_conv1_kernel(%arg0: i32, %arg1: i32, %arg2: memref<1x4x2x8x8xbf16, #tpu.memory_space<vmem>>, %arg3: memref<1x1x2x8x8xbf16, #tpu.memory_space<vmem>>, %arg4: memref<1x1x2x8x8xbf16, #tpu.memory_space<vmem>>, %arg5: memref<9x4x128xbf16, #tpu.memory_space<vmem>>, %arg6: memref<1x4x8x128xbf16, #tpu.memory_space<vmem>>, %arg7: memref<1x1x1x128xf32, #tpu.memory_space<vmem>>, %arg8: memref<1x1x1x128xf32, #tpu.memory_space<vmem>>, %arg9: memref<6x10x4xbf16, #tpu.memory_space<vmem>>) attributes {dimension_semantics = [#tpu.dimension_semantics<parallel>, #tpu.dimension_semantics<parallel>], iteration_bounds = array<i64: 2, 2>, scalar_prefetch = 0 : i64, scratch_operands = 1 : i64, tpu.core_type = #tpu.core_type<tc>, window_params = [{transform_indices = @transform_0, window_bounds = array<i64: 1, 4, 2, 8, 8>}, {transform_indices = @transform_1, window_bounds = array<i64: 1, 1, 2, 8, 8>}, {transform_indices = @transform_2, window_bounds = array<i64: 1, 1, 2, 8, 8>}, {pipeline_mode = #tpu.pipeline_mode<synchronous>, transform_indices = @transform_3, window_bounds = array<i64: 9, 4, 128>}, {transform_indices = @transform_4, window_bounds = array<i64: 1, 4, 8, 128>}, {transform_indices = @transform_5, window_bounds = array<i64: 1, 1, 1, 128>}, {transform_indices = @transform_6, window_bounds = array<i64: 1, 1, 1, 128>}]} {
    %c0 = arith.constant 0 : index
    %c0_0 = arith.constant 0 : index
    %c0_1 = arith.constant 0 : index
    %c0_2 = arith.constant 0 : index
    %c0_3 = arith.constant 0 : index
    %0 = vector.load %arg2[%c0, %c0_0, %c0_1, %c0_2, %c0_3] : memref<1x4x2x8x8xbf16, #tpu.memory_space<vmem>>, vector<1x4x2x8x8xbf16>
    %1 = vector.shape_cast %0 : vector<1x4x2x8x8xbf16> to vector<4x2x8x8xbf16>
    %2 = vector.extract_strided_slice %1 {offsets = [0, 0, 0, 0], sizes = [4, 1, 8, 8], strides = [1, 1, 1, 1]} : vector<4x2x8x8xbf16> to vector<4x1x8x8xbf16>
    %3 = vector.shape_cast %2 : vector<4x1x8x8xbf16> to vector<4x8x8xbf16>
    %4 = vector.extract_strided_slice %1 {offsets = [0, 1, 0, 0], sizes = [4, 1, 8, 8], strides = [1, 1, 1, 1]} : vector<4x2x8x8xbf16> to vector<4x1x8x8xbf16>
    %5 = vector.shape_cast %4 : vector<4x1x8x8xbf16> to vector<4x8x8xbf16>
    %6 = arith.maximumf %3, %5 : vector<4x8x8xbf16>
    %7 = vector.extract_strided_slice %6 {offsets = [0, 0, 0], sizes = [4, 8, 4], strides = [1, 1, 1]} : vector<4x8x8xbf16> to vector<4x8x4xbf16>
    %8 = vector.extract_strided_slice %6 {offsets = [0, 0, 4], sizes = [4, 8, 4], strides = [1, 1, 1]} : vector<4x8x8xbf16> to vector<4x8x4xbf16>
    %9 = arith.maximumf %7, %8 : vector<4x8x4xbf16>
    %c0_4 = arith.constant 0 : index
    %c0_5 = arith.constant 0 : index
    %c0_6 = arith.constant 0 : index
    %c0_7 = arith.constant 0 : index
    %c0_8 = arith.constant 0 : index
    %10 = vector.load %arg3[%c0_4, %c0_5, %c0_6, %c0_7, %c0_8] : memref<1x1x2x8x8xbf16, #tpu.memory_space<vmem>>, vector<1x1x2x8x8xbf16>
    %11 = vector.shape_cast %10 : vector<1x1x2x8x8xbf16> to vector<1x2x8x8xbf16>
    %12 = vector.extract_strided_slice %11 {offsets = [0, 0, 0, 0], sizes = [1, 1, 8, 8], strides = [1, 1, 1, 1]} : vector<1x2x8x8xbf16> to vector<1x1x8x8xbf16>
    %13 = vector.shape_cast %12 : vector<1x1x8x8xbf16> to vector<1x8x8xbf16>
    %14 = vector.extract_strided_slice %11 {offsets = [0, 1, 0, 0], sizes = [1, 1, 8, 8], strides = [1, 1, 1, 1]} : vector<1x2x8x8xbf16> to vector<1x1x8x8xbf16>
    %15 = vector.shape_cast %14 : vector<1x1x8x8xbf16> to vector<1x8x8xbf16>
    %16 = arith.maximumf %13, %15 : vector<1x8x8xbf16>
    %17 = vector.extract_strided_slice %16 {offsets = [0, 0, 0], sizes = [1, 8, 4], strides = [1, 1, 1]} : vector<1x8x8xbf16> to vector<1x8x4xbf16>
    %18 = vector.extract_strided_slice %16 {offsets = [0, 0, 4], sizes = [1, 8, 4], strides = [1, 1, 1]} : vector<1x8x8xbf16> to vector<1x8x4xbf16>
    %19 = arith.maximumf %17, %18 : vector<1x8x4xbf16>
    %c0_9 = arith.constant 0 : index
    %c0_10 = arith.constant 0 : index
    %c0_11 = arith.constant 0 : index
    %c0_12 = arith.constant 0 : index
    %c0_13 = arith.constant 0 : index
    %20 = vector.load %arg4[%c0_9, %c0_10, %c0_11, %c0_12, %c0_13] : memref<1x1x2x8x8xbf16, #tpu.memory_space<vmem>>, vector<1x1x2x8x8xbf16>
    %21 = vector.shape_cast %20 : vector<1x1x2x8x8xbf16> to vector<1x2x8x8xbf16>
    %22 = vector.extract_strided_slice %21 {offsets = [0, 0, 0, 0], sizes = [1, 1, 8, 8], strides = [1, 1, 1, 1]} : vector<1x2x8x8xbf16> to vector<1x1x8x8xbf16>
    %23 = vector.shape_cast %22 : vector<1x1x8x8xbf16> to vector<1x8x8xbf16>
    %24 = vector.extract_strided_slice %21 {offsets = [0, 1, 0, 0], sizes = [1, 1, 8, 8], strides = [1, 1, 1, 1]} : vector<1x2x8x8xbf16> to vector<1x1x8x8xbf16>
    %25 = vector.shape_cast %24 : vector<1x1x8x8xbf16> to vector<1x8x8xbf16>
    %26 = arith.maximumf %23, %25 : vector<1x8x8xbf16>
    %27 = vector.extract_strided_slice %26 {offsets = [0, 0, 0], sizes = [1, 8, 4], strides = [1, 1, 1]} : vector<1x8x8xbf16> to vector<1x8x4xbf16>
    %28 = vector.extract_strided_slice %26 {offsets = [0, 0, 4], sizes = [1, 8, 4], strides = [1, 1, 1]} : vector<1x8x8xbf16> to vector<1x8x4xbf16>
    %29 = arith.maximumf %27, %28 : vector<1x8x4xbf16>
    %c0_i32 = arith.constant 0 : i32
    %30 = arith.cmpi eq, %arg1, %c0_i32 : i32
    %cst = arith.constant 0.000000e+00 : bf16
    %31 = vector.broadcast %cst : bf16 to vector<1x8x4xbf16>
    %32 = arith.select %30, %31, %19 : vector<1x8x4xbf16>
    %c1_i32 = arith.constant 1 : i32
    %33 = arith.cmpi eq, %arg1, %c1_i32 : i32
    %cst_14 = arith.constant 0.000000e+00 : bf16
    %34 = vector.broadcast %cst_14 : bf16 to vector<1x8x4xbf16>
    %35 = arith.select %33, %34, %29 : vector<1x8x4xbf16>
    %cst_15 = arith.constant 0.000000e+00 : bf16
    %36 = vector.broadcast %cst_15 : bf16 to vector<6x4xbf16>
    %c0_16 = arith.constant 0 : index
    %c0_17 = arith.constant 0 : index
    %c0_18 = arith.constant 0 : index
    %37 = vector.load %arg9[%c0_16, %c0_17, %c0_18] : memref<6x10x4xbf16, #tpu.memory_space<vmem>>, vector<6x1x4xbf16>
    %38 = vector.shape_cast %37 : vector<6x1x4xbf16> to vector<6x4xbf16>
    %39 = vector.shape_cast %36 : vector<6x4xbf16> to vector<6x1x4xbf16>
    tpu.vector_store %arg9[%c0_16, %c0_17, %c0_18], %39 {strides = array<i32>} : memref<6x10x4xbf16, #tpu.memory_space<vmem>>, vector<6x1x4xbf16>,
    %cst_19 = arith.constant 0.000000e+00 : bf16
    %40 = vector.broadcast %cst_19 : bf16 to vector<6x4xbf16>
    %c0_20 = arith.constant 0 : index
    %c9 = arith.constant 9 : index
    %c0_21 = arith.constant 0 : index
    %41 = vector.load %arg9[%c0_20, %c9, %c0_21] : memref<6x10x4xbf16, #tpu.memory_space<vmem>>, vector<6x1x4xbf16>
    %42 = vector.shape_cast %41 : vector<6x1x4xbf16> to vector<6x4xbf16>
    %43 = vector.shape_cast %40 : vector<6x4xbf16> to vector<6x1x4xbf16>
    tpu.vector_store %arg9[%c0_20, %c9, %c0_21], %43 {strides = array<i32>} : memref<6x10x4xbf16, #tpu.memory_space<vmem>>, vector<6x1x4xbf16>,
    %44 = vector.shape_cast %32 : vector<1x8x4xbf16> to vector<8x4xbf16>
    %c0_22 = arith.constant 0 : index
    %c1 = arith.constant 1 : index
    %c0_23 = arith.constant 0 : index
    %45 = vector.load %arg9[%c0_22, %c1, %c0_23] : memref<6x10x4xbf16, #tpu.memory_space<vmem>>, vector<1x8x4xbf16>
    %46 = vector.shape_cast %45 : vector<1x8x4xbf16> to vector<8x4xbf16>
    %47 = vector.shape_cast %44 : vector<8x4xbf16> to vector<1x8x4xbf16>
    tpu.vector_store %arg9[%c0_22, %c1, %c0_23], %47 {strides = array<i32>} : memref<6x10x4xbf16, #tpu.memory_space<vmem>>, vector<1x8x4xbf16>,
    %48 = vector.shape_cast %35 : vector<1x8x4xbf16> to vector<8x4xbf16>
    %c5 = arith.constant 5 : index
    %c1_24 = arith.constant 1 : index
    %c0_25 = arith.constant 0 : index
    %49 = vector.load %arg9[%c5, %c1_24, %c0_25] : memref<6x10x4xbf16, #tpu.memory_space<vmem>>, vector<1x8x4xbf16>
    %50 = vector.shape_cast %49 : vector<1x8x4xbf16> to vector<8x4xbf16>
    %51 = vector.shape_cast %48 : vector<8x4xbf16> to vector<1x8x4xbf16>
    tpu.vector_store %arg9[%c5, %c1_24, %c0_25], %51 {strides = array<i32>} : memref<6x10x4xbf16, #tpu.memory_space<vmem>>, vector<1x8x4xbf16>,
    %c1_26 = arith.constant 1 : index
    %c1_27 = arith.constant 1 : index
    %c0_28 = arith.constant 0 : index
    %52 = vector.load %arg9[%c1_26, %c1_27, %c0_28] : memref<6x10x4xbf16, #tpu.memory_space<vmem>>, vector<4x8x4xbf16>
    tpu.vector_store %arg9[%c1_26, %c1_27, %c0_28], %9 {strides = array<i32>} : memref<6x10x4xbf16, #tpu.memory_space<vmem>>, vector<4x8x4xbf16>,
    %c0_29 = arith.constant 0 : index
    %c0_30 = arith.constant 0 : index
    %c0_31 = arith.constant 0 : index
    %53 = vector.load %arg9[%c0_29, %c0_30, %c0_31] : memref<6x10x4xbf16, #tpu.memory_space<vmem>>, vector<6x10x4xbf16>
    %cst_32 = arith.constant 0.000000e+00 : f32
    %54 = vector.broadcast %cst_32 : f32 to vector<32x128xf32>
    %55 = vector.extract_strided_slice %53 {offsets = [0, 0, 0], sizes = [4, 8, 4], strides = [1, 1, 1]} : vector<6x10x4xbf16> to vector<4x8x4xbf16>
    %56 = vector.shape_cast %55 : vector<4x8x4xbf16> to vector<32x4xbf16>
    %c0_33 = arith.constant 0 : index
    %c0_34 = arith.constant 0 : index
    %c0_35 = arith.constant 0 : index
    %57 = vector.load %arg5[%c0_33, %c0_34, %c0_35] : memref<9x4x128xbf16, #tpu.memory_space<vmem>>, vector<1x4x128xbf16>
    %58 = vector.shape_cast %57 : vector<1x4x128xbf16> to vector<4x128xbf16>
    %cst_36 = arith.constant dense<0.000000e+00> : vector<32x128xf32>
    %59 = tpu.matmul %56, %58, %cst_36 {dimension_numbers = #tpu.dot_dimension_numbers<[1], [0], [0], [1], [0, 0, 1, 1], [], []>} : vector<32x4xbf16>, vector<4x128xbf16>, vector<32x128xf32> -> vector<32x128xf32>
    %60 = arith.addf %54, %59 : vector<32x128xf32>
    %61 = vector.extract_strided_slice %53 {offsets = [0, 1, 0], sizes = [4, 8, 4], strides = [1, 1, 1]} : vector<6x10x4xbf16> to vector<4x8x4xbf16>
    %62 = vector.shape_cast %61 : vector<4x8x4xbf16> to vector<32x4xbf16>
    %c1_37 = arith.constant 1 : index
    %c0_38 = arith.constant 0 : index
    %c0_39 = arith.constant 0 : index
    %63 = vector.load %arg5[%c1_37, %c0_38, %c0_39] : memref<9x4x128xbf16, #tpu.memory_space<vmem>>, vector<1x4x128xbf16>
    %64 = vector.shape_cast %63 : vector<1x4x128xbf16> to vector<4x128xbf16>
    %cst_40 = arith.constant dense<0.000000e+00> : vector<32x128xf32>
    %65 = tpu.matmul %62, %64, %cst_40 {dimension_numbers = #tpu.dot_dimension_numbers<[1], [0], [0], [1], [0, 0, 1, 1], [], []>} : vector<32x4xbf16>, vector<4x128xbf16>, vector<32x128xf32> -> vector<32x128xf32>
    %66 = arith.addf %60, %65 : vector<32x128xf32>
    %67 = vector.extract_strided_slice %53 {offsets = [0, 2, 0], sizes = [4, 8, 4], strides = [1, 1, 1]} : vector<6x10x4xbf16> to vector<4x8x4xbf16>
    %68 = vector.shape_cast %67 : vector<4x8x4xbf16> to vector<32x4xbf16>
    %c2 = arith.constant 2 : index
    %c0_41 = arith.constant 0 : index
    %c0_42 = arith.constant 0 : index
    %69 = vector.load %arg5[%c2, %c0_41, %c0_42] : memref<9x4x128xbf16, #tpu.memory_space<vmem>>, vector<1x4x128xbf16>
    %70 = vector.shape_cast %69 : vector<1x4x128xbf16> to vector<4x128xbf16>
    %cst_43 = arith.constant dense<0.000000e+00> : vector<32x128xf32>
    %71 = tpu.matmul %68, %70, %cst_43 {dimension_numbers = #tpu.dot_dimension_numbers<[1], [0], [0], [1], [0, 0, 1, 1], [], []>} : vector<32x4xbf16>, vector<4x128xbf16>, vector<32x128xf32> -> vector<32x128xf32>
    %72 = arith.addf %66, %71 : vector<32x128xf32>
    %73 = vector.extract_strided_slice %53 {offsets = [1, 0, 0], sizes = [4, 8, 4], strides = [1, 1, 1]} : vector<6x10x4xbf16> to vector<4x8x4xbf16>
    %74 = vector.shape_cast %73 : vector<4x8x4xbf16> to vector<32x4xbf16>
    %c3 = arith.constant 3 : index
    %c0_44 = arith.constant 0 : index
    %c0_45 = arith.constant 0 : index
    %75 = vector.load %arg5[%c3, %c0_44, %c0_45] : memref<9x4x128xbf16, #tpu.memory_space<vmem>>, vector<1x4x128xbf16>
    %76 = vector.shape_cast %75 : vector<1x4x128xbf16> to vector<4x128xbf16>
    %cst_46 = arith.constant dense<0.000000e+00> : vector<32x128xf32>
    %77 = tpu.matmul %74, %76, %cst_46 {dimension_numbers = #tpu.dot_dimension_numbers<[1], [0], [0], [1], [0, 0, 1, 1], [], []>} : vector<32x4xbf16>, vector<4x128xbf16>, vector<32x128xf32> -> vector<32x128xf32>
    %78 = arith.addf %72, %77 : vector<32x128xf32>
    %79 = vector.extract_strided_slice %53 {offsets = [1, 1, 0], sizes = [4, 8, 4], strides = [1, 1, 1]} : vector<6x10x4xbf16> to vector<4x8x4xbf16>
    %80 = vector.shape_cast %79 : vector<4x8x4xbf16> to vector<32x4xbf16>
    %c4 = arith.constant 4 : index
    %c0_47 = arith.constant 0 : index
    %c0_48 = arith.constant 0 : index
    %81 = vector.load %arg5[%c4, %c0_47, %c0_48] : memref<9x4x128xbf16, #tpu.memory_space<vmem>>, vector<1x4x128xbf16>
    %82 = vector.shape_cast %81 : vector<1x4x128xbf16> to vector<4x128xbf16>
    %cst_49 = arith.constant dense<0.000000e+00> : vector<32x128xf32>
    %83 = tpu.matmul %80, %82, %cst_49 {dimension_numbers = #tpu.dot_dimension_numbers<[1], [0], [0], [1], [0, 0, 1, 1], [], []>} : vector<32x4xbf16>, vector<4x128xbf16>, vector<32x128xf32> -> vector<32x128xf32>
    %84 = arith.addf %78, %83 : vector<32x128xf32>
    %85 = vector.extract_strided_slice %53 {offsets = [1, 2, 0], sizes = [4, 8, 4], strides = [1, 1, 1]} : vector<6x10x4xbf16> to vector<4x8x4xbf16>
    %86 = vector.shape_cast %85 : vector<4x8x4xbf16> to vector<32x4xbf16>
    %c5_50 = arith.constant 5 : index
    %c0_51 = arith.constant 0 : index
    %c0_52 = arith.constant 0 : index
    %87 = vector.load %arg5[%c5_50, %c0_51, %c0_52] : memref<9x4x128xbf16, #tpu.memory_space<vmem>>, vector<1x4x128xbf16>
    %88 = vector.shape_cast %87 : vector<1x4x128xbf16> to vector<4x128xbf16>
    %cst_53 = arith.constant dense<0.000000e+00> : vector<32x128xf32>
    %89 = tpu.matmul %86, %88, %cst_53 {dimension_numbers = #tpu.dot_dimension_numbers<[1], [0], [0], [1], [0, 0, 1, 1], [], []>} : vector<32x4xbf16>, vector<4x128xbf16>, vector<32x128xf32> -> vector<32x128xf32>
    %90 = arith.addf %84, %89 : vector<32x128xf32>
    %91 = vector.extract_strided_slice %53 {offsets = [2, 0, 0], sizes = [4, 8, 4], strides = [1, 1, 1]} : vector<6x10x4xbf16> to vector<4x8x4xbf16>
    %92 = vector.shape_cast %91 : vector<4x8x4xbf16> to vector<32x4xbf16>
    %c6 = arith.constant 6 : index
    %c0_54 = arith.constant 0 : index
    %c0_55 = arith.constant 0 : index
    %93 = vector.load %arg5[%c6, %c0_54, %c0_55] : memref<9x4x128xbf16, #tpu.memory_space<vmem>>, vector<1x4x128xbf16>
    %94 = vector.shape_cast %93 : vector<1x4x128xbf16> to vector<4x128xbf16>
    %cst_56 = arith.constant dense<0.000000e+00> : vector<32x128xf32>
    %95 = tpu.matmul %92, %94, %cst_56 {dimension_numbers = #tpu.dot_dimension_numbers<[1], [0], [0], [1], [0, 0, 1, 1], [], []>} : vector<32x4xbf16>, vector<4x128xbf16>, vector<32x128xf32> -> vector<32x128xf32>
    %96 = arith.addf %90, %95 : vector<32x128xf32>
    %97 = vector.extract_strided_slice %53 {offsets = [2, 1, 0], sizes = [4, 8, 4], strides = [1, 1, 1]} : vector<6x10x4xbf16> to vector<4x8x4xbf16>
    %98 = vector.shape_cast %97 : vector<4x8x4xbf16> to vector<32x4xbf16>
    %c7 = arith.constant 7 : index
    %c0_57 = arith.constant 0 : index
    %c0_58 = arith.constant 0 : index
    %99 = vector.load %arg5[%c7, %c0_57, %c0_58] : memref<9x4x128xbf16, #tpu.memory_space<vmem>>, vector<1x4x128xbf16>
    %100 = vector.shape_cast %99 : vector<1x4x128xbf16> to vector<4x128xbf16>
    %cst_59 = arith.constant dense<0.000000e+00> : vector<32x128xf32>
    %101 = tpu.matmul %98, %100, %cst_59 {dimension_numbers = #tpu.dot_dimension_numbers<[1], [0], [0], [1], [0, 0, 1, 1], [], []>} : vector<32x4xbf16>, vector<4x128xbf16>, vector<32x128xf32> -> vector<32x128xf32>
    %102 = arith.addf %96, %101 : vector<32x128xf32>
    %103 = vector.extract_strided_slice %53 {offsets = [2, 2, 0], sizes = [4, 8, 4], strides = [1, 1, 1]} : vector<6x10x4xbf16> to vector<4x8x4xbf16>
    %104 = vector.shape_cast %103 : vector<4x8x4xbf16> to vector<32x4xbf16>
    %c8 = arith.constant 8 : index
    %c0_60 = arith.constant 0 : index
    %c0_61 = arith.constant 0 : index
    %105 = vector.load %arg5[%c8, %c0_60, %c0_61] : memref<9x4x128xbf16, #tpu.memory_space<vmem>>, vector<1x4x128xbf16>
    %106 = vector.shape_cast %105 : vector<1x4x128xbf16> to vector<4x128xbf16>
    %cst_62 = arith.constant dense<0.000000e+00> : vector<32x128xf32>
    %107 = tpu.matmul %104, %106, %cst_62 {dimension_numbers = #tpu.dot_dimension_numbers<[1], [0], [0], [1], [0, 0, 1, 1], [], []>} : vector<32x4xbf16>, vector<4x128xbf16>, vector<32x128xf32> -> vector<32x128xf32>
    %108 = arith.addf %102, %107 : vector<32x128xf32>
    %109 = vector.shape_cast %108 : vector<32x128xf32> to vector<1x4x8x128xf32>
    %110 = arith.truncf %109 : vector<1x4x8x128xf32> to vector<1x4x8x128xbf16>
    %c0_63 = arith.constant 0 : index
    %c0_64 = arith.constant 0 : index
    %c0_65 = arith.constant 0 : index
    %c0_66 = arith.constant 0 : index
    %111 = vector.load %arg6[%c0_63, %c0_64, %c0_65, %c0_66] : memref<1x4x8x128xbf16, #tpu.memory_space<vmem>>, vector<1x4x8x128xbf16>
    tpu.vector_store %arg6[%c0_63, %c0_64, %c0_65, %c0_66], %110 {strides = array<i32>} : memref<1x4x8x128xbf16, #tpu.memory_space<vmem>>, vector<1x4x8x128xbf16>,
    %cst_67 = arith.constant dense<0.000000e+00> : vector<128xf32>
    %112 = vector.multi_reduction <add>, %108, %cst_67 [0] : vector<32x128xf32> to vector<128xf32>
    %cst_68 = arith.constant 3.125000e-02 : f32
    %113 = vector.broadcast %cst_68 : f32 to vector<128xf32>
    %114 = arith.mulf %112, %113 : vector<128xf32>
    %115 = vector.shape_cast %114 : vector<128xf32> to vector<1x128xf32>
    %116 = vector.broadcast %115 : vector<1x128xf32> to vector<32x128xf32>
    %117 = arith.subf %108, %116 : vector<32x128xf32>
    %118 = arith.mulf %117, %117 : vector<32x128xf32>
    %cst_69 = arith.constant dense<0.000000e+00> : vector<128xf32>
    %119 = vector.multi_reduction <add>, %118, %cst_69 [0] : vector<32x128xf32> to vector<128xf32>
    %120 = vector.shape_cast %112 : vector<128xf32> to vector<1x1x1x128xf32>
    %c0_70 = arith.constant 0 : index
    %c0_71 = arith.constant 0 : index
    %c0_72 = arith.constant 0 : index
    %c0_73 = arith.constant 0 : index
    %121 = vector.load %arg7[%c0_70, %c0_71, %c0_72, %c0_73] : memref<1x1x1x128xf32, #tpu.memory_space<vmem>>, vector<1x1x1x128xf32>
    tpu.vector_store %arg7[%c0_70, %c0_71, %c0_72, %c0_73], %120 {strides = array<i32>} : memref<1x1x1x128xf32, #tpu.memory_space<vmem>>, vector<1x1x1x128xf32>,
    %122 = vector.shape_cast %119 : vector<128xf32> to vector<1x1x1x128xf32>
    %c0_74 = arith.constant 0 : index
    %c0_75 = arith.constant 0 : index
    %c0_76 = arith.constant 0 : index
    %c0_77 = arith.constant 0 : index
    %123 = vector.load %arg8[%c0_74, %c0_75, %c0_76, %c0_77] : memref<1x1x1x128xf32, #tpu.memory_space<vmem>>, vector<1x1x1x128xf32>
    tpu.vector_store %arg8[%c0_74, %c0_75, %c0_76, %c0_77], %122 {strides = array<i32>} : memref<1x1x1x128xf32, #tpu.memory_space<vmem>>, vector<1x1x1x128xf32>,
    return
  }
  func.func @transform_0(%arg0: i32, %arg1: i32) -> (i32, i32, i32, i32, i32) {
    %c0_i32 = arith.constant 0 : i32
    %c0_i32_0 = arith.constant 0 : i32
    %c0_i32_1 = arith.constant 0 : i32
    %c0_i32_2 = arith.constant 0 : i32
    return %arg0, %arg1, %c0_i32, %c0_i32_0, %c0_i32_1 : i32, i32, i32, i32, i32
  }
  func.func @transform_1(%arg0: i32, %arg1: i32) -> (i32, i32, i32, i32, i32) {
    %c4_i32 = arith.constant 4 : i32
    %0 = arith.muli %arg1, %c4_i32 : i32
    %c1_i32 = arith.constant 1 : i32
    %1 = arith.subi %0, %c1_i32 : i32
    %c0_i32 = arith.constant 0 : i32
    %2 = arith.maxsi %1, %c0_i32 : i32
    %c0_i32_0 = arith.constant 0 : i32
    %c0_i32_1 = arith.constant 0 : i32
    %c0_i32_2 = arith.constant 0 : i32
    %c0_i32_3 = arith.constant 0 : i32
    return %arg0, %2, %c0_i32_0, %c0_i32_1, %c0_i32_2 : i32, i32, i32, i32, i32
  }
  func.func @transform_2(%arg0: i32, %arg1: i32) -> (i32, i32, i32, i32, i32) {
    %c4_i32 = arith.constant 4 : i32
    %0 = arith.muli %arg1, %c4_i32 : i32
    %c4_i32_0 = arith.constant 4 : i32
    %1 = arith.addi %0, %c4_i32_0 : i32
    %c7_i32 = arith.constant 7 : i32
    %2 = arith.minsi %1, %c7_i32 : i32
    %c0_i32 = arith.constant 0 : i32
    %c0_i32_1 = arith.constant 0 : i32
    %c0_i32_2 = arith.constant 0 : i32
    %c0_i32_3 = arith.constant 0 : i32
    return %arg0, %2, %c0_i32, %c0_i32_1, %c0_i32_2 : i32, i32, i32, i32, i32
  }
  func.func @transform_3(%arg0: i32, %arg1: i32) -> (i32, i32, i32) {
    %c0_i32 = arith.constant 0 : i32
    %c0_i32_0 = arith.constant 0 : i32
    %c0_i32_1 = arith.constant 0 : i32
    %c0_i32_2 = arith.constant 0 : i32
    return %c0_i32, %c0_i32_0, %c0_i32_1 : i32, i32, i32
  }
  func.func @transform_4(%arg0: i32, %arg1: i32) -> (i32, i32, i32, i32) {
    %c0_i32 = arith.constant 0 : i32
    %c0_i32_0 = arith.constant 0 : i32
    %c0_i32_1 = arith.constant 0 : i32
    return %arg0, %arg1, %c0_i32, %c0_i32_0 : i32, i32, i32, i32
  }
  func.func @transform_5(%arg0: i32, %arg1: i32) -> (i32, i32, i32, i32) {
    %c0_i32 = arith.constant 0 : i32
    %c0_i32_0 = arith.constant 0 : i32
    %c0_i32_1 = arith.constant 0 : i32
    return %arg0, %arg1, %c0_i32, %c0_i32_0 : i32, i32, i32, i32
  }
  func.func @transform_6(%arg0: i32, %arg1: i32) -> (i32, i32, i32, i32) {
    %c0_i32 = arith.constant 0 : i32
    %c0_i32_0 = arith.constant 0 : i32
    %c0_i32_1 = arith.constant 0 : i32
    return %arg0, %arg1, %c0_i32, %c0_i32_0 : i32, i32, i32, i32
  }
}

module attributes {stable_mosaic.version = 11 : i64} {
  func.func @bnrelu_out_kernel(%arg0: i32, %arg1: i32, %arg2: memref<1x8x8x128xbf16, #tpu.memory_space<vmem>>, %arg3: memref<1x128xf32, #tpu.memory_space<vmem>>, %arg4: memref<1x128xf32, #tpu.memory_space<vmem>>, %arg5: memref<1x8x8x8xf32, #tpu.memory_space<vmem>>) attributes {dimension_semantics = [#tpu.dimension_semantics<parallel>, #tpu.dimension_semantics<parallel>], iteration_bounds = array<i64: 2, 1>, scalar_prefetch = 0 : i64, scratch_operands = 0 : i64, tpu.core_type = #tpu.core_type<tc>, window_params = [{transform_indices = @transform_0, window_bounds = array<i64: 1, 8, 8, 128>}, {pipeline_mode = #tpu.pipeline_mode<synchronous>, transform_indices = @transform_1, window_bounds = array<i64: 1, 128>}, {pipeline_mode = #tpu.pipeline_mode<synchronous>, transform_indices = @transform_2, window_bounds = array<i64: 1, 128>}, {transform_indices = @transform_3, window_bounds = array<i64: 1, 8, 8, 8>}]} {
    %c0 = arith.constant 0 : index
    %c0_0 = arith.constant 0 : index
    %c0_1 = arith.constant 0 : index
    %c0_2 = arith.constant 0 : index
    %0 = vector.load %arg2[%c0, %c0_0, %c0_1, %c0_2] : memref<1x8x8x128xbf16, #tpu.memory_space<vmem>>, vector<1x8x8x128xbf16>
    %1 = vector.shape_cast %0 : vector<1x8x8x128xbf16> to vector<8x8x128xbf16>
    %2 = arith.extf %1 : vector<8x8x128xbf16> to vector<8x8x128xf32>
    %c0_3 = arith.constant 0 : index
    %c0_4 = arith.constant 0 : index
    %3 = vector.load %arg3[%c0_3, %c0_4] : memref<1x128xf32, #tpu.memory_space<vmem>>, vector<1x128xf32>
    %4 = vector.shape_cast %3 : vector<1x128xf32> to vector<128xf32>
    %5 = vector.shape_cast %4 : vector<128xf32> to vector<1x1x128xf32>
    %6 = vector.broadcast %5 : vector<1x1x128xf32> to vector<8x8x128xf32>
    %7 = arith.mulf %2, %6 : vector<8x8x128xf32>
    %c0_5 = arith.constant 0 : index
    %c0_6 = arith.constant 0 : index
    %8 = vector.load %arg4[%c0_5, %c0_6] : memref<1x128xf32, #tpu.memory_space<vmem>>, vector<1x128xf32>
    %9 = vector.shape_cast %8 : vector<1x128xf32> to vector<128xf32>
    %10 = vector.shape_cast %9 : vector<128xf32> to vector<1x1x128xf32>
    %11 = vector.broadcast %10 : vector<1x1x128xf32> to vector<8x8x128xf32>
    %12 = arith.addf %7, %11 : vector<8x8x128xf32>
    %cst = arith.constant 0.000000e+00 : f32
    %13 = vector.broadcast %cst : f32 to vector<8x8x128xf32>
    %14 = arith.maximumf %12, %13 : vector<8x8x128xf32>
    %15 = vector.shape_cast %14 : vector<8x8x128xf32> to vector<64x128xf32>
    %16 = tpu.transpose %15, [1, 0] : vector<64x128xf32> -> vector<128x64xf32>
    %17 = vector.extract_strided_slice %16 {offsets = [0, 0], sizes = [8, 64], strides = [1, 1]} : vector<128x64xf32> to vector<8x64xf32>
    %18 = vector.shape_cast %17 : vector<8x64xf32> to vector<1x8x8x8xf32>
    %c0_7 = arith.constant 0 : index
    %c0_8 = arith.constant 0 : index
    %c0_9 = arith.constant 0 : index
    %c0_10 = arith.constant 0 : index
    %19 = vector.load %arg5[%c0_7, %c0_8, %c0_9, %c0_10] : memref<1x8x8x8xf32, #tpu.memory_space<vmem>>, vector<1x8x8x8xf32>
    tpu.vector_store %arg5[%c0_7, %c0_8, %c0_9, %c0_10], %18 {strides = array<i32>} : memref<1x8x8x8xf32, #tpu.memory_space<vmem>>, vector<1x8x8x8xf32>,
    return
  }
  func.func @transform_0(%arg0: i32, %arg1: i32) -> (i32, i32, i32, i32) {
    %c0_i32 = arith.constant 0 : i32
    %c0_i32_0 = arith.constant 0 : i32
    %c0_i32_1 = arith.constant 0 : i32
    return %arg0, %arg1, %c0_i32, %c0_i32_0 : i32, i32, i32, i32
  }
  func.func @transform_1(%arg0: i32, %arg1: i32) -> (i32, i32) {
    %c0_i32 = arith.constant 0 : i32
    %c0_i32_0 = arith.constant 0 : i32
    %c0_i32_1 = arith.constant 0 : i32
    return %c0_i32, %c0_i32_0 : i32, i32
  }
  func.func @transform_2(%arg0: i32, %arg1: i32) -> (i32, i32) {
    %c0_i32 = arith.constant 0 : i32
    %c0_i32_0 = arith.constant 0 : i32
    %c0_i32_1 = arith.constant 0 : i32
    return %c0_i32, %c0_i32_0 : i32, i32
  }
  func.func @transform_3(%arg0: i32, %arg1: i32) -> (i32, i32, i32, i32) {
    %c0_i32 = arith.constant 0 : i32
    %c0_i32_0 = arith.constant 0 : i32
    %c0_i32_1 = arith.constant 0 : i32
    return %arg0, %c0_i32, %arg1, %c0_i32_0 : i32, i32, i32, i32
  }
}

module attributes {stable_mosaic.version = 11 : i64} {
  func.func @bnrelu_conv2_kernel(%arg0: i32, %arg1: i32, %arg2: memref<1x4x8x128xbf16, #tpu.memory_space<vmem>>, %arg3: memref<1x1x8x128xbf16, #tpu.memory_space<vmem>>, %arg4: memref<1x1x8x128xbf16, #tpu.memory_space<vmem>>, %arg5: memref<1x128xf32, #tpu.memory_space<vmem>>, %arg6: memref<1x128xf32, #tpu.memory_space<vmem>>, %arg7: memref<9x128x128xbf16, #tpu.memory_space<vmem>>, %arg8: memref<1x4x8x128xbf16, #tpu.memory_space<vmem>>, %arg9: memref<1x1x1x128xf32, #tpu.memory_space<vmem>>, %arg10: memref<1x1x1x128xf32, #tpu.memory_space<vmem>>, %arg11: memref<6x10x128xbf16, #tpu.memory_space<vmem>>) attributes {dimension_semantics = [#tpu.dimension_semantics<parallel>, #tpu.dimension_semantics<parallel>], iteration_bounds = array<i64: 2, 2>, scalar_prefetch = 0 : i64, scratch_operands = 1 : i64, tpu.core_type = #tpu.core_type<tc>, window_params = [{transform_indices = @transform_0, window_bounds = array<i64: 1, 4, 8, 128>}, {transform_indices = @transform_1, window_bounds = array<i64: 1, 1, 8, 128>}, {transform_indices = @transform_2, window_bounds = array<i64: 1, 1, 8, 128>}, {pipeline_mode = #tpu.pipeline_mode<synchronous>, transform_indices = @transform_3, window_bounds = array<i64: 1, 128>}, {pipeline_mode = #tpu.pipeline_mode<synchronous>, transform_indices = @transform_4, window_bounds = array<i64: 1, 128>}, {pipeline_mode = #tpu.pipeline_mode<synchronous>, transform_indices = @transform_5, window_bounds = array<i64: 9, 128, 128>}, {transform_indices = @transform_6, window_bounds = array<i64: 1, 4, 8, 128>}, {transform_indices = @transform_7, window_bounds = array<i64: 1, 1, 1, 128>}, {transform_indices = @transform_8, window_bounds = array<i64: 1, 1, 1, 128>}]} {
    %c0 = arith.constant 0 : index
    %c0_0 = arith.constant 0 : index
    %0 = vector.load %arg5[%c0, %c0_0] : memref<1x128xf32, #tpu.memory_space<vmem>>, vector<1x128xf32>
    %1 = vector.shape_cast %0 : vector<1x128xf32> to vector<128xf32>
    %c0_1 = arith.constant 0 : index
    %c0_2 = arith.constant 0 : index
    %2 = vector.load %arg6[%c0_1, %c0_2] : memref<1x128xf32, #tpu.memory_space<vmem>>, vector<1x128xf32>
    %3 = vector.shape_cast %2 : vector<1x128xf32> to vector<128xf32>
    %c0_3 = arith.constant 0 : index
    %c0_4 = arith.constant 0 : index
    %c0_5 = arith.constant 0 : index
    %c0_6 = arith.constant 0 : index
    %4 = vector.load %arg2[%c0_3, %c0_4, %c0_5, %c0_6] : memref<1x4x8x128xbf16, #tpu.memory_space<vmem>>, vector<1x4x8x128xbf16>
    %5 = vector.shape_cast %4 : vector<1x4x8x128xbf16> to vector<4x8x128xbf16>
    %6 = arith.extf %5 : vector<4x8x128xbf16> to vector<4x8x128xf32>
    %7 = vector.shape_cast %1 : vector<128xf32> to vector<1x1x128xf32>
    %8 = vector.broadcast %7 : vector<1x1x128xf32> to vector<4x8x128xf32>
    %9 = arith.mulf %6, %8 : vector<4x8x128xf32>
    %10 = vector.shape_cast %3 : vector<128xf32> to vector<1x1x128xf32>
    %11 = vector.broadcast %10 : vector<1x1x128xf32> to vector<4x8x128xf32>
    %12 = arith.addf %9, %11 : vector<4x8x128xf32>
    %cst = arith.constant 0.000000e+00 : f32
    %13 = vector.broadcast %cst : f32 to vector<4x8x128xf32>
    %14 = arith.maximumf %12, %13 : vector<4x8x128xf32>
    %15 = arith.truncf %14 : vector<4x8x128xf32> to vector<4x8x128xbf16>
    %c0_7 = arith.constant 0 : index
    %c0_8 = arith.constant 0 : index
    %c0_9 = arith.constant 0 : index
    %c0_10 = arith.constant 0 : index
    %16 = vector.load %arg3[%c0_7, %c0_8, %c0_9, %c0_10] : memref<1x1x8x128xbf16, #tpu.memory_space<vmem>>, vector<1x1x8x128xbf16>
    %17 = vector.shape_cast %16 : vector<1x1x8x128xbf16> to vector<1x8x128xbf16>
    %18 = arith.extf %17 : vector<1x8x128xbf16> to vector<1x8x128xf32>
    %19 = vector.shape_cast %1 : vector<128xf32> to vector<1x1x128xf32>
    %20 = vector.broadcast %19 : vector<1x1x128xf32> to vector<1x8x128xf32>
    %21 = arith.mulf %18, %20 : vector<1x8x128xf32>
    %22 = vector.shape_cast %3 : vector<128xf32> to vector<1x1x128xf32>
    %23 = vector.broadcast %22 : vector<1x1x128xf32> to vector<1x8x128xf32>
    %24 = arith.addf %21, %23 : vector<1x8x128xf32>
    %cst_11 = arith.constant 0.000000e+00 : f32
    %25 = vector.broadcast %cst_11 : f32 to vector<1x8x128xf32>
    %26 = arith.maximumf %24, %25 : vector<1x8x128xf32>
    %27 = arith.truncf %26 : vector<1x8x128xf32> to vector<1x8x128xbf16>
    %c0_12 = arith.constant 0 : index
    %c0_13 = arith.constant 0 : index
    %c0_14 = arith.constant 0 : index
    %c0_15 = arith.constant 0 : index
    %28 = vector.load %arg4[%c0_12, %c0_13, %c0_14, %c0_15] : memref<1x1x8x128xbf16, #tpu.memory_space<vmem>>, vector<1x1x8x128xbf16>
    %29 = vector.shape_cast %28 : vector<1x1x8x128xbf16> to vector<1x8x128xbf16>
    %30 = arith.extf %29 : vector<1x8x128xbf16> to vector<1x8x128xf32>
    %31 = vector.shape_cast %1 : vector<128xf32> to vector<1x1x128xf32>
    %32 = vector.broadcast %31 : vector<1x1x128xf32> to vector<1x8x128xf32>
    %33 = arith.mulf %30, %32 : vector<1x8x128xf32>
    %34 = vector.shape_cast %3 : vector<128xf32> to vector<1x1x128xf32>
    %35 = vector.broadcast %34 : vector<1x1x128xf32> to vector<1x8x128xf32>
    %36 = arith.addf %33, %35 : vector<1x8x128xf32>
    %cst_16 = arith.constant 0.000000e+00 : f32
    %37 = vector.broadcast %cst_16 : f32 to vector<1x8x128xf32>
    %38 = arith.maximumf %36, %37 : vector<1x8x128xf32>
    %39 = arith.truncf %38 : vector<1x8x128xf32> to vector<1x8x128xbf16>
    %c0_i32 = arith.constant 0 : i32
    %40 = arith.cmpi eq, %arg1, %c0_i32 : i32
    %cst_17 = arith.constant 0.000000e+00 : bf16
    %41 = vector.broadcast %cst_17 : bf16 to vector<1x8x128xbf16>
    %42 = arith.select %40, %41, %27 : vector<1x8x128xbf16>
    %c1_i32 = arith.constant 1 : i32
    %43 = arith.cmpi eq, %arg1, %c1_i32 : i32
    %cst_18 = arith.constant 0.000000e+00 : bf16
    %44 = vector.broadcast %cst_18 : bf16 to vector<1x8x128xbf16>
    %45 = arith.select %43, %44, %39 : vector<1x8x128xbf16>
    %cst_19 = arith.constant 0.000000e+00 : bf16
    %46 = vector.broadcast %cst_19 : bf16 to vector<6x128xbf16>
    %c0_20 = arith.constant 0 : index
    %c0_21 = arith.constant 0 : index
    %c0_22 = arith.constant 0 : index
    %47 = vector.load %arg11[%c0_20, %c0_21, %c0_22] : memref<6x10x128xbf16, #tpu.memory_space<vmem>>, vector<6x1x128xbf16>
    %48 = vector.shape_cast %47 : vector<6x1x128xbf16> to vector<6x128xbf16>
    %49 = vector.shape_cast %46 : vector<6x128xbf16> to vector<6x1x128xbf16>
    tpu.vector_store %arg11[%c0_20, %c0_21, %c0_22], %49 {strides = array<i32>} : memref<6x10x128xbf16, #tpu.memory_space<vmem>>, vector<6x1x128xbf16>,
    %cst_23 = arith.constant 0.000000e+00 : bf16
    %50 = vector.broadcast %cst_23 : bf16 to vector<6x128xbf16>
    %c0_24 = arith.constant 0 : index
    %c9 = arith.constant 9 : index
    %c0_25 = arith.constant 0 : index
    %51 = vector.load %arg11[%c0_24, %c9, %c0_25] : memref<6x10x128xbf16, #tpu.memory_space<vmem>>, vector<6x1x128xbf16>
    %52 = vector.shape_cast %51 : vector<6x1x128xbf16> to vector<6x128xbf16>
    %53 = vector.shape_cast %50 : vector<6x128xbf16> to vector<6x1x128xbf16>
    tpu.vector_store %arg11[%c0_24, %c9, %c0_25], %53 {strides = array<i32>} : memref<6x10x128xbf16, #tpu.memory_space<vmem>>, vector<6x1x128xbf16>,
    %54 = vector.shape_cast %42 : vector<1x8x128xbf16> to vector<8x128xbf16>
    %c0_26 = arith.constant 0 : index
    %c1 = arith.constant 1 : index
    %c0_27 = arith.constant 0 : index
    %55 = vector.load %arg11[%c0_26, %c1, %c0_27] : memref<6x10x128xbf16, #tpu.memory_space<vmem>>, vector<1x8x128xbf16>
    %56 = vector.shape_cast %55 : vector<1x8x128xbf16> to vector<8x128xbf16>
    %57 = vector.shape_cast %54 : vector<8x128xbf16> to vector<1x8x128xbf16>
    tpu.vector_store %arg11[%c0_26, %c1, %c0_27], %57 {strides = array<i32>} : memref<6x10x128xbf16, #tpu.memory_space<vmem>>, vector<1x8x128xbf16>,
    %58 = vector.shape_cast %45 : vector<1x8x128xbf16> to vector<8x128xbf16>
    %c5 = arith.constant 5 : index
    %c1_28 = arith.constant 1 : index
    %c0_29 = arith.constant 0 : index
    %59 = vector.load %arg11[%c5, %c1_28, %c0_29] : memref<6x10x128xbf16, #tpu.memory_space<vmem>>, vector<1x8x128xbf16>
    %60 = vector.shape_cast %59 : vector<1x8x128xbf16> to vector<8x128xbf16>
    %61 = vector.shape_cast %58 : vector<8x128xbf16> to vector<1x8x128xbf16>
    tpu.vector_store %arg11[%c5, %c1_28, %c0_29], %61 {strides = array<i32>} : memref<6x10x128xbf16, #tpu.memory_space<vmem>>, vector<1x8x128xbf16>,
    %c1_30 = arith.constant 1 : index
    %c1_31 = arith.constant 1 : index
    %c0_32 = arith.constant 0 : index
    %62 = vector.load %arg11[%c1_30, %c1_31, %c0_32] : memref<6x10x128xbf16, #tpu.memory_space<vmem>>, vector<4x8x128xbf16>
    tpu.vector_store %arg11[%c1_30, %c1_31, %c0_32], %15 {strides = array<i32>} : memref<6x10x128xbf16, #tpu.memory_space<vmem>>, vector<4x8x128xbf16>,
    %c0_33 = arith.constant 0 : index
    %c0_34 = arith.constant 0 : index
    %c0_35 = arith.constant 0 : index
    %63 = vector.load %arg11[%c0_33, %c0_34, %c0_35] : memref<6x10x128xbf16, #tpu.memory_space<vmem>>, vector<6x10x128xbf16>
    %cst_36 = arith.constant 0.000000e+00 : f32
    %64 = vector.broadcast %cst_36 : f32 to vector<32x128xf32>
    %65 = vector.extract_strided_slice %63 {offsets = [0, 0, 0], sizes = [4, 8, 128], strides = [1, 1, 1]} : vector<6x10x128xbf16> to vector<4x8x128xbf16>
    %66 = vector.shape_cast %65 : vector<4x8x128xbf16> to vector<32x128xbf16>
    %c0_37 = arith.constant 0 : index
    %c0_38 = arith.constant 0 : index
    %c0_39 = arith.constant 0 : index
    %67 = vector.load %arg7[%c0_37, %c0_38, %c0_39] : memref<9x128x128xbf16, #tpu.memory_space<vmem>>, vector<1x128x128xbf16>
    %68 = vector.shape_cast %67 : vector<1x128x128xbf16> to vector<128x128xbf16>
    %cst_40 = arith.constant dense<0.000000e+00> : vector<32x128xf32>
    %69 = tpu.matmul %66, %68, %cst_40 {dimension_numbers = #tpu.dot_dimension_numbers<[1], [0], [0], [1], [0, 0, 1, 1], [], []>} : vector<32x128xbf16>, vector<128x128xbf16>, vector<32x128xf32> -> vector<32x128xf32>
    %70 = arith.addf %64, %69 : vector<32x128xf32>
    %71 = vector.extract_strided_slice %63 {offsets = [0, 1, 0], sizes = [4, 8, 128], strides = [1, 1, 1]} : vector<6x10x128xbf16> to vector<4x8x128xbf16>
    %72 = vector.shape_cast %71 : vector<4x8x128xbf16> to vector<32x128xbf16>
    %c1_41 = arith.constant 1 : index
    %c0_42 = arith.constant 0 : index
    %c0_43 = arith.constant 0 : index
    %73 = vector.load %arg7[%c1_41, %c0_42, %c0_43] : memref<9x128x128xbf16, #tpu.memory_space<vmem>>, vector<1x128x128xbf16>
    %74 = vector.shape_cast %73 : vector<1x128x128xbf16> to vector<128x128xbf16>
    %cst_44 = arith.constant dense<0.000000e+00> : vector<32x128xf32>
    %75 = tpu.matmul %72, %74, %cst_44 {dimension_numbers = #tpu.dot_dimension_numbers<[1], [0], [0], [1], [0, 0, 1, 1], [], []>} : vector<32x128xbf16>, vector<128x128xbf16>, vector<32x128xf32> -> vector<32x128xf32>
    %76 = arith.addf %70, %75 : vector<32x128xf32>
    %77 = vector.extract_strided_slice %63 {offsets = [0, 2, 0], sizes = [4, 8, 128], strides = [1, 1, 1]} : vector<6x10x128xbf16> to vector<4x8x128xbf16>
    %78 = vector.shape_cast %77 : vector<4x8x128xbf16> to vector<32x128xbf16>
    %c2 = arith.constant 2 : index
    %c0_45 = arith.constant 0 : index
    %c0_46 = arith.constant 0 : index
    %79 = vector.load %arg7[%c2, %c0_45, %c0_46] : memref<9x128x128xbf16, #tpu.memory_space<vmem>>, vector<1x128x128xbf16>
    %80 = vector.shape_cast %79 : vector<1x128x128xbf16> to vector<128x128xbf16>
    %cst_47 = arith.constant dense<0.000000e+00> : vector<32x128xf32>
    %81 = tpu.matmul %78, %80, %cst_47 {dimension_numbers = #tpu.dot_dimension_numbers<[1], [0], [0], [1], [0, 0, 1, 1], [], []>} : vector<32x128xbf16>, vector<128x128xbf16>, vector<32x128xf32> -> vector<32x128xf32>
    %82 = arith.addf %76, %81 : vector<32x128xf32>
    %83 = vector.extract_strided_slice %63 {offsets = [1, 0, 0], sizes = [4, 8, 128], strides = [1, 1, 1]} : vector<6x10x128xbf16> to vector<4x8x128xbf16>
    %84 = vector.shape_cast %83 : vector<4x8x128xbf16> to vector<32x128xbf16>
    %c3 = arith.constant 3 : index
    %c0_48 = arith.constant 0 : index
    %c0_49 = arith.constant 0 : index
    %85 = vector.load %arg7[%c3, %c0_48, %c0_49] : memref<9x128x128xbf16, #tpu.memory_space<vmem>>, vector<1x128x128xbf16>
    %86 = vector.shape_cast %85 : vector<1x128x128xbf16> to vector<128x128xbf16>
    %cst_50 = arith.constant dense<0.000000e+00> : vector<32x128xf32>
    %87 = tpu.matmul %84, %86, %cst_50 {dimension_numbers = #tpu.dot_dimension_numbers<[1], [0], [0], [1], [0, 0, 1, 1], [], []>} : vector<32x128xbf16>, vector<128x128xbf16>, vector<32x128xf32> -> vector<32x128xf32>
    %88 = arith.addf %82, %87 : vector<32x128xf32>
    %89 = vector.extract_strided_slice %63 {offsets = [1, 1, 0], sizes = [4, 8, 128], strides = [1, 1, 1]} : vector<6x10x128xbf16> to vector<4x8x128xbf16>
    %90 = vector.shape_cast %89 : vector<4x8x128xbf16> to vector<32x128xbf16>
    %c4 = arith.constant 4 : index
    %c0_51 = arith.constant 0 : index
    %c0_52 = arith.constant 0 : index
    %91 = vector.load %arg7[%c4, %c0_51, %c0_52] : memref<9x128x128xbf16, #tpu.memory_space<vmem>>, vector<1x128x128xbf16>
    %92 = vector.shape_cast %91 : vector<1x128x128xbf16> to vector<128x128xbf16>
    %cst_53 = arith.constant dense<0.000000e+00> : vector<32x128xf32>
    %93 = tpu.matmul %90, %92, %cst_53 {dimension_numbers = #tpu.dot_dimension_numbers<[1], [0], [0], [1], [0, 0, 1, 1], [], []>} : vector<32x128xbf16>, vector<128x128xbf16>, vector<32x128xf32> -> vector<32x128xf32>
    %94 = arith.addf %88, %93 : vector<32x128xf32>
    %95 = vector.extract_strided_slice %63 {offsets = [1, 2, 0], sizes = [4, 8, 128], strides = [1, 1, 1]} : vector<6x10x128xbf16> to vector<4x8x128xbf16>
    %96 = vector.shape_cast %95 : vector<4x8x128xbf16> to vector<32x128xbf16>
    %c5_54 = arith.constant 5 : index
    %c0_55 = arith.constant 0 : index
    %c0_56 = arith.constant 0 : index
    %97 = vector.load %arg7[%c5_54, %c0_55, %c0_56] : memref<9x128x128xbf16, #tpu.memory_space<vmem>>, vector<1x128x128xbf16>
    %98 = vector.shape_cast %97 : vector<1x128x128xbf16> to vector<128x128xbf16>
    %cst_57 = arith.constant dense<0.000000e+00> : vector<32x128xf32>
    %99 = tpu.matmul %96, %98, %cst_57 {dimension_numbers = #tpu.dot_dimension_numbers<[1], [0], [0], [1], [0, 0, 1, 1], [], []>} : vector<32x128xbf16>, vector<128x128xbf16>, vector<32x128xf32> -> vector<32x128xf32>
    %100 = arith.addf %94, %99 : vector<32x128xf32>
    %101 = vector.extract_strided_slice %63 {offsets = [2, 0, 0], sizes = [4, 8, 128], strides = [1, 1, 1]} : vector<6x10x128xbf16> to vector<4x8x128xbf16>
    %102 = vector.shape_cast %101 : vector<4x8x128xbf16> to vector<32x128xbf16>
    %c6 = arith.constant 6 : index
    %c0_58 = arith.constant 0 : index
    %c0_59 = arith.constant 0 : index
    %103 = vector.load %arg7[%c6, %c0_58, %c0_59] : memref<9x128x128xbf16, #tpu.memory_space<vmem>>, vector<1x128x128xbf16>
    %104 = vector.shape_cast %103 : vector<1x128x128xbf16> to vector<128x128xbf16>
    %cst_60 = arith.constant dense<0.000000e+00> : vector<32x128xf32>
    %105 = tpu.matmul %102, %104, %cst_60 {dimension_numbers = #tpu.dot_dimension_numbers<[1], [0], [0], [1], [0, 0, 1, 1], [], []>} : vector<32x128xbf16>, vector<128x128xbf16>, vector<32x128xf32> -> vector<32x128xf32>
    %106 = arith.addf %100, %105 : vector<32x128xf32>
    %107 = vector.extract_strided_slice %63 {offsets = [2, 1, 0], sizes = [4, 8, 128], strides = [1, 1, 1]} : vector<6x10x128xbf16> to vector<4x8x128xbf16>
    %108 = vector.shape_cast %107 : vector<4x8x128xbf16> to vector<32x128xbf16>
    %c7 = arith.constant 7 : index
    %c0_61 = arith.constant 0 : index
    %c0_62 = arith.constant 0 : index
    %109 = vector.load %arg7[%c7, %c0_61, %c0_62] : memref<9x128x128xbf16, #tpu.memory_space<vmem>>, vector<1x128x128xbf16>
    %110 = vector.shape_cast %109 : vector<1x128x128xbf16> to vector<128x128xbf16>
    %cst_63 = arith.constant dense<0.000000e+00> : vector<32x128xf32>
    %111 = tpu.matmul %108, %110, %cst_63 {dimension_numbers = #tpu.dot_dimension_numbers<[1], [0], [0], [1], [0, 0, 1, 1], [], []>} : vector<32x128xbf16>, vector<128x128xbf16>, vector<32x128xf32> -> vector<32x128xf32>
    %112 = arith.addf %106, %111 : vector<32x128xf32>
    %113 = vector.extract_strided_slice %63 {offsets = [2, 2, 0], sizes = [4, 8, 128], strides = [1, 1, 1]} : vector<6x10x128xbf16> to vector<4x8x128xbf16>
    %114 = vector.shape_cast %113 : vector<4x8x128xbf16> to vector<32x128xbf16>
    %c8 = arith.constant 8 : index
    %c0_64 = arith.constant 0 : index
    %c0_65 = arith.constant 0 : index
    %115 = vector.load %arg7[%c8, %c0_64, %c0_65] : memref<9x128x128xbf16, #tpu.memory_space<vmem>>, vector<1x128x128xbf16>
    %116 = vector.shape_cast %115 : vector<1x128x128xbf16> to vector<128x128xbf16>
    %cst_66 = arith.constant dense<0.000000e+00> : vector<32x128xf32>
    %117 = tpu.matmul %114, %116, %cst_66 {dimension_numbers = #tpu.dot_dimension_numbers<[1], [0], [0], [1], [0, 0, 1, 1], [], []>} : vector<32x128xbf16>, vector<128x128xbf16>, vector<32x128xf32> -> vector<32x128xf32>
    %118 = arith.addf %112, %117 : vector<32x128xf32>
    %119 = vector.shape_cast %118 : vector<32x128xf32> to vector<1x4x8x128xf32>
    %120 = arith.truncf %119 : vector<1x4x8x128xf32> to vector<1x4x8x128xbf16>
    %c0_67 = arith.constant 0 : index
    %c0_68 = arith.constant 0 : index
    %c0_69 = arith.constant 0 : index
    %c0_70 = arith.constant 0 : index
    %121 = vector.load %arg8[%c0_67, %c0_68, %c0_69, %c0_70] : memref<1x4x8x128xbf16, #tpu.memory_space<vmem>>, vector<1x4x8x128xbf16>
    tpu.vector_store %arg8[%c0_67, %c0_68, %c0_69, %c0_70], %120 {strides = array<i32>} : memref<1x4x8x128xbf16, #tpu.memory_space<vmem>>, vector<1x4x8x128xbf16>,
    %cst_71 = arith.constant dense<0.000000e+00> : vector<128xf32>
    %122 = vector.multi_reduction <add>, %118, %cst_71 [0] : vector<32x128xf32> to vector<128xf32>
    %cst_72 = arith.constant 3.125000e-02 : f32
    %123 = vector.broadcast %cst_72 : f32 to vector<128xf32>
    %124 = arith.mulf %122, %123 : vector<128xf32>
    %125 = vector.shape_cast %124 : vector<128xf32> to vector<1x128xf32>
    %126 = vector.broadcast %125 : vector<1x128xf32> to vector<32x128xf32>
    %127 = arith.subf %118, %126 : vector<32x128xf32>
    %128 = arith.mulf %127, %127 : vector<32x128xf32>
    %cst_73 = arith.constant dense<0.000000e+00> : vector<128xf32>
    %129 = vector.multi_reduction <add>, %128, %cst_73 [0] : vector<32x128xf32> to vector<128xf32>
    %130 = vector.shape_cast %122 : vector<128xf32> to vector<1x1x1x128xf32>
    %c0_74 = arith.constant 0 : index
    %c0_75 = arith.constant 0 : index
    %c0_76 = arith.constant 0 : index
    %c0_77 = arith.constant 0 : index
    %131 = vector.load %arg9[%c0_74, %c0_75, %c0_76, %c0_77] : memref<1x1x1x128xf32, #tpu.memory_space<vmem>>, vector<1x1x1x128xf32>
    tpu.vector_store %arg9[%c0_74, %c0_75, %c0_76, %c0_77], %130 {strides = array<i32>} : memref<1x1x1x128xf32, #tpu.memory_space<vmem>>, vector<1x1x1x128xf32>,
    %132 = vector.shape_cast %129 : vector<128xf32> to vector<1x1x1x128xf32>
    %c0_78 = arith.constant 0 : index
    %c0_79 = arith.constant 0 : index
    %c0_80 = arith.constant 0 : index
    %c0_81 = arith.constant 0 : index
    %133 = vector.load %arg10[%c0_78, %c0_79, %c0_80, %c0_81] : memref<1x1x1x128xf32, #tpu.memory_space<vmem>>, vector<1x1x1x128xf32>
    tpu.vector_store %arg10[%c0_78, %c0_79, %c0_80, %c0_81], %132 {strides = array<i32>} : memref<1x1x1x128xf32, #tpu.memory_space<vmem>>, vector<1x1x1x128xf32>,
    return
  }
  func.func @transform_0(%arg0: i32, %arg1: i32) -> (i32, i32, i32, i32) {
    %c0_i32 = arith.constant 0 : i32
    %c0_i32_0 = arith.constant 0 : i32
    %c0_i32_1 = arith.constant 0 : i32
    return %arg0, %arg1, %c0_i32, %c0_i32_0 : i32, i32, i32, i32
  }
  func.func @transform_1(%arg0: i32, %arg1: i32) -> (i32, i32, i32, i32) {
    %c4_i32 = arith.constant 4 : i32
    %0 = arith.muli %arg1, %c4_i32 : i32
    %c1_i32 = arith.constant 1 : i32
    %1 = arith.subi %0, %c1_i32 : i32
    %c0_i32 = arith.constant 0 : i32
    %2 = arith.maxsi %1, %c0_i32 : i32
    %c0_i32_0 = arith.constant 0 : i32
    %c0_i32_1 = arith.constant 0 : i32
    %c0_i32_2 = arith.constant 0 : i32
    return %arg0, %2, %c0_i32_0, %c0_i32_1 : i32, i32, i32, i32
  }
  func.func @transform_2(%arg0: i32, %arg1: i32) -> (i32, i32, i32, i32) {
    %c4_i32 = arith.constant 4 : i32
    %0 = arith.muli %arg1, %c4_i32 : i32
    %c4_i32_0 = arith.constant 4 : i32
    %1 = arith.addi %0, %c4_i32_0 : i32
    %c7_i32 = arith.constant 7 : i32
    %2 = arith.minsi %1, %c7_i32 : i32
    %c0_i32 = arith.constant 0 : i32
    %c0_i32_1 = arith.constant 0 : i32
    %c0_i32_2 = arith.constant 0 : i32
    return %arg0, %2, %c0_i32, %c0_i32_1 : i32, i32, i32, i32
  }
  func.func @transform_3(%arg0: i32, %arg1: i32) -> (i32, i32) {
    %c0_i32 = arith.constant 0 : i32
    %c0_i32_0 = arith.constant 0 : i32
    %c0_i32_1 = arith.constant 0 : i32
    return %c0_i32, %c0_i32_0 : i32, i32
  }
  func.func @transform_4(%arg0: i32, %arg1: i32) -> (i32, i32) {
    %c0_i32 = arith.constant 0 : i32
    %c0_i32_0 = arith.constant 0 : i32
    %c0_i32_1 = arith.constant 0 : i32
    return %c0_i32, %c0_i32_0 : i32, i32
  }
  func.func @transform_5(%arg0: i32, %arg1: i32) -> (i32, i32, i32) {
    %c0_i32 = arith.constant 0 : i32
    %c0_i32_0 = arith.constant 0 : i32
    %c0_i32_1 = arith.constant 0 : i32
    %c0_i32_2 = arith.constant 0 : i32
    return %c0_i32, %c0_i32_0, %c0_i32_1 : i32, i32, i32
  }
  func.func @transform_6(%arg0: i32, %arg1: i32) -> (i32, i32, i32, i32) {
    %c0_i32 = arith.constant 0 : i32
    %c0_i32_0 = arith.constant 0 : i32
    %c0_i32_1 = arith.constant 0 : i32
    return %arg0, %arg1, %c0_i32, %c0_i32_0 : i32, i32, i32, i32
  }
  func.func @transform_7(%arg0: i32, %arg1: i32) -> (i32, i32, i32, i32) {
    %c0_i32 = arith.constant 0 : i32
    %c0_i32_0 = arith.constant 0 : i32
    %c0_i32_1 = arith.constant 0 : i32
    return %arg0, %arg1, %c0_i32, %c0_i32_0 : i32, i32, i32, i32
  }
  func.func @transform_8(%arg0: i32, %arg1: i32) -> (i32, i32, i32, i32) {
    %c0_i32 = arith.constant 0 : i32
    %c0_i32_0 = arith.constant 0 : i32
    %c0_i32_1 = arith.constant 0 : i32
    return %arg0, %arg1, %c0_i32, %c0_i32_0 : i32, i32, i32, i32
  }
}

</mosaic_0001>

<llo_original>
// kernel: down_forward.5
$region0: #{down_forward.5}
  #allocation0 [shape = 'u32[]', space=smem, size = 0x4, offset = 0x4, fixed_abs, tag = 'smem constant byte address 0x4 - core index']
  #allocation1 [shape = 'u32[144,128]{1,0:T(1,128)}', space=vmem, size = 0x12000, scoped, tag = 'internal scratch']
  %s0 = inlined_call_operand.vmem [shape: bf16[2,8,8,128], index: 0, kind: input, shape index: {}]
  %s1 = inlined_call_operand.vmem [shape: f32[1,128], index: 1, kind: input, shape index: {}]
  %s2 = inlined_call_operand.vmem [shape: f32[1,128], index: 2, kind: input, shape index: {}]
  %s3 = inlined_call_operand.hbm [shape: f32[2,8,8,8], index: 3, kind: output, shape index: {}]
  %s4 = sld [smem:[#allocation0]]
  $region45: #{down_forward.5} parent=0
    _
  %s6 = ssub.s32 1, %s4
  %s7 = scalar_select 0, %s6, %s4
  $region1: #{down_forward.5} parent=0
    #allocation2 [shape = 'u8[65536]{0}', space=vmem, size = 0x10000, scoped, tag = 'output window, operand 0']
    #allocation3 [shape = 's32[2]{0}', space=sflag, size = 0x8, scoped, tag = 'scoped memory for down_forward.5']
    %8 = vsyncpa [#allocation3], 0
    %s9 = scalar_lea.sflag [#allocation3], 1
    %10 = vsyncpa %s9, 0
    loop: start=0, step=1, limit=4
    $region2: #{down_forward.5} parent=1 // loop_pre_header
      _
    $region3: #{down_forward.5} parent=1 // loop_header
      %s12 = sphi 0, %s16
      %p13 = scmp.ge.s32.totalorder %s12, 4
      %s19 = sphi 0, %s31
      %s20 = sphi 0, %s27
      %s21 = sphi 0, %s19
      %s22 = sphi 0, %s20
      %s23 = sphi 0, %s21
      %s24 = sphi 0, %s22
      %s36 = sphi 0, %s38
      %s39 = sphi 0, %s36
      %s40 = sphi 0, %s39
      %s56 = sphi 0, %s40
      %s60 = sphi 0, %s60
      %s62 = sphi 0, %s60
      %s63 = sphi 0, %s62
      %s77 = sphi 0, %s63
      %s81 = sphi 0, %s81
      %s83 = sphi 0, %s81
      %s84 = sphi 0, %s83
      %s98 = sphi 0, %s84
      %s106 = sphi 0, %s108
      %s109 = sphi 0, %s106
      %s110 = sphi 0, %s109
      %s126 = sphi 0, %s110
    $region4: #{down_forward.5} parent=1 // loop_header_branch
      %15 = sbr.rel (%p13) target = $region8
    $region5: #{down_forward.5} parent=1 // loop_body
      %s17 = ssub.s32 %s12, 1
      %s18 = ssub.s32 %s12, 2
      %s25 = sadd.s32 1, %s20
      %p26 = scmp.ge.s32.totalorder %s25, 1
      %s27 = scalar_select %p26, 0, %s25
      %s28 = sadd.s32 1, %s19
      %s29 = scalar_select %p26, %s28, %s19
      %p30 = scmp.ge.s32.totalorder %s29, 2
      %s31 = scalar_select %p30, 0, %s29
      %s32 = ssub.s32 %s19, %s31
      %s33 = ssub.s32 %s20, %s27
      %s34 = sor.u32 %s32, %s33
      %p35 = scmp.eq.s32.totalorder %s34, 0
      %s37 = sadd.s32 %s36, 1
      %s38 = scalar_select %p35, %s36, %s37
      %p41 = pneg %p35
      %p42 = scmp.eq.s32.totalorder %s12, 1
      %p43 = por %p41, %p42
      %p44 = scmp.ne.s32.totalorder %s36, %s39
      %p45 = scmp.eq.s32.totalorder %s12, 0
      %p46 = por %p44, %p45
      %p47 = scmp.ne.s32.totalorder %s36, %s39
      %p48 = scmp.eq.s32.totalorder %s17, 1
      %p49 = por %p47, %p48
      %p50 = scmp.ne.s32.totalorder %s39, %s40
      %p51 = scmp.eq.s32.totalorder %s17, 0
      %p52 = por %p50, %p51
      %p53 = scmp.ne.s32.totalorder %s39, %s40
      %p54 = scmp.eq.s32.totalorder %s18, 1
      %p55 = por %p53, %p54
      %p57 = scmp.ne.s32.totalorder %s40, %s56
      %p58 = scmp.eq.s32.totalorder %s18, 0
      %p59 = por %p57, %p58
      %s61 = sadd.s32 %s60, 1
      %p64 = scmp.eq.s32.totalorder %s12, 1
      %p65 = scmp.ne.s32.totalorder %s60, %s62
      %p66 = scmp.eq.s32.totalorder %s12, 0
      %p67 = por %p65, %p66
      %p68 = scmp.ne.s32.totalorder %s60, %s62
      %p69 = scmp.eq.s32.totalorder %s17, 1
      %p70 = por %p68, %p69
      %p71 = scmp.ne.s32.totalorder %s62, %s63
      %p72 = scmp.eq.s32.totalorder %s17, 0
      %p73 = por %p71, %p72
      %p74 = scmp.ne.s32.totalorder %s62, %s63
      %p75 = scmp.eq.s32.totalorder %s18, 1
      %p76 = por %p74, %p75
      %p78 = scmp.ne.s32.totalorder %s63, %s77
      %p79 = scmp.eq.s32.totalorder %s18, 0
      %p80 = por %p78, %p79
      %s82 = sadd.s32 %s81, 1
      %p85 = scmp.eq.s32.totalorder %s12, 1
      %p86 = scmp.ne.s32.totalorder %s81, %s83
      %p87 = scmp.eq.s32.totalorder %s12, 0
      %p88 = por %p86, %p87
      %p89 = scmp.ne.s32.totalorder %s81, %s83
      %p90 = scmp.eq.s32.totalorder %s17, 1
      %p91 = por %p89, %p90
      %p92 = scmp.ne.s32.totalorder %s83, %s84
      %p93 = scmp.eq.s32.totalorder %s17, 0
      %p94 = por %p92, %p93
      %p95 = scmp.ne.s32.totalorder %s83, %s84
      %p96 = scmp.eq.s32.totalorder %s18, 1
      %p97 = por %p95, %p96
      %p99 = scmp.ne.s32.totalorder %s84, %s98
      %p100 = scmp.eq.s32.totalorder %s18, 0
      %p101 = por %p99, %p100
      %s102 = ssub.s32 %s19, %s31
      %s103 = ssub.s32 %s20, %s27
      %s104 = sor.u32 %s102, %s103
      %p105 = scmp.eq.s32.totalorder %s104, 0
      %s107 = sadd.s32 %s106, 1
      %s108 = scalar_select %p105, %s106, %s107
      %p111 = pneg %p105
      %p112 = scmp.eq.s32.totalorder %s12, 1
      %p113 = por %p111, %p112
      %p114 = scmp.ne.s32.totalorder %s106, %s109
      %p115 = scmp.eq.s32.totalorder %s12, 0
      %p116 = por %p114, %p115
      %p117 = scmp.ne.s32.totalorder %s106, %s109
      %p118 = scmp.eq.s32.totalorder %s17, 1
      %p119 = por %p117, %p118
      %p120 = scmp.ne.s32.totalorder %s109, %s110
      %p121 = scmp.eq.s32.totalorder %s17, 0
      %p122 = por %p120, %p121
      %p123 = scmp.ne.s32.totalorder %s109, %s110
      %p124 = scmp.eq.s32.totalorder %s18, 1
      %p125 = por %p123, %p124
      %p127 = scmp.ne.s32.totalorder %s110, %s126
      %p128 = scmp.eq.s32.totalorder %s18, 0
      %p129 = por %p127, %p128
      %p130 = scmp.le.s32.totalorder 1, %s12
      %p131 = scmp.lt.s32.totalorder %s12, 3
      %p132 = pnand %p130, %p131
      %p133 = pneg %p132
      // Predicated region
      $region9: #{down_forward.5} parent=5 // pred_check
        _
      $region10: #{down_forward.5} parent=5 // pred_check_branch
        %135 = sbr.rel (%p132) target = $region12
      $region11: #{down_forward.5} parent=5 // pred_region
        %s136 = ssub.s32 %s12, 1
        // Predicated region
        $region13: #{down_forward.5} parent=11 // pred_check
          %p137 = pneg %p73
        $region14: #{down_forward.5} parent=11 // pred_check_branch
          %139 = sbr.rel (%p137) target = $region16
        $region15: #{down_forward.5} parent=11 // pred_region
          _
        $region16: #{down_forward.5} parent=11 // pred_fallthru
          _
        // Predicated region
        $region17: #{down_forward.5} parent=11 // pred_check
          %p140 = pneg %p94
        $region18: #{down_forward.5} parent=11 // pred_check_branch
          %142 = sbr.rel (%p140) target = $region20
        $region19: #{down_forward.5} parent=11 // pred_region
          _
        $region20: #{down_forward.5} parent=11 // pred_fallthru
          _
      $region12: #{down_forward.5} parent=5 // pred_fallthru
        _
      %p143 = scmp.lt.s32.totalorder %s12, 2
      // Predicated region
      $region21: #{down_forward.5} parent=5 // pred_check
        %p144 = pneg %p143
      $region22: #{down_forward.5} parent=5 // pred_check_branch
        %146 = sbr.rel (%p144) target = $region24
      $region23: #{down_forward.5} parent=5 // pred_region
        // Predicated region
        $region25: #{down_forward.5} parent=23 // pred_check
          %p147 = pneg %p46
        $region26: #{down_forward.5} parent=23 // pred_check_branch
          %149 = sbr.rel (%p147) target = $region28
        $region27: #{down_forward.5} parent=23 // pred_region
          %s150 = smul.u32 8, %s20
          %p151 = scmp.lt.s32.totalorder %s19, 1
          %s152 = scalar_select %p151, %s19, 1
          %p153 = scmp.lt.s32.totalorder %s150, 7
          %s154 = scalar_select %p153, %s150, 7
          %s155 = smul.addr %s152, 8
          %s156 = sadd.s32 %s154, %s155
          %s157 = smul.addr %s156, 4
          %s158 = scalar_lea.vmem %s0, %s157
          %s159 = smul.u32 8, %s20
        $region28: #{down_forward.5} parent=23 // pred_fallthru
          _
      $region24: #{down_forward.5} parent=5 // pred_fallthru
        _
      %p160 = scmp.le.s32.totalorder 1, %s12
      %p161 = scmp.lt.s32.totalorder %s12, 3
      %p162 = pnand %p160, %p161
      %p163 = pneg %p162
      // Predicated region
      $region29: #{down_forward.5} parent=5 // pred_check
        _
      $region30: #{down_forward.5} parent=5 // pred_check_branch
        %165 = sbr.rel (%p162) target = $region32
      $region31: #{down_forward.5} parent=5 // pred_region
        %s166 = ssub.s32 %s12, 1
        %s167 = smul.u32 8, %s22
        %p168 = scmp.lt.s32.totalorder %s21, 1
        %s169 = scalar_select %p168, %s21, 1
        %p170 = scmp.lt.s32.totalorder %s167, 7
        %s171 = scalar_select %p170, %s167, 7
        %s172 = smul.addr %s169, 8
        %s173 = sadd.s32 %s171, %s172
        %s174 = smul.addr %s173, 4
        %s175 = scalar_lea.vmem %s0, %s174
        %p176 = pneg %p52
        %p177 = pneg %p49
        %p178 = pneg %p73
        %p179 = pneg %p70
        %p180 = pneg %p94
        %p181 = pneg %p91
        %p182 = pneg %p122
        %p183 = pneg %p119
        %s184 = sand.u32 %s109, 1
        %s185 = scalar_lea.sflag [#allocation3], %s184
        %s186 = sand.u32 %s109, 1
        %s187 = smul.addr %s186, 64
        %s188 = scalar_lea.vmem [#allocation2], %s187
        %s189 = smul.u32 8, %s22
        %p190 = scmp.lt.s32.totalorder %s21, 1
        %s191 = scalar_select %p190, %s21, 1
        %p192 = scmp.lt.s32.totalorder %s189, 7
        %s193 = scalar_select %p192, %s189, 7
        %s194 = smul.addr %s191, 8
        %s195 = sadd.s32 %s193, %s194
        %s196 = smul.addr %s195, 4
        %s197 = scalar_lea.vmem %s0, %s196
        %s198 = smul.u32 8, %s22
        %v199 = vld [vmem:[%s197] sm:$0xf]
        %v200 = vld [vmem:[%s197 + $0x4] sm:$0xf]
        %v201 = vld [vmem:[%s197 + $0x8] sm:$0xf]
        %v202 = vld [vmem:[%s197 + $0xc] sm:$0xf]
        %v203 = vld [vmem:[%s197 + $0x10] sm:$0xf]
        %v204 = vld [vmem:[%s197 + $0x14] sm:$0xf]
        %v205 = vld [vmem:[%s197 + $0x18] sm:$0xf]
        %v206 = vld [vmem:[%s197 + $0x1c] sm:$0xf]
        %v207 = vunpack.c.l.bf16 %v199
        %v208 = vunpack.c.l.bf16 %v200
        %v209 = vunpack.c.l.bf16 %v201
        %v210 = vunpack.c.l.bf16 %v202
        %v211 = vunpack.c.l.bf16 %v203
        %v212 = vunpack.c.l.bf16 %v204
        %v213 = vunpack.c.l.bf16 %v205
        %v214 = vunpack.c.l.bf16 %v206
        %v215 = vld [vmem:[%s1] sm:$0x1]
        %v217 = vlaneseq
        %v218 = vshrl.u32 %v217, 7
        %v219 = vsub.s32 0, %v218
        %v220 = vrot.slane %v215, %v219
        %v222 = vmul.f32 %v207, %v220
        %v223 = vmul.f32 %v208, %v220
        %v224 = vmul.f32 %v209, %v220
        %v225 = vmul.f32 %v210, %v220
        %v226 = vmul.f32 %v211, %v220
        %v227 = vmul.f32 %v212, %v220
        %v228 = vmul.f32 %v213, %v220
        %v229 = vmul.f32 %v214, %v220
        %v230 = vld [vmem:[%s2] sm:$0x1]
        %v232 = vlaneseq
        %v233 = vshrl.u32 %v232, 7
        %v234 = vsub.s32 0, %v233
        %v235 = vrot.slane %v230, %v234
        %v237 = vadd.f32 %v222, %v235
        %v238 = vadd.f32 %v223, %v235
        %v239 = vadd.f32 %v224, %v235
        %v240 = vadd.f32 %v225, %v235
        %v241 = vadd.f32 %v226, %v235
        %v242 = vadd.f32 %v227, %v235
        %v243 = vadd.f32 %v228, %v235
        %v244 = vadd.f32 %v229, %v235
        %v245 = vmax.f32 %v237, 0.0
        %v246 = vmax.f32 %v238, 0.0
        %v247 = vmax.f32 %v239, 0.0
        %v248 = vmax.f32 %v240, 0.0
        %v249 = vmax.f32 %v241, 0.0
        %v250 = vmax.f32 %v242, 0.0
        %v251 = vmax.f32 %v243, 0.0
        %v252 = vmax.f32 %v244, 0.0
        %253 = vxpose.xlu0.b32.start [1/16] %v245, 128
        %254 = vxpose.xlu0.b32.cont [2/16] %v246, 128
        %255 = vxpose.xlu0.b32.cont [3/16] %v247, 128
        %256 = vxpose.xlu0.b32.cont [4/16] %v248, 128
        %257 = vxpose.xlu0.b32.cont [5/16] %v249, 128
        %258 = vxpose.xlu0.b32.cont [6/16] %v250, 128
        %259 = vxpose.xlu0.b32.cont [7/16] %v251, 128
        %260 = vxpose.xlu0.b32.cont [8/16] %v252, 128
        %261 = vxpose.xlu0.b32.cont [9/16] 0.0, 128
        %262 = vxpose.xlu0.b32.cont [10/16] 0.0, 128
        %263 = vxpose.xlu0.b32.cont [11/16] 0.0, 128
        %264 = vxpose.xlu0.b32.cont [12/16] 0.0, 128
        %265 = vxpose.xlu0.b32.cont [13/16] 0.0, 128
        %266 = vxpose.xlu0.b32.cont [14/16] 0.0, 128
        %267 = vxpose.xlu0.b32.cont [15/16] 0.0, 128
        %268 = vxpose.xlu0.b32.end [16/16] 0.0, 128
        %v269 = vpop.trf.xlu0
        %v270 = vpop.trf.xlu0
        %v271 = vpop.trf.xlu0
        %v272 = vpop.trf.xlu0
        %v273 = vpop.trf.xlu0
        %v274 = vpop.trf.xlu0
        %v275 = vpop.trf.xlu0
        %v276 = vpop.trf.xlu0
        %v277 = vpop.trf.xlu0
        %v278 = vpop.trf.xlu0
        %v279 = vpop.trf.xlu0
        %v280 = vpop.trf.xlu0
        %v281 = vpop.trf.xlu0
        %v282 = vpop.trf.xlu0
        %v283 = vpop.trf.xlu0
        %v284 = vpop.trf.xlu0
        %286 = vrot.lane.b32.xlu0 %v269, 120
        %v287 = vpop.permute.xlu0 %286
        %289 = vrot.lane.b32.xlu0 %v269, 112
        %v290 = vpop.permute.xlu0 %289
        %292 = vrot.lane.b32.xlu0 %v269, 104
        %v293 = vpop.permute.xlu0 %292
        %295 = vrot.lane.b32.xlu0 %v269, 96
        %v296 = vpop.permute.xlu0 %295
        %298 = vrot.lane.b32.xlu0 %v269, 88
        %v299 = vpop.permute.xlu0 %298
        %301 = vrot.lane.b32.xlu0 %v269, 80
        %v302 = vpop.permute.xlu0 %301
        %304 = vrot.lane.b32.xlu0 %v269, 72
        %v305 = vpop.permute.xlu0 %304
        %v307 = vcombine.low %v269, %v290
        %v308 = vcombine.high %v269, %v290
        %v310 = vunpack.c.l.s4 1983009808
        %v311 = vunpack.c.0.s8 %v310
        %v312 = vlaneseq
        %v313 = vshrl.u32 %v312, 7
        %v314 = vsub.s32 %v311, %v313
        %v315 = vrot.slane %v307, %v314
        %v317 = vunpack.c.l.s4 1983009808
        %v318 = vunpack.c.0.s8 %v317
        %v319 = vlaneseq
        %v320 = vshrl.u32 %v319, 7
        %v321 = vsub.s32 %v318, %v320
        %v322 = vrot.slane %v308, %v321
        %v323 = vcombine.low %v287, %v293
        %v324 = vcombine.high %v287, %v293
        %v326 = vunpack.c.l.s4 1983009808
        %v327 = vunpack.c.0.s8 %v326
        %v328 = vlaneseq
        %v329 = vshrl.u32 %v328, 7
        %v330 = vsub.s32 %v327, %v329
        %v331 = vrot.slane %v323, %v330
        %v333 = vunpack.c.l.s4 1983009808
        %v334 = vunpack.c.0.s8 %v333
        %v335 = vlaneseq
        %v336 = vshrl.u32 %v335, 7
        %v337 = vsub.s32 %v334, %v336
        %v338 = vrot.slane %v324, %v337
        %v339 = vcombine.low %v296, %v302
        %v340 = vcombine.high %v296, %v302
        %v342 = vunpack.c.l.s4 1983009808
        %v343 = vunpack.c.0.s8 %v342
        %v344 = vlaneseq
        %v345 = vshrl.u32 %v344, 7
        %v346 = vsub.s32 %v343, %v345
        %v347 = vrot.slane %v339, %v346
        %v349 = vunpack.c.l.s4 1983009808
        %v350 = vunpack.c.0.s8 %v349
        %v351 = vlaneseq
        %v352 = vshrl.u32 %v351, 7
        %v353 = vsub.s32 %v350, %v352
        %v354 = vrot.slane %v340, %v353
        %v355 = vcombine.low %v299, %v305
        %v356 = vcombine.high %v299, %v305
        %v358 = vunpack.c.l.s4 1983009808
        %v359 = vunpack.c.0.s8 %v358
        %v360 = vlaneseq
        %v361 = vshrl.u32 %v360, 7
        %v362 = vsub.s32 %v359, %v361
        %v363 = vrot.slane %v355, %v362
        %v365 = vunpack.c.l.s4 1983009808
        %v366 = vunpack.c.0.s8 %v365
        %v367 = vlaneseq
        %v368 = vshrl.u32 %v367, 7
        %v369 = vsub.s32 %v366, %v368
        %v370 = vrot.slane %v356, %v369
        %v371 = vcombine.low %v315, %v331
        %v372 = vcombine.high %v315, %v331
        %v374 = vunpack.c.l.s4 1934713408
        %v375 = vunpack.c.0.s8 %v374
        %v376 = vlaneseq
        %v377 = vshrl.u32 %v376, 7
        %v378 = vsub.s32 %v375, %v377
        %v379 = vrot.slane %v371, %v378
        %v381 = vunpack.c.l.s4 1934713408
        %v382 = vunpack.c.0.s8 %v381
        %v383 = vlaneseq
        %v384 = vshrl.u32 %v383, 7
        %v385 = vsub.s32 %v382, %v384
        %v386 = vrot.slane %v372, %v385
        %v387 = vcombine.low %v322, %v338
        %v388 = vcombine.high %v322, %v338
        %v390 = vunpack.c.l.s4 1934713408
        %v391 = vunpack.c.0.s8 %v390
        %v392 = vlaneseq
        %v393 = vshrl.u32 %v392, 7
        %v394 = vsub.s32 %v391, %v393
        %v395 = vrot.slane %v387, %v394
        %v397 = vunpack.c.l.s4 1934713408
        %v398 = vunpack.c.0.s8 %v397
        %v399 = vlaneseq
        %v400 = vshrl.u32 %v399, 7
        %v401 = vsub.s32 %v398, %v400
        %v402 = vrot.slane %v388, %v401
        %v403 = vcombine.low %v347, %v363
        %v404 = vcombine.high %v347, %v363
        %v406 = vunpack.c.l.s4 1934713408
        %v407 = vunpack.c.0.s8 %v406
        %v408 = vlaneseq
        %v409 = vshrl.u32 %v408, 7
        %v410 = vsub.s32 %v407, %v409
        %v411 = vrot.slane %v403, %v410
        %v413 = vunpack.c.l.s4 1934713408
        %v414 = vunpack.c.0.s8 %v413
        %v415 = vlaneseq
        %v416 = vshrl.u32 %v415, 7
        %v417 = vsub.s32 %v414, %v416
        %v418 = vrot.slane %v404, %v417
        %v419 = vcombine.low %v354, %v370
        %v420 = vcombine.high %v354, %v370
        %v422 = vunpack.c.l.s4 1934713408
        %v423 = vunpack.c.0.s8 %v422
        %v424 = vlaneseq
        %v425 = vshrl.u32 %v424, 7
        %v426 = vsub.s32 %v423, %v425
        %v427 = vrot.slane %v419, %v426
        %v429 = vunpack.c.l.s4 1934713408
        %v430 = vunpack.c.0.s8 %v429
        %v431 = vlaneseq
        %v432 = vshrl.u32 %v431, 7
        %v433 = vsub.s32 %v430, %v432
        %v434 = vrot.slane %v420, %v433
        %v435 = vcombine.low %v379, %v411
        %v436 = vcombine.high %v379, %v411
        %v437 = vcombine.low %v386, %v418
        %v438 = vcombine.high %v386, %v418
        %v439 = vcombine.low %v395, %v427
        %v440 = vcombine.high %v395, %v427
        %v441 = vcombine.low %v402, %v434
        %v442 = vcombine.high %v402, %v434
        %vm443 = vcmask 64512
        %444 = vst.msk [vmem:[%s188] sm:$0xff] %vm443, %v435
        %445 = vst.msk [vmem:[%s188 + $0x8] sm:$0xff] %vm443, %v436
        %446 = vst.msk [vmem:[%s188 + $0x10] sm:$0xff] %vm443, %v437
        %447 = vst.msk [vmem:[%s188 + $0x18] sm:$0xff] %vm443, %v438
        %448 = vst.msk [vmem:[%s188 + $0x20] sm:$0xff] %vm443, %v439
        %449 = vst.msk [vmem:[%s188 + $0x28] sm:$0xff] %vm443, %v440
        %450 = vst.msk [vmem:[%s188 + $0x30] sm:$0xff] %vm443, %v441
        %451 = vst.msk [vmem:[%s188 + $0x38] sm:$0xff] %vm443, %v442
        %s452 = sand.u32 %s109, 1
        %s453 = scalar_lea.sflag [#allocation3], %s452
        %s454 = sand.u32 %s109, 1
        %s455 = smul.addr %s454, 64
        %s456 = scalar_lea.vmem [#allocation2], %s455
        // Predicated region
        $region33: #{down_forward.5} parent=31 // pred_check
          %p457 = pneg %p119
        $region34: #{down_forward.5} parent=31 // pred_check_branch
          %459 = sbr.rel (%p457) target = $region36
        $region35: #{down_forward.5} parent=31 // pred_region
          %s461 = ssub.s32 1024, 1024
          %462 = vsyncadd %s453, %s461
          %s463 = smul.addr %s21, 8
          %s464 = sadd.s32 %s22, %s463
          %s465 = smul.addr %s464, 128
          %s466 = scalar_lea.hbm %s3, %s465
          %s467 = sshll.u32 %s456, 4
          %s468 = int_to_ptr.vmem [resolvable:$true] %s467
          %473 = dma.vmem_to_hbm [thread:$0]  %s468, 1024, %s466, %s453, 128, 128, 8
        $region36: #{down_forward.5} parent=31 // pred_fallthru
          _
      $region32: #{down_forward.5} parent=5 // pred_fallthru
        _
      %p474 = scmp.le.s32.totalorder 2, %s12
      // Predicated region
      $region37: #{down_forward.5} parent=5 // pred_check
        %p475 = pneg %p474
      $region38: #{down_forward.5} parent=5 // pred_check_branch
        %477 = sbr.rel (%p475) target = $region40
      $region39: #{down_forward.5} parent=5 // pred_region
        %s478 = ssub.s32 %s12, 2
        // Predicated region
        $region41: #{down_forward.5} parent=39 // pred_check
          %p479 = pneg %p125
        $region42: #{down_forward.5} parent=39 // pred_check_branch
          %481 = sbr.rel (%p479) target = $region44
        $region43: #{down_forward.5} parent=39 // pred_region
          %s482 = sand.u32 %s110, 1
          %s483 = scalar_lea.sflag [#allocation3], %s482
          %s484 = sand.u32 %s110, 1
          %s485 = smul.addr %s484, 64
          %s486 = scalar_lea.vmem [#allocation2], %s485
          %487 = dma.done %s483, 1024
        $region44: #{down_forward.5} parent=39 // pred_fallthru
          _
      $region40: #{down_forward.5} parent=5 // pred_fallthru
        _
    $region6: #{down_forward.5} parent=1 // loop_footer
      %s16 = sadd.s32 1, %s12
    $region7: #{down_forward.5} parent=1 // loop_footer_branch
      %11 = sbr.rel target = $region3
    $region8: #{down_forward.5} parent=1 // loop_exit
      _
    %488 = vsyncpa [#allocation3], 1
    %s489 = scalar_lea.sflag [#allocation3], 1
    %490 = vsyncpa %s489, 1

// kernel: down_forward.3
$region0: #{down_forward.3}
  #allocation0 [shape = 'u32[]', space=smem, size = 0x4, offset = 0x4, fixed_abs, tag = 'smem constant byte address 0x4 - core index']
  #allocation1 [shape = 'u32[144,128]{1,0:T(1,128)}', space=vmem, size = 0x12000, scoped, tag = 'internal scratch']
  #allocation2 [shape = 'bf16[6,10,4]{2,1,0:T(8,128)(2,1)}', space=vmem, size = 0x6000, scoped, tag = 'scratch operand']
  %s0 = inlined_call_operand.vmem [shape: bf16[2,8,2,8,8], index: 0, kind: input, shape index: {}, may-alias: {0,1,2}]
  %s1 = inlined_call_operand.vmem [shape: bf16[2,8,2,8,8], index: 1, kind: input, shape index: {}, may-alias: {0,1,2}]
  %s2 = inlined_call_operand.vmem [shape: bf16[2,8,2,8,8], index: 2, kind: input, shape index: {}, may-alias: {0,1,2}]
  %s3 = inlined_call_operand.vmem [shape: bf16[9,4,128], index: 3, kind: input, shape index: {}]
  %s4 = inlined_call_operand.vmem [shape: bf16[2,8,8,128], index: 4, kind: output, shape index: {0}]
  %s5 = inlined_call_operand.vmem [shape: f32[2,2,1,128], index: 5, kind: output, shape index: {1}]
  %s6 = inlined_call_operand.vmem [shape: f32[2,2,1,128], index: 6, kind: output, shape index: {2}]
  %7 = xla_tuple %s4, %s5, %s6
  %s8 = sld [smem:[#allocation0]]
  $region65: #{down_forward.3} parent=0
    _
  %s10 = ssub.s32 1, %s8
  %s11 = scalar_select 0, %s10, %s8
  loop: start=0, step=1, limit=6
  $region2: #{down_forward.3} parent=0 // loop_pre_header
    _
  $region3: #{down_forward.3} parent=0 // loop_header
    %s13 = sphi 0, %s17
    %p14 = scmp.ge.s32.totalorder %s13, 6
    %s20 = sphi 0, %s32
    %s21 = sphi 0, %s28
    %s22 = sphi 0, %s20
    %s23 = sphi 0, %s21
    %s24 = sphi 0, %s22
    %s25 = sphi 0, %s23
    %s37 = sphi 0, %s39
    %s40 = sphi 0, %s37
    %s41 = sphi 0, %s40
    %s57 = sphi 0, %s41
    %s73 = sphi 0, %s75
    %s76 = sphi 0, %s73
    %s77 = sphi 0, %s76
    %s93 = sphi 0, %s77
    %s109 = sphi 0, %s111
    %s112 = sphi 0, %s109
    %s113 = sphi 0, %s112
    %s129 = sphi 0, %s113
    %s133 = sphi 0, %s133
    %s135 = sphi 0, %s133
    %s136 = sphi 0, %s135
    %s150 = sphi 0, %s136
    %s158 = sphi 0, %s160
    %s161 = sphi 0, %s158
    %s162 = sphi 0, %s161
    %s178 = sphi 0, %s162
    %s186 = sphi 0, %s188
    %s189 = sphi 0, %s186
    %s190 = sphi 0, %s189
    %s206 = sphi 0, %s190
    %s214 = sphi 0, %s216
    %s217 = sphi 0, %s214
    %s218 = sphi 0, %s217
    %s234 = sphi 0, %s218
  $region4: #{down_forward.3} parent=0 // loop_header_branch
    %16 = sbr.rel (%p14) target = $region8
  $region5: #{down_forward.3} parent=0 // loop_body
    %s18 = ssub.s32 %s13, 1
    %s19 = ssub.s32 %s13, 2
    %s26 = sadd.s32 1, %s21
    %p27 = scmp.ge.s32.totalorder %s26, 2
    %s28 = scalar_select %p27, 0, %s26
    %s29 = sadd.s32 1, %s20
    %s30 = scalar_select %p27, %s29, %s20
    %p31 = scmp.ge.s32.totalorder %s30, 2
    %s32 = scalar_select %p31, 0, %s30
    %s33 = ssub.s32 %s20, %s32
    %s34 = ssub.s32 %s21, %s28
    %s35 = sor.u32 %s33, %s34
    %p36 = scmp.eq.s32.totalorder %s35, 0
    %s38 = sadd.s32 %s37, 1
    %s39 = scalar_select %p36, %s37, %s38
    %p42 = pneg %p36
    %p43 = scmp.eq.s32.totalorder %s13, 3
    %p44 = por %p42, %p43
    %p45 = scmp.ne.s32.totalorder %s37, %s40
    %p46 = scmp.eq.s32.totalorder %s13, 0
    %p47 = por %p45, %p46
    %p48 = scmp.ne.s32.totalorder %s37, %s40
    %p49 = scmp.eq.s32.totalorder %s18, 3
    %p50 = por %p48, %p49
    %p51 = scmp.ne.s32.totalorder %s40, %s41
    %p52 = scmp.eq.s32.totalorder %s18, 0
    %p53 = por %p51, %p52
    %p54 = scmp.ne.s32.totalorder %s40, %s41
    %p55 = scmp.eq.s32.totalorder %s19, 3
    %p56 = por %p54, %p55
    %p58 = scmp.ne.s32.totalorder %s41, %s57
    %p59 = scmp.eq.s32.totalorder %s19, 0
    %p60 = por %p58, %p59
    %s61 = smul.u32 %s21, 4
    %s62 = ssub.s32 %s61, 1
    %p63 = scmp.gt.s32.totalorder %s62, 0
    %s64 = scalar_select %p63, %s62, 0
    %s65 = smul.u32 %s28, 4
    %s66 = ssub.s32 %s65, 1
    %p67 = scmp.gt.s32.totalorder %s66, 0
    %s68 = scalar_select %p67, %s66, 0
    %s69 = ssub.s32 %s20, %s32
    %s70 = ssub.s32 %s64, %s68
    %s71 = sor.u32 %s69, %s70
    %p72 = scmp.eq.s32.totalorder %s71, 0
    %s74 = sadd.s32 %s73, 1
    %s75 = scalar_select %p72, %s73, %s74
    %p78 = pneg %p72
    %p79 = scmp.eq.s32.totalorder %s13, 3
    %p80 = por %p78, %p79
    %p81 = scmp.ne.s32.totalorder %s73, %s76
    %p82 = scmp.eq.s32.totalorder %s13, 0
    %p83 = por %p81, %p82
    %p84 = scmp.ne.s32.totalorder %s73, %s76
    %p85 = scmp.eq.s32.totalorder %s18, 3
    %p86 = por %p84, %p85
    %p87 = scmp.ne.s32.totalorder %s76, %s77
    %p88 = scmp.eq.s32.totalorder %s18, 0
    %p89 = por %p87, %p88
    %p90 = scmp.ne.s32.totalorder %s76, %s77
    %p91 = scmp.eq.s32.totalorder %s19, 3
    %p92 = por %p90, %p91
    %p94 = scmp.ne.s32.totalorder %s77, %s93
    %p95 = scmp.eq.s32.totalorder %s19, 0
    %p96 = por %p94, %p95
    %s97 = smul.u32 %s21, 4
    %s98 = sadd.s32 %s97, 4
    %p99 = scmp.lt.s32.totalorder %s98, 7
    %s100 = scalar_select %p99, %s98, 7
    %s101 = smul.u32 %s28, 4
    %s102 = sadd.s32 %s101, 4
    %p103 = scmp.lt.s32.totalorder %s102, 7
    %s104 = scalar_select %p103, %s102, 7
    %s105 = ssub.s32 %s20, %s32
    %s106 = ssub.s32 %s100, %s104
    %s107 = sor.u32 %s105, %s106
    %p108 = scmp.eq.s32.totalorder %s107, 0
    %s110 = sadd.s32 %s109, 1
    %s111 = scalar_select %p108, %s109, %s110
    %p114 = pneg %p108
    %p115 = scmp.eq.s32.totalorder %s13, 3
    %p116 = por %p114, %p115
    %p117 = scmp.ne.s32.totalorder %s109, %s112
    %p118 = scmp.eq.s32.totalorder %s13, 0
    %p119 = por %p117, %p118
    %p120 = scmp.ne.s32.totalorder %s109, %s112
    %p121 = scmp.eq.s32.totalorder %s18, 3
    %p122 = por %p120, %p121
    %p123 = scmp.ne.s32.totalorder %s112, %s113
    %p124 = scmp.eq.s32.totalorder %s18, 0
    %p125 = por %p123, %p124
    %p126 = scmp.ne.s32.totalorder %s112, %s113
    %p127 = scmp.eq.s32.totalorder %s19, 3
    %p128 = por %p126, %p127
    %p130 = scmp.ne.s32.totalorder %s113, %s129
    %p131 = scmp.eq.s32.totalorder %s19, 0
    %p132 = por %p130, %p131
    %s134 = sadd.s32 %s133, 1
    %p137 = scmp.eq.s32.totalorder %s13, 3
    %p138 = scmp.ne.s32.totalorder %s133, %s135
    %p139 = scmp.eq.s32.totalorder %s13, 0
    %p140 = por %p138, %p139
    %p141 = scmp.ne.s32.totalorder %s133, %s135
    %p142 = scmp.eq.s32.totalorder %s18, 3
    %p143 = por %p141, %p142
    %p144 = scmp.ne.s32.totalorder %s135, %s136
    %p145 = scmp.eq.s32.totalorder %s18, 0
    %p146 = por %p144, %p145
    %p147 = scmp.ne.s32.totalorder %s135, %s136
    %p148 = scmp.eq.s32.totalorder %s19, 3
    %p149 = por %p147, %p148
    %p151 = scmp.ne.s32.totalorder %s136, %s150
    %p152 = scmp.eq.s32.totalorder %s19, 0
    %p153 = por %p151, %p152
    %s154 = ssub.s32 %s20, %s32
    %s155 = ssub.s32 %s21, %s28
    %s156 = sor.u32 %s154, %s155
    %p157 = scmp.eq.s32.totalorder %s156, 0
    %s159 = sadd.s32 %s158, 1
    %s160 = scalar_select %p157, %s158, %s159
    %p163 = pneg %p157
    %p164 = scmp.eq.s32.totalorder %s13, 3
    %p165 = por %p163, %p164
    %p166 = scmp.ne.s32.totalorder %s158, %s161
    %p167 = scmp.eq.s32.totalorder %s13, 0
    %p168 = por %p166, %p167
    %p169 = scmp.ne.s32.totalorder %s158, %s161
    %p170 = scmp.eq.s32.totalorder %s18, 3
    %p171 = por %p169, %p170
    %p172 = scmp.ne.s32.totalorder %s161, %s162
    %p173 = scmp.eq.s32.totalorder %s18, 0
    %p174 = por %p172, %p173
    %p175 = scmp.ne.s32.totalorder %s161, %s162
    %p176 = scmp.eq.s32.totalorder %s19, 3
    %p177 = por %p175, %p176
    %p179 = scmp.ne.s32.totalorder %s162, %s178
    %p180 = scmp.eq.s32.totalorder %s19, 0
    %p181 = por %p179, %p180
    %s182 = ssub.s32 %s20, %s32
    %s183 = ssub.s32 %s21, %s28
    %s184 = sor.u32 %s182, %s183
    %p185 = scmp.eq.s32.totalorder %s184, 0
    %s187 = sadd.s32 %s186, 1
    %s188 = scalar_select %p185, %s186, %s187
    %p191 = pneg %p185
    %p192 = scmp.eq.s32.totalorder %s13, 3
    %p193 = por %p191, %p192
    %p194 = scmp.ne.s32.totalorder %s186, %s189
    %p195 = scmp.eq.s32.totalorder %s13, 0
    %p196 = por %p194, %p195
    %p197 = scmp.ne.s32.totalorder %s186, %s189
    %p198 = scmp.eq.s32.totalorder %s18, 3
    %p199 = por %p197, %p198
    %p200 = scmp.ne.s32.totalorder %s189, %s190
    %p201 = scmp.eq.s32.totalorder %s18, 0
    %p202 = por %p200, %p201
    %p203 = scmp.ne.s32.totalorder %s189, %s190
    %p204 = scmp.eq.s32.totalorder %s19, 3
    %p205 = por %p203, %p204
    %p207 = scmp.ne.s32.totalorder %s190, %s206
    %p208 = scmp.eq.s32.totalorder %s19, 0
    %p209 = por %p207, %p208
    %s210 = ssub.s32 %s20, %s32
    %s211 = ssub.s32 %s21, %s28
    %s212 = sor.u32 %s210, %s211
    %p213 = scmp.eq.s32.totalorder %s212, 0
    %s215 = sadd.s32 %s214, 1
    %s216 = scalar_select %p213, %s214, %s215
    %p219 = pneg %p213
    %p220 = scmp.eq.s32.totalorder %s13, 3
    %p221 = por %p219, %p220
    %p222 = scmp.ne.s32.totalorder %s214, %s217
    %p223 = scmp.eq.s32.totalorder %s13, 0
    %p224 = por %p222, %p223
    %p225 = scmp.ne.s32.totalorder %s214, %s217
    %p226 = scmp.eq.s32.totalorder %s18, 3
    %p227 = por %p225, %p226
    %p228 = scmp.ne.s32.totalorder %s217, %s218
    %p229 = scmp.eq.s32.totalorder %s18, 0
    %p230 = por %p228, %p229
    %p231 = scmp.ne.s32.totalorder %s217, %s218
    %p232 = scmp.eq.s32.totalorder %s19, 3
    %p233 = por %p231, %p232
    %p235 = scmp.ne.s32.totalorder %s218, %s234
    %p236 = scmp.eq.s32.totalorder %s19, 0
    %p237 = por %p235, %p236
    %p238 = scmp.le.s32.totalorder 1, %s13
    %p239 = scmp.lt.s32.totalorder %s13, 5
    %p240 = pnand %p238, %p239
    %p241 = pneg %p240
    // Predicated region
    $region9: #{down_forward.3} parent=5 // pred_check
      _
    $region10: #{down_forward.3} parent=5 // pred_check_branch
      %243 = sbr.rel (%p240) target = $region12
    $region11: #{down_forward.3} parent=5 // pred_region
      %s244 = ssub.s32 %s13, 1
      // Predicated region
      $region13: #{down_forward.3} parent=11 // pred_check
        %p245 = pneg %p146
      $region14: #{down_forward.3} parent=11 // pred_check_branch
        %247 = sbr.rel (%p245) target = $region16
      $region15: #{down_forward.3} parent=11 // pred_region
        _
      $region16: #{down_forward.3} parent=11 // pred_fallthru
        _
    $region12: #{down_forward.3} parent=5 // pred_fallthru
      _
    %p248 = scmp.lt.s32.totalorder %s13, 4
    // Predicated region
    $region17: #{down_forward.3} parent=5 // pred_check
      %p249 = pneg %p248
    $region18: #{down_forward.3} parent=5 // pred_check_branch
      %251 = sbr.rel (%p249) target = $region20
    $region19: #{down_forward.3} parent=5 // pred_region
      // Predicated region
      $region21: #{down_forward.3} parent=19 // pred_check
        %p252 = pneg %p47
      $region22: #{down_forward.3} parent=19 // pred_check_branch
        %254 = sbr.rel (%p252) target = $region24
      $region23: #{down_forward.3} parent=19 // pred_region
        %s255 = smul.u32 4, %s21
        %p256 = scmp.lt.s32.totalorder %s20, 1
        %s257 = scalar_select %p256, %s20, 1
        %p258 = scmp.lt.s32.totalorder %s255, 7
        %s259 = scalar_select %p258, %s255, 7
        %s260 = smul.addr %s259, 2
        %s261 = smul.addr %s257, 16
        %s262 = sadd.s32 %s260, %s261
        %s263 = smul.addr %s262, 4
        %s264 = scalar_lea.vmem %s0, %s263
        %s265 = smul.u32 4, %s21
      $region24: #{down_forward.3} parent=19 // pred_fallthru
        _
      // Predicated region
      $region25: #{down_forward.3} parent=19 // pred_check
        %p266 = pneg %p83
      $region26: #{down_forward.3} parent=19 // pred_check_branch
        %268 = sbr.rel (%p266) target = $region28
      $region27: #{down_forward.3} parent=19 // pred_region
        %s269 = smul.u32 %s21, 4
        %s270 = ssub.s32 %s269, 1
        %p271 = scmp.gt.s32.totalorder %s270, 0
        %s272 = scalar_select %p271, %s270, 0
        %p273 = scmp.lt.s32.totalorder %s20, 1
        %s274 = scalar_select %p273, %s20, 1
        %p275 = scmp.lt.s32.totalorder %s272, 7
        %s276 = scalar_select %p275, %s272, 7
        %s277 = smul.addr %s276, 2
        %s278 = smul.addr %s274, 16
        %s279 = sadd.s32 %s277, %s278
        %s280 = smul.addr %s279, 4
        %s281 = scalar_lea.vmem %s1, %s280
        %s282 = smul.u32 %s21, 4
        %s283 = ssub.s32 %s282, 1
        %p284 = scmp.gt.s32.totalorder %s283, 0
        %s285 = scalar_select %p284, %s283, 0
      $region28: #{down_forward.3} parent=19 // pred_fallthru
        _
      // Predicated region
      $region29: #{down_forward.3} parent=19 // pred_check
        %p286 = pneg %p119
      $region30: #{down_forward.3} parent=19 // pred_check_branch
        %288 = sbr.rel (%p286) target = $region32
      $region31: #{down_forward.3} parent=19 // pred_region
        %s289 = smul.u32 %s21, 4
        %s290 = sadd.s32 %s289, 4
        %p291 = scmp.lt.s32.totalorder %s290, 7
        %s292 = scalar_select %p291, %s290, 7
        %p293 = scmp.lt.s32.totalorder %s20, 1
        %s294 = scalar_select %p293, %s20, 1
        %p295 = scmp.lt.s32.totalorder %s292, 7
        %s296 = scalar_select %p295, %s292, 7
        %s297 = smul.addr %s296, 2
        %s298 = smul.addr %s294, 16
        %s299 = sadd.s32 %s297, %s298
        %s300 = smul.addr %s299, 4
        %s301 = scalar_lea.vmem %s2, %s300
        %s302 = smul.u32 %s21, 4
        %s303 = sadd.s32 %s302, 4
        %p304 = scmp.lt.s32.totalorder %s303, 7
        %s305 = scalar_select %p304, %s303, 7
      $region32: #{down_forward.3} parent=19 // pred_fallthru
        _
    $region20: #{down_forward.3} parent=5 // pred_fallthru
      _
    %p306 = scmp.le.s32.totalorder 1, %s13
    %p307 = scmp.lt.s32.totalorder %s13, 5
    %p308 = pnand %p306, %p307
    %p309 = pneg %p308
    // Predicated region
    $region33: #{down_forward.3} parent=5 // pred_check
      _
    $region34: #{down_forward.3} parent=5 // pred_check_branch
      %311 = sbr.rel (%p308) target = $region36
    $region35: #{down_forward.3} parent=5 // pred_region
      %s312 = ssub.s32 %s13, 1
      %s313 = smul.u32 4, %s23
      %p314 = scmp.lt.s32.totalorder %s22, 1
      %s315 = scalar_select %p314, %s22, 1
      %p316 = scmp.lt.s32.totalorder %s313, 7
      %s317 = scalar_select %p316, %s313, 7
      %s318 = smul.addr %s317, 2
      %s319 = smul.addr %s315, 16
      %s320 = sadd.s32 %s318, %s319
      %s321 = smul.addr %s320, 4
      %s322 = scalar_lea.vmem %s0, %s321
      %p323 = pneg %p53
      %p324 = pneg %p50
      %s325 = smul.u32 %s23, 4
      %s326 = ssub.s32 %s325, 1
      %p327 = scmp.gt.s32.totalorder %s326, 0
      %s328 = scalar_select %p327, %s326, 0
      %p329 = scmp.lt.s32.totalorder %s22, 1
      %s330 = scalar_select %p329, %s22, 1
      %p331 = scmp.lt.s32.totalorder %s328, 7
      %s332 = scalar_select %p331, %s328, 7
      %s333 = smul.addr %s332, 2
      %s334 = smul.addr %s330, 16
      %s335 = sadd.s32 %s333, %s334
      %s336 = smul.addr %s335, 4
      %s337 = scalar_lea.vmem %s1, %s336
      %p338 = pneg %p89
      %p339 = pneg %p86
      %s340 = smul.u32 %s23, 4
      %s341 = sadd.s32 %s340, 4
      %p342 = scmp.lt.s32.totalorder %s341, 7
      %s343 = scalar_select %p342, %s341, 7
      %p344 = scmp.lt.s32.totalorder %s22, 1
      %s345 = scalar_select %p344, %s22, 1
      %p346 = scmp.lt.s32.totalorder %s343, 7
      %s347 = scalar_select %p346, %s343, 7
      %s348 = smul.addr %s347, 2
      %s349 = smul.addr %s345, 16
      %s350 = sadd.s32 %s348, %s349
      %s351 = smul.addr %s350, 4
      %s352 = scalar_lea.vmem %s2, %s351
      %p353 = pneg %p125
      %p354 = pneg %p122
      %p355 = pneg %p146
      %p356 = pneg %p143
      %p357 = pneg %p174
      %p358 = pneg %p171
      %s359 = smul.u32 4, %s23
      %p360 = scmp.lt.s32.totalorder %s22, 1
      %s361 = scalar_select %p360, %s22, 1
      %p362 = scmp.lt.s32.totalorder %s359, 7
      %s363 = scalar_select %p362, %s359, 7
      %s364 = smul.addr %s361, 8
      %s365 = sadd.s32 %s363, %s364
      %s366 = smul.addr %s365, 4
      %s367 = scalar_lea.vmem %s4, %s366
      %p368 = pneg %p202
      %p369 = pneg %p199
      %p370 = scmp.lt.s32.totalorder %s22, 1
      %s371 = scalar_select %p370, %s22, 1
      %p372 = scmp.lt.s32.totalorder %s23, 1
      %s373 = scalar_select %p372, %s23, 1
      %s374 = smul.addr %s371, 2
      %s375 = sadd.s32 %s373, %s374
      %s376 = scalar_lea.vmem %s5, %s375
      %p377 = pneg %p230
      %p378 = pneg %p227
      %p379 = scmp.lt.s32.totalorder %s22, 1
      %s380 = scalar_select %p379, %s22, 1
      %p381 = scmp.lt.s32.totalorder %s23, 1
      %s382 = scalar_select %p381, %s23, 1
      %s383 = smul.addr %s380, 2
      %s384 = sadd.s32 %s382, %s383
      %s385 = scalar_lea.vmem %s6, %s384
      %s386 = smul.u32 4, %s23
      %p387 = scmp.lt.s32.totalorder %s22, 1
      %s388 = scalar_select %p387, %s22, 1
      %p389 = scmp.lt.s32.totalorder %s386, 7
      %s390 = scalar_select %p389, %s386, 7
      %s391 = smul.addr %s390, 2
      %s392 = smul.addr %s388, 16
      %s393 = sadd.s32 %s391, %s392
      %s394 = smul.addr %s393, 4
      %s395 = scalar_lea.vmem %s0, %s394
      %s396 = smul.u32 4, %s23
      %s397 = smul.u32 %s23, 4
      %s398 = ssub.s32 %s397, 1
      %p399 = scmp.gt.s32.totalorder %s398, 0
      %s400 = scalar_select %p399, %s398, 0
      %p401 = scmp.lt.s32.totalorder %s22, 1
      %s402 = scalar_select %p401, %s22, 1
      %p403 = scmp.lt.s32.totalorder %s400, 7
      %s404 = scalar_select %p403, %s400, 7
      %s405 = smul.addr %s404, 2
      %s406 = smul.addr %s402, 16
      %s407 = sadd.s32 %s405, %s406
      %s408 = smul.addr %s407, 4
      %s409 = scalar_lea.vmem %s1, %s408
      %s410 = smul.u32 %s23, 4
      %s411 = ssub.s32 %s410, 1
      %p412 = scmp.gt.s32.totalorder %s411, 0
      %s413 = scalar_select %p412, %s411, 0
      %s414 = smul.u32 %s23, 4
      %s415 = sadd.s32 %s414, 4
      %p416 = scmp.lt.s32.totalorder %s415, 7
      %s417 = scalar_select %p416, %s415, 7
      %p418 = scmp.lt.s32.totalorder %s22, 1
      %s419 = scalar_select %p418, %s22, 1
      %p420 = scmp.lt.s32.totalorder %s417, 7
      %s421 = scalar_select %p420, %s417, 7
      %s422 = smul.addr %s421, 2
      %s423 = smul.addr %s419, 16
      %s424 = sadd.s32 %s422, %s423
      %s425 = smul.addr %s424, 4
      %s426 = scalar_lea.vmem %s2, %s425
      %s427 = smul.u32 %s23, 4
      %s428 = sadd.s32 %s427, 4
      %p429 = scmp.lt.s32.totalorder %s428, 7
      %s430 = scalar_select %p429, %s428, 7
      %s431 = smul.u32 4, %s23
      %p432 = scmp.lt.s32.totalorder %s22, 1
      %s433 = scalar_select %p432, %s22, 1
      %p434 = scmp.lt.s32.totalorder %s431, 7
      %s435 = scalar_select %p434, %s431, 7
      %s436 = smul.addr %s433, 8
      %s437 = sadd.s32 %s435, %s436
      %s438 = smul.addr %s437, 4
      %s439 = scalar_lea.vmem %s4, %s438
      %s440 = smul.u32 4, %s23
      %p441 = scmp.lt.s32.totalorder %s22, 1
      %s442 = scalar_select %p441, %s22, 1
      %p443 = scmp.lt.s32.totalorder %s23, 1
      %s444 = scalar_select %p443, %s23, 1
      %s445 = smul.addr %s442, 2
      %s446 = sadd.s32 %s444, %s445
      %s447 = scalar_lea.vmem %s5, %s446
      %p448 = scmp.lt.s32.totalorder %s22, 1
      %s449 = scalar_select %p448, %s22, 1
      %p450 = scmp.lt.s32.totalorder %s23, 1
      %s451 = scalar_select %p450, %s23, 1
      %s452 = smul.addr %s449, 2
      %s453 = sadd.s32 %s451, %s452
      %s454 = scalar_lea.vmem %s6, %s453
      %v456 = vld [vmem:[%s395] sm:$0xf]
      %v457 = vld [vmem:[%s395 + $0x4] sm:$0xf]
      %v458 = vld [vmem:[%s395 + $0x8] sm:$0xf]
      %v459 = vld [vmem:[%s395 + $0xc] sm:$0xf]
      %v460 = vld [vmem:[%s395 + $0x10] sm:$0xf]
      %v461 = vld [vmem:[%s395 + $0x14] sm:$0xf]
      %v462 = vld [vmem:[%s395 + $0x18] sm:$0xf]
      %v463 = vld [vmem:[%s395 + $0x1c] sm:$0xf]
      %v464 = vmax.bf16 %v456, %v457
      %v465 = vmax.bf16 %v458, %v459
      %v466 = vmax.bf16 %v460, %v461
      %v467 = vmax.bf16 %v462, %v463
      %472 = vrot.lane.b32.xlu0 %v464, 124
      %v473 = vpop.permute.xlu0 %472
      %474 = vrot.lane.b32.xlu0 %v465, 124
      %v475 = vpop.permute.xlu0 %474
      %476 = vrot.lane.b32.xlu0 %v466, 124
      %v477 = vpop.permute.xlu0 %476
      %478 = vrot.lane.b32.xlu0 %v467, 124
      %v479 = vpop.permute.xlu0 %478
      %v484 = vmax.bf16 %v464, %v473
      %v485 = vmax.bf16 %v465, %v475
      %v486 = vmax.bf16 %v466, %v477
      %v487 = vmax.bf16 %v467, %v479
      %v488 = vld [vmem:[%s409] sm:$0xf]
      %v489 = vld [vmem:[%s409 + $0x4] sm:$0xf]
      %v490 = vmax.bf16 %v488, %v489
      %492 = vrot.lane.b32.xlu0 %v490, 124
      %v493 = vpop.permute.xlu0 %492
      %v495 = vmax.bf16 %v490, %v493
      %v496 = vld [vmem:[%s426] sm:$0xf]
      %v497 = vld [vmem:[%s426 + $0x4] sm:$0xf]
      %v498 = vmax.bf16 %v496, %v497
      %500 = vrot.lane.b32.xlu0 %v498, 124
      %v501 = vpop.permute.xlu0 %500
      %v503 = vmax.bf16 %v498, %v501
      %p504 = scmp.eq.s32.totalorder %s23, 0
      %s505 = scalar_select %p504, 1, 0
      %v506 = vstv %s505
      %vm507 = vcmp.eq.s32.totalorder %v506, 1
      %v508 = vsel %vm507, 0, %v495
      %p509 = scmp.eq.s32.totalorder %s23, 1
      %s510 = scalar_select %p509, 1, 0
      %v511 = vstv %s510
      %vm512 = vcmp.eq.s32.totalorder %v511, 1
      %v513 = vsel %vm512, 0, %v503
      %vm514 = vcmask 24576
      %vm515 = vsmask.f32 256
      %vm516 = vmand %vm514, %vm515
      %v517 = vld [vmem:[#allocation2] sm:$0x1]
      %v518 = vsel %vm516, 0, %v517
      %519 = vst [vmem:[#allocation2] sm:$0x1] %v518
      %v520 = vld [vmem:[#allocation2 + $0x8] sm:$0x1]
      %v521 = vsel %vm516, 0, %v520
      %522 = vst [vmem:[#allocation2 + $0x8] sm:$0x1] %v521
      %v523 = vld [vmem:[#allocation2 + $0x10] sm:$0x1]
      %v524 = vsel %vm516, 0, %v523
      %525 = vst [vmem:[#allocation2 + $0x10] sm:$0x1] %v524
      %v526 = vld [vmem:[#allocation2 + $0x18] sm:$0x1]
      %v527 = vsel %vm516, 0, %v526
      %528 = vst [vmem:[#allocation2 + $0x18] sm:$0x1] %v527
      %v529 = vld [vmem:[#allocation2 + $0x20] sm:$0x1]
      %v530 = vsel %vm516, 0, %v529
      %531 = vst [vmem:[#allocation2 + $0x20] sm:$0x1] %v530
      %v532 = vld [vmem:[#allocation2 + $0x28] sm:$0x1]
      %v533 = vsel %vm516, 0, %v532
      %534 = vst [vmem:[#allocation2 + $0x28] sm:$0x1] %v533
      %vm535 = vsmask.f32 7938
      %vm536 = vmand %vm514, %vm535
      %v537 = vld [vmem:[#allocation2 + $0x4] sm:$0x1]
      %v538 = vsel %vm536, 0, %v537
      %539 = vst [vmem:[#allocation2 + $0x4] sm:$0x1] %v538
      %v540 = vld [vmem:[#allocation2 + $0xc] sm:$0x1]
      %v541 = vsel %vm536, 0, %v540
      %542 = vst [vmem:[#allocation2 + $0xc] sm:$0x1] %v541
      %v543 = vld [vmem:[#allocation2 + $0x14] sm:$0x1]
      %v544 = vsel %vm536, 0, %v543
      %545 = vst [vmem:[#allocation2 + $0x14] sm:$0x1] %v544
      %v546 = vld [vmem:[#allocation2 + $0x1c] sm:$0x1]
      %v547 = vsel %vm536, 0, %v546
      %548 = vst [vmem:[#allocation2 + $0x1c] sm:$0x1] %v547
      %v549 = vld [vmem:[#allocation2 + $0x24] sm:$0x1]
      %v550 = vsel %vm536, 0, %v549
      %551 = vst [vmem:[#allocation2 + $0x24] sm:$0x1] %v550
      %v552 = vld [vmem:[#allocation2 + $0x2c] sm:$0x1]
      %v553 = vsel %vm536, 0, %v552
      %554 = vst [vmem:[#allocation2 + $0x2c] sm:$0x1] %v553
      %v556 = vshrl.u32 %v508, 16
      %v558 = vrot.slane %v556, 7
      %v559 = vshll.u32 %v508, 16
      %v561 = vor.u32 %v558, %v559
      %v562 = vrot.slane %v558, 4
      %vm565 = vcmask 27648
      %vm566 = vmand %vm565, %vm535
      %v567 = vld [vmem:[#allocation2] sm:$0xf]
      %v568 = vsel %vm566, %v561, %v567
      %569 = vst [vmem:[#allocation2] sm:$0xf] %v568
      %v570 = vld [vmem:[#allocation2 + $0x4] sm:$0x1]
      %v571 = vsel %vm516, %v562, %v570
      %572 = vst [vmem:[#allocation2 + $0x4] sm:$0x1] %v571
      %v574 = vshrl.u32 %v513, 16
      %v576 = vrot.slane %v574, 7
      %v577 = vshll.u32 %v513, 16
      %v579 = vor.u32 %v576, %v577
      %v580 = vrot.slane %v576, 4
      %s583 = scalar_lea.vmem [#allocation2], 40
      %v584 = vld [vmem:[%s583] sm:$0xf]
      %v585 = vsel %vm566, %v579, %v584
      %586 = vst [vmem:[%s583] sm:$0xf] %v585
      %v587 = vld [vmem:[%s583 + $0x4] sm:$0x1]
      %v588 = vsel %vm516, %v580, %v587
      %589 = vst [vmem:[%s583 + $0x4] sm:$0x1] %v588
      %v591 = vshrl.u32 %v484, 16
      %v593 = vrot.slane %v591, 7
      %v594 = vshll.u32 %v484, 16
      %v596 = vor.u32 %v593, %v594
      %v597 = vrot.slane %v593, 4
      %v599 = vshrl.u32 %v485, 16
      %v601 = vrot.slane %v599, 7
      %v602 = vshll.u32 %v485, 16
      %v604 = vor.u32 %v601, %v602
      %v605 = vrot.slane %v601, 4
      %v607 = vshrl.u32 %v486, 16
      %v609 = vrot.slane %v607, 7
      %v610 = vshll.u32 %v486, 16
      %v612 = vor.u32 %v609, %v610
      %v613 = vrot.slane %v609, 4
      %v615 = vshrl.u32 %v487, 16
      %v617 = vrot.slane %v615, 7
      %v618 = vshll.u32 %v487, 16
      %v620 = vor.u32 %v617, %v618
      %v621 = vrot.slane %v617, 4
      %s630 = scalar_lea.vmem [#allocation2], 8
      %v631 = vld [vmem:[%s630] sm:$0xf]
      %v632 = vsel %vm566, %v596, %v631
      %633 = vst [vmem:[%s630] sm:$0xf] %v632
      %v634 = vld [vmem:[%s630 + $0x4] sm:$0x1]
      %v635 = vsel %vm516, %v597, %v634
      %636 = vst [vmem:[%s630 + $0x4] sm:$0x1] %v635
      %v637 = vld [vmem:[%s630 + $0x8] sm:$0xf]
      %v638 = vsel %vm566, %v604, %v637
      %639 = vst [vmem:[%s630 + $0x8] sm:$0xf] %v638
      %v640 = vld [vmem:[%s630 + $0xc] sm:$0x1]
      %v641 = vsel %vm516, %v605, %v640
      %642 = vst [vmem:[%s630 + $0xc] sm:$0x1] %v641
      %v643 = vld [vmem:[%s630 + $0x10] sm:$0xf]
      %v644 = vsel %vm566, %v612, %v643
      %645 = vst [vmem:[%s630 + $0x10] sm:$0xf] %v644
      %v646 = vld [vmem:[%s630 + $0x14] sm:$0x1]
      %v647 = vsel %vm516, %v613, %v646
      %648 = vst [vmem:[%s630 + $0x14] sm:$0x1] %v647
      %v649 = vld [vmem:[%s630 + $0x18] sm:$0xf]
      %v650 = vsel %vm566, %v620, %v649
      %651 = vst [vmem:[%s630 + $0x18] sm:$0xf] %v650
      %v652 = vld [vmem:[%s630 + $0x1c] sm:$0x1]
      %v653 = vsel %vm516, %v621, %v652
      %654 = vst [vmem:[%s630 + $0x1c] sm:$0x1] %v653
      %v655 = vld [vmem:[#allocation2] sm:$0xf]
      %v656 = vld [vmem:[#allocation2 + $0x4] sm:$0x1]
      %v657 = vld [vmem:[#allocation2 + $0x8] sm:$0xf]
      %v658 = vld [vmem:[#allocation2 + $0xc] sm:$0x1]
      %v659 = vld [vmem:[#allocation2 + $0x10] sm:$0xf]
      %v660 = vld [vmem:[#allocation2 + $0x14] sm:$0x1]
      %v661 = vld [vmem:[#allocation2 + $0x18] sm:$0xf]
      %v662 = vld [vmem:[#allocation2 + $0x1c] sm:$0x1]
      %v663 = vld [vmem:[#allocation2 + $0x20] sm:$0xf]
      %v664 = vld [vmem:[#allocation2 + $0x24] sm:$0x1]
      %v665 = vld [vmem:[#allocation2 + $0x28] sm:$0xf]
      %v666 = vld [vmem:[#allocation2 + $0x2c] sm:$0x1]
      %v667 = vld [vmem:[%s3] sm:$0x3]
      %vm668 = vsmask.f32 3328
      %vm669 = vsmask.f32 7440
      %vm670 = vmor %vm668, %vm669
      %v672 = vshrl.u32 %v655, 16
      %v674 = vrot.slane %v672, 4
      %v675 = vshll.u32 %v655, 16
      %v677 = vrot.slane %v675, 5
      %v678 = vor.u32 %v674, %v677
      %v679 = vrot.slane %v678, 4
      %v681 = vshll.u32 %v656, 16
      %v683 = vrot.slane %v681, 5
      %v684 = vsel %vm670, %v679, %v683
      %v686 = vshrl.u32 %v657, 16
      %v688 = vrot.slane %v686, 4
      %v689 = vshll.u32 %v657, 16
      %v691 = vrot.slane %v689, 5
      %v692 = vor.u32 %v688, %v691
      %v693 = vrot.slane %v692, 4
      %v695 = vshll.u32 %v658, 16
      %v697 = vrot.slane %v695, 5
      %v698 = vsel %vm670, %v693, %v697
      %v700 = vshrl.u32 %v659, 16
      %v702 = vrot.slane %v700, 4
      %v703 = vshll.u32 %v659, 16
      %v705 = vrot.slane %v703, 5
      %v706 = vor.u32 %v702, %v705
      %v707 = vrot.slane %v706, 4
      %v709 = vshll.u32 %v660, 16
      %v711 = vrot.slane %v709, 5
      %v712 = vsel %vm670, %v707, %v711
      %v714 = vshrl.u32 %v661, 16
      %v716 = vrot.slane %v714, 4
      %v717 = vshll.u32 %v661, 16
      %v719 = vrot.slane %v717, 5
      %v720 = vor.u32 %v716, %v719
      %v721 = vrot.slane %v720, 4
      %v723 = vshll.u32 %v662, 16
      %v725 = vrot.slane %v723, 5
      %v726 = vsel %vm670, %v721, %v725
      %s727 = scalar_lea.vmem %s3, 2
      %v728 = vld [vmem:[%s727] sm:$0x3]
      %v729 = vunpack.c.l.b16 %v684
      %v730 = vunpack.c.l.b16 %v698
      %v731 = vunpack.c.l.b16 %v712
      %v732 = vunpack.c.l.b16 %v726
      %v733 = vpack.c.b16 %v730, %v729
      %v734 = vpack.c.b16 %v732, %v731
      %vm735 = vcmask 31744
      %v737 = vsel %vm735, %v733, 0
      %v740 = vsel %vm735, %v734, 0
      %vm742 = vcmask 1041408
      %v744 = vsel %vm742, %v728, 0
      %746 = vmatprep.subr.bf16.mxu0 0
      %747 = vmatpush1.bf16.msra.mxu0 0
      %748 = vmatprep.subr.bf16.mxu0 0
      %749 = vmatpush1.bf16.msra.mxu0 0
      %750 = vmatprep.subr.bf16.mxu0 0
      %751 = vmatpush1.bf16.msra.mxu0 0
      %752 = vmatprep.subr.bf16.mxu0 0
      %753 = vmatpush1.bf16.msra.mxu0 0
      %754 = vmatprep.subr.bf16.mxu0 0
      %755 = vmatpush1.bf16.msra.mxu0 0
      %756 = vmatprep.subr.bf16.mxu0 0
      %757 = vmatpush1.bf16.msra.mxu0 0
      %758 = vmatprep.subr.bf16.mxu0 0
      %759 = vmatpush1.bf16.msra.mxu0 0
      %760 = vmatprep.subr.bf16.mxu0 0
      %761 = vmatpush1.bf16.msra.mxu0 %v744
      %762 = vmatprep.subr.bf16.mxu0 0
      %763 = vmatpush2.bf16.msra.mxu0 0
      %764 = vmatprep.subr.bf16.mxu0 0
      %765 = vmatpush2.bf16.msra.mxu0 0
      %766 = vmatprep.subr.bf16.mxu0 0
      %767 = vmatpush2.bf16.msra.mxu0 0
      %768 = vmatprep.subr.bf16.mxu0 0
      %769 = vmatpush2.bf16.msra.mxu0 0
      %770 = vmatprep.subr.bf16.mxu0 0
      %771 = vmatpush2.bf16.msra.mxu0 0
      %772 = vmatprep.subr.bf16.mxu0 0
      %773 = vmatpush2.bf16.msra.mxu0 0
      %774 = vmatprep.subr.bf16.mxu0 0
      %775 = vmatpush2.bf16.msra.mxu0 0
      %776 = vmatprep.subr.bf16.mxu0 0
      %777 = vmatpush2.bf16.msra.mxu0 0
      %778 = vmatprep.mubr.bf16.mxu0 0
      %779 = vmatmul.mubr.bf16.gmra.mxu0 %v737
      %v780 = vpop.f32.mrf.mxu0
      %v781 = vadd.f32 0.0, %v780
      %v782 = vpop.f32.mrf.mxu0
      %v783 = vpop.f32.mrf.mxu0
      %v784 = vadd.f32 0.0, %v783
      %v785 = vpop.f32.mrf.mxu0
      %786 = vmatprep.mubr.bf16.mxu0 0
      %787 = vmatmul.mubr.bf16.gmra.mxu0 %v740
      %v788 = vpop.f32.mrf.mxu0
      %v789 = vadd.f32 0.0, %v788
      %v790 = vpop.f32.mrf.mxu0
      %v791 = vpop.f32.mrf.mxu0
      %v792 = vadd.f32 0.0, %v791
      %v793 = vpop.f32.mrf.mxu0
      %794 = vdwg.mxu0
      %v799 = vunpack.c.l.b16 %v655
      %v800 = vunpack.c.l.b16 %v657
      %v801 = vunpack.c.l.b16 %v659
      %v802 = vunpack.c.l.b16 %v661
      %v803 = vpack.c.b16 %v800, %v799
      %v804 = vpack.c.b16 %v802, %v801
      %v806 = vsel %vm735, %v803, 0
      %v809 = vsel %vm735, %v804, 0
      %v812 = vsel %vm742, %v667, 0
      %814 = vmatprep.subr.bf16.mxu0 0
      %815 = vmatpush1.bf16.msra.mxu0 0
      %816 = vmatprep.subr.bf16.mxu0 0
      %817 = vmatpush1.bf16.msra.mxu0 0
      %818 = vmatprep.subr.bf16.mxu0 0
      %819 = vmatpush1.bf16.msra.mxu0 0
      %820 = vmatprep.subr.bf16.mxu0 0
      %821 = vmatpush1.bf16.msra.mxu0 0
      %822 = vmatprep.subr.bf16.mxu0 0
      %823 = vmatpush1.bf16.msra.mxu0 0
      %824 = vmatprep.subr.bf16.mxu0 0
      %825 = vmatpush1.bf16.msra.mxu0 0
      %826 = vmatprep.subr.bf16.mxu0 0
      %827 = vmatpush1.bf16.msra.mxu0 0
      %828 = vmatprep.subr.bf16.mxu0 0
      %829 = vmatpush1.bf16.msra.mxu0 %v812
      %830 = vmatprep.subr.bf16.mxu0 0
      %831 = vmatpush2.bf16.msra.mxu0 0
      %832 = vmatprep.subr.bf16.mxu0 0
      %833 = vmatpush2.bf16.msra.mxu0 0
      %834 = vmatprep.subr.bf16.mxu0 0
      %835 = vmatpush2.bf16.msra.mxu0 0
      %836 = vmatprep.subr.bf16.mxu0 0
      %837 = vmatpush2.bf16.msra.mxu0 0
      %838 = vmatprep.subr.bf16.mxu0 0
      %839 = vmatpush2.bf16.msra.mxu0 0
      %840 = vmatprep.subr.bf16.mxu0 0
      %841 = vmatpush2.bf16.msra.mxu0 0
      %842 = vmatprep.subr.bf16.mxu0 0
      %843 = vmatpush2.bf16.msra.mxu0 0
      %844 = vmatprep.subr.bf16.mxu0 0
      %845 = vmatpush2.bf16.msra.mxu0 0
      %846 = vmatprep.mubr.bf16.mxu0 0
      %847 = vmatmul.mubr.bf16.gmra.mxu0 %v806
      %v848 = vpop.f32.mrf.mxu0
      %v849 = vadd.f32 %v781, %v848
      %v850 = vpop.f32.mrf.mxu0
      %v851 = vpop.f32.mrf.mxu0
      %v852 = vadd.f32 %v784, %v851
      %v853 = vpop.f32.mrf.mxu0
      %854 = vmatprep.mubr.bf16.mxu0 0
      %855 = vmatmul.mubr.bf16.gmra.mxu0 %v809
      %v856 = vpop.f32.mrf.mxu0
      %v857 = vadd.f32 %v789, %v856
      %v858 = vpop.f32.mrf.mxu0
      %v859 = vpop.f32.mrf.mxu0
      %v860 = vadd.f32 %v792, %v859
      %v861 = vpop.f32.mrf.mxu0
      %862 = vdwg.mxu0
      %vm867 = vcmask 1042432
      %vm868 = vcmask 1046532
      %vm869 = vmor %vm867, %vm868
      %v870 = vrot.slane %v655, 5
      %v871 = vrot.slane %v870, 4
      %v872 = vrot.slane %v656, 5
      %v873 = vsel %vm869, %v871, %v872
      %v874 = vrot.slane %v657, 5
      %v875 = vrot.slane %v874, 4
      %v876 = vrot.slane %v658, 5
      %v877 = vsel %vm869, %v875, %v876
      %v878 = vrot.slane %v659, 5
      %v879 = vrot.slane %v878, 4
      %v880 = vrot.slane %v660, 5
      %v881 = vsel %vm869, %v879, %v880
      %v882 = vrot.slane %v661, 5
      %v883 = vrot.slane %v882, 4
      %v884 = vrot.slane %v662, 5
      %v885 = vsel %vm869, %v883, %v884
      %s886 = scalar_lea.vmem %s3, 4
      %v887 = vld [vmem:[%s886] sm:$0x3]
      %v888 = vunpack.c.l.b16 %v873
      %v889 = vunpack.c.l.b16 %v877
      %v890 = vunpack.c.l.b16 %v881
      %v891 = vunpack.c.l.b16 %v885
      %v892 = vpack.c.b16 %v889, %v888
      %v893 = vpack.c.b16 %v891, %v890
      %v895 = vsel %vm735, %v892, 0
      %v898 = vsel %vm735, %v893, 0
      %v901 = vsel %vm742, %v887, 0
      %903 = vmatprep.subr.bf16.mxu0 0
      %904 = vmatpush1.bf16.msra.mxu0 0
      %905 = vmatprep.subr.bf16.mxu0 0
      %906 = vmatpush1.bf16.msra.mxu0 0
      %907 = vmatprep.subr.bf16.mxu0 0
      %908 = vmatpush1.bf16.msra.mxu0 0
      %909 = vmatprep.subr.bf16.mxu0 0
      %910 = vmatpush1.bf16.msra.mxu0 0
      %911 = vmatprep.subr.bf16.mxu0 0
      %912 = vmatpush1.bf16.msra.mxu0 0
      %913 = vmatprep.subr.bf16.mxu0 0
      %914 = vmatpush1.bf16.msra.mxu0 0
      %915 = vmatprep.subr.bf16.mxu0 0
      %916 = vmatpush1.bf16.msra.mxu0 0
      %917 = vmatprep.subr.bf16.mxu0 0
      %918 = vmatpush1.bf16.msra.mxu0 %v901
      %919 = vmatprep.subr.bf16.mxu0 0
      %920 = vmatpush2.bf16.msra.mxu0 0
      %921 = vmatprep.subr.bf16.mxu0 0
      %922 = vmatpush2.bf16.msra.mxu0 0
      %923 = vmatprep.subr.bf16.mxu0 0
      %924 = vmatpush2.bf16.msra.mxu0 0
      %925 = vmatprep.subr.bf16.mxu0 0
      %926 = vmatpush2.bf16.msra.mxu0 0
      %927 = vmatprep.subr.bf16.mxu0 0
      %928 = vmatpush2.bf16.msra.mxu0 0
      %929 = vmatprep.subr.bf16.mxu0 0
      %930 = vmatpush2.bf16.msra.mxu0 0
      %931 = vmatprep.subr.bf16.mxu0 0
      %932 = vmatpush2.bf16.msra.mxu0 0
      %933 = vmatprep.subr.bf16.mxu0 0
      %934 = vmatpush2.bf16.msra.mxu0 0
      %935 = vmatprep.mubr.bf16.mxu0 0
      %936 = vmatmul.mubr.bf16.gmra.mxu0 %v895
      %v937 = vpop.f32.mrf.mxu0
      %v938 = vadd.f32 0.0, %v937
      %v939 = vpop.f32.mrf.mxu0
      %v940 = vpop.f32.mrf.mxu0
      %v941 = vadd.f32 0.0, %v940
      %v942 = vpop.f32.mrf.mxu0
      %943 = vmatprep.mubr.bf16.mxu0 0
      %944 = vmatmul.mubr.bf16.gmra.mxu0 %v898
      %v945 = vpop.f32.mrf.mxu0
      %v946 = vadd.f32 0.0, %v945
      %v947 = vpop.f32.mrf.mxu0
      %v948 = vpop.f32.mrf.mxu0
      %v949 = vadd.f32 0.0, %v948
      %v950 = vpop.f32.mrf.mxu0
      %951 = vdwg.mxu0
      %v952 = vadd.f32 %v849, %v938
      %v953 = vadd.f32 %v852, %v941
      %v954 = vadd.f32 %v857, %v946
      %v955 = vadd.f32 %v860, %v949
      %s956 = scalar_lea.vmem %s3, 6
      %v957 = vld [vmem:[%s956] sm:$0x3]
      %v959 = vunpack.c.l.b16 %v663
      %v960 = vpack.c.b16 %v801, %v800
      %v961 = vpack.c.b16 %v959, %v802
      %v963 = vsel %vm735, %v960, 0
      %v966 = vsel %vm735, %v961, 0
      %v969 = vsel %vm742, %v957, 0
      %971 = vmatprep.subr.bf16.mxu0 0
      %972 = vmatpush1.bf16.msra.mxu0 0
      %973 = vmatprep.subr.bf16.mxu0 0
      %974 = vmatpush1.bf16.msra.mxu0 0
      %975 = vmatprep.subr.bf16.mxu0 0
      %976 = vmatpush1.bf16.msra.mxu0 0
      %977 = vmatprep.subr.bf16.mxu0 0
      %978 = vmatpush1.bf16.msra.mxu0 0
      %979 = vmatprep.subr.bf16.mxu0 0
      %980 = vmatpush1.bf16.msra.mxu0 0
      %981 = vmatprep.subr.bf16.mxu0 0
      %982 = vmatpush1.bf16.msra.mxu0 0
      %983 = vmatprep.subr.bf16.mxu0 0
      %984 = vmatpush1.bf16.msra.mxu0 0
      %985 = vmatprep.subr.bf16.mxu0 0
      %986 = vmatpush1.bf16.msra.mxu0 %v969
      %987 = vmatprep.subr.bf16.mxu0 0
      %988 = vmatpush2.bf16.msra.mxu0 0
      %989 = vmatprep.subr.bf16.mxu0 0
      %990 = vmatpush2.bf16.msra.mxu0 0
      %991 = vmatprep.subr.bf16.mxu0 0
      %992 = vmatpush2.bf16.msra.mxu0 0
      %993 = vmatprep.subr.bf16.mxu0 0
      %994 = vmatpush2.bf16.msra.mxu0 0
      %995 = vmatprep.subr.bf16.mxu0 0
      %996 = vmatpush2.bf16.msra.mxu0 0
      %997 = vmatprep.subr.bf16.mxu0 0
      %998 = vmatpush2.bf16.msra.mxu0 0
      %999 = vmatprep.subr.bf16.mxu0 0
      %1000 = vmatpush2.bf16.msra.mxu0 0
      %1001 = vmatprep.subr.bf16.mxu0 0
      %1002 = vmatpush2.bf16.msra.mxu0 0
      %1003 = vmatprep.mubr.bf16.mxu0 0
      %1004 = vmatmul.mubr.bf16.gmra.mxu0 %v963
      %v1005 = vpop.f32.mrf.mxu0
      %v1006 = vadd.f32 0.0, %v1005
      %v1007 = vpop.f32.mrf.mxu0
      %v1008 = vpop.f32.mrf.mxu0
      %v1009 = vadd.f32 0.0, %v1008
      %v1010 = vpop.f32.mrf.mxu0
      %1011 = vmatprep.mubr.bf16.mxu0 0
      %1012 = vmatmul.mubr.bf16.gmra.mxu0 %v966
      %v1013 = vpop.f32.mrf.mxu0
      %v1014 = vadd.f32 0.0, %v1013
      %v1015 = vpop.f32.mrf.mxu0
      %v1016 = vpop.f32.mrf.mxu0
      %v1017 = vadd.f32 0.0, %v1016
      %v1018 = vpop.f32.mrf.mxu0
      %1019 = vdwg.mxu0
      %v1020 = vadd.f32 %v952, %v1006
      %v1021 = vadd.f32 %v953, %v1009
      %v1022 = vadd.f32 %v954, %v1014
      %v1023 = vadd.f32 %v955, %v1017
      %v1025 = vshrl.u32 %v663, 16
      %v1027 = vrot.slane %v1025, 4
      %v1028 = vshll.u32 %v663, 16
      %v1030 = vrot.slane %v1028, 5
      %v1031 = vor.u32 %v1027, %v1030
      %v1032 = vrot.slane %v1031, 4
      %v1034 = vshll.u32 %v664, 16
      %v1036 = vrot.slane %v1034, 5
      %v1037 = vsel %vm670, %v1032, %v1036
      %s1038 = scalar_lea.vmem %s3, 8
      %v1039 = vld [vmem:[%s1038] sm:$0x3]
      %v1040 = vunpack.c.l.b16 %v1037
      %v1041 = vpack.c.b16 %v731, %v730
      %v1042 = vpack.c.b16 %v1040, %v732
      %v1044 = vsel %vm735, %v1041, 0
      %v1047 = vsel %vm735, %v1042, 0
      %v1050 = vsel %vm742, %v1039, 0
      %1052 = vmatprep.subr.bf16.mxu0 0
      %1053 = vmatpush1.bf16.msra.mxu0 0
      %1054 = vmatprep.subr.bf16.mxu0 0
      %1055 = vmatpush1.bf16.msra.mxu0 0
      %1056 = vmatprep.subr.bf16.mxu0 0
      %1057 = vmatpush1.bf16.msra.mxu0 0
      %1058 = vmatprep.subr.bf16.mxu0 0
      %1059 = vmatpush1.bf16.msra.mxu0 0
      %1060 = vmatprep.subr.bf16.mxu0 0
      %1061 = vmatpush1.bf16.msra.mxu0 0
      %1062 = vmatprep.subr.bf16.mxu0 0
      %1063 = vmatpush1.bf16.msra.mxu0 0
      %1064 = vmatprep.subr.bf16.mxu0 0
      %1065 = vmatpush1.bf16.msra.mxu0 0
      %1066 = vmatprep.subr.bf16.mxu0 0
      %1067 = vmatpush1.bf16.msra.mxu0 %v1050
      %1068 = vmatprep.subr.bf16.mxu0 0
      %1069 = vmatpush2.bf16.msra.mxu0 0
      %1070 = vmatprep.subr.bf16.mxu0 0
      %1071 = vmatpush2.bf16.msra.mxu0 0
      %1072 = vmatprep.subr.bf16.mxu0 0
      %1073 = vmatpush2.bf16.msra.mxu0 0
      %1074 = vmatprep.subr.bf16.mxu0 0
      %1075 = vmatpush2.bf16.msra.mxu0 0
      %1076 = vmatprep.subr.bf16.mxu0 0
      %1077 = vmatpush2.bf16.msra.mxu0 0
      %1078 = vmatprep.subr.bf16.mxu0 0
      %1079 = vmatpush2.bf16.msra.mxu0 0
      %1080 = vmatprep.subr.bf16.mxu0 0
      %1081 = vmatpush2.bf16.msra.mxu0 0
      %1082 = vmatprep.subr.bf16.mxu0 0
      %1083 = vmatpush2.bf16.msra.mxu0 0
      %1084 = vmatprep.mubr.bf16.mxu0 0
      %1085 = vmatmul.mubr.bf16.gmra.mxu0 %v1044
      %v1086 = vpop.f32.mrf.mxu0
      %v1087 = vadd.f32 0.0, %v1086
      %v1088 = vpop.f32.mrf.mxu0
      %v1089 = vpop.f32.mrf.mxu0
      %v1090 = vadd.f32 0.0, %v1089
      %v1091 = vpop.f32.mrf.mxu0
      %1092 = vmatprep.mubr.bf16.mxu0 0
      %1093 = vmatmul.mubr.bf16.gmra.mxu0 %v1047
      %v1094 = vpop.f32.mrf.mxu0
      %v1095 = vadd.f32 0.0, %v1094
      %v1096 = vpop.f32.mrf.mxu0
      %v1097 = vpop.f32.mrf.mxu0
      %v1098 = vadd.f32 0.0, %v1097
      %v1099 = vpop.f32.mrf.mxu0
      %1100 = vdwg.mxu0
      %v1101 = vadd.f32 %v1020, %v1087
      %v1102 = vadd.f32 %v1021, %v1090
      %v1103 = vadd.f32 %v1022, %v1095
      %v1104 = vadd.f32 %v1023, %v1098
      %v1106 = vrot.slane %v663, 5
      %v1107 = vrot.slane %v1106, 4
      %v1108 = vrot.slane %v664, 5
      %v1109 = vsel %vm869, %v1107, %v1108
      %s1110 = scalar_lea.vmem %s3, 10
      %v1111 = vld [vmem:[%s1110] sm:$0x3]
      %v1112 = vunpack.c.l.b16 %v1109
      %v1113 = vpack.c.b16 %v890, %v889
      %v1114 = vpack.c.b16 %v1112, %v891
      %v1116 = vsel %vm735, %v1113, 0
      %v1119 = vsel %vm735, %v1114, 0
      %v1122 = vsel %vm742, %v1111, 0
      %1124 = vmatprep.subr.bf16.mxu0 0
      %1125 = vmatpush1.bf16.msra.mxu0 0
      %1126 = vmatprep.subr.bf16.mxu0 0
      %1127 = vmatpush1.bf16.msra.mxu0 0
      %1128 = vmatprep.subr.bf16.mxu0 0
      %1129 = vmatpush1.bf16.msra.mxu0 0
      %1130 = vmatprep.subr.bf16.mxu0 0
      %1131 = vmatpush1.bf16.msra.mxu0 0
      %1132 = vmatprep.subr.bf16.mxu0 0
      %1133 = vmatpush1.bf16.msra.mxu0 0
      %1134 = vmatprep.subr.bf16.mxu0 0
      %1135 = vmatpush1.bf16.msra.mxu0 0
      %1136 = vmatprep.subr.bf16.mxu0 0
      %1137 = vmatpush1.bf16.msra.mxu0 0
      %1138 = vmatprep.subr.bf16.mxu0 0
      %1139 = vmatpush1.bf16.msra.mxu0 %v1122
      %1140 = vmatprep.subr.bf16.mxu0 0
      %1141 = vmatpush2.bf16.msra.mxu0 0
      %1142 = vmatprep.subr.bf16.mxu0 0
      %1143 = vmatpush2.bf16.msra.mxu0 0
      %1144 = vmatprep.subr.bf16.mxu0 0
      %1145 = vmatpush2.bf16.msra.mxu0 0
      %1146 = vmatprep.subr.bf16.mxu0 0
      %1147 = vmatpush2.bf16.msra.mxu0 0
      %1148 = vmatprep.subr.bf16.mxu0 0
      %1149 = vmatpush2.bf16.msra.mxu0 0
      %1150 = vmatprep.subr.bf16.mxu0 0
      %1151 = vmatpush2.bf16.msra.mxu0 0
      %1152 = vmatprep.subr.bf16.mxu0 0
      %1153 = vmatpush2.bf16.msra.mxu0 0
      %1154 = vmatprep.subr.bf16.mxu0 0
      %1155 = vmatpush2.bf16.msra.mxu0 0
      %1156 = vmatprep.mubr.bf16.mxu0 0
      %1157 = vmatmul.mubr.bf16.gmra.mxu0 %v1116
      %v1158 = vpop.f32.mrf.mxu0
      %v1159 = vadd.f32 0.0, %v1158
      %v1160 = vpop.f32.mrf.mxu0
      %v1161 = vpop.f32.mrf.mxu0
      %v1162 = vadd.f32 0.0, %v1161
      %v1163 = vpop.f32.mrf.mxu0
      %1164 = vmatprep.mubr.bf16.mxu0 0
      %1165 = vmatmul.mubr.bf16.gmra.mxu0 %v1119
      %v1166 = vpop.f32.mrf.mxu0
      %v1167 = vadd.f32 0.0, %v1166
      %v1168 = vpop.f32.mrf.mxu0
      %v1169 = vpop.f32.mrf.mxu0
      %v1170 = vadd.f32 0.0, %v1169
      %v1171 = vpop.f32.mrf.mxu0
      %1172 = vdwg.mxu0
      %v1173 = vadd.f32 %v1101, %v1159
      %v1174 = vadd.f32 %v1102, %v1162
      %v1175 = vadd.f32 %v1103, %v1167
      %v1176 = vadd.f32 %v1104, %v1170
      %s1177 = scalar_lea.vmem %s3, 12
      %v1178 = vld [vmem:[%s1177] sm:$0x3]
      %v1180 = vunpack.c.l.b16 %v665
      %v1181 = vpack.c.b16 %v1180, %v959
      %v1183 = vsel %vm735, %v1181, 0
      %v1186 = vsel %vm742, %v1178, 0
      %1188 = vmatprep.subr.bf16.mxu0 0
      %1189 = vmatpush1.bf16.msra.mxu0 0
      %1190 = vmatprep.subr.bf16.mxu0 0
      %1191 = vmatpush1.bf16.msra.mxu0 0
      %1192 = vmatprep.subr.bf16.mxu0 0
      %1193 = vmatpush1.bf16.msra.mxu0 0
      %1194 = vmatprep.subr.bf16.mxu0 0
      %1195 = vmatpush1.bf16.msra.mxu0 0
      %1196 = vmatprep.subr.bf16.mxu0 0
      %1197 = vmatpush1.bf16.msra.mxu0 0
      %1198 = vmatprep.subr.bf16.mxu0 0
      %1199 = vmatpush1.bf16.msra.mxu0 0
      %1200 = vmatprep.subr.bf16.mxu0 0
      %1201 = vmatpush1.bf16.msra.mxu0 0
      %1202 = vmatprep.subr.bf16.mxu0 0
      %1203 = vmatpush1.bf16.msra.mxu0 %v1186
      %1204 = vmatprep.subr.bf16.mxu0 0
      %1205 = vmatpush2.bf16.msra.mxu0 0
      %1206 = vmatprep.subr.bf16.mxu0 0
      %1207 = vmatpush2.bf16.msra.mxu0 0
      %1208 = vmatprep.subr.bf16.mxu0 0
      %1209 = vmatpush2.bf16.msra.mxu0 0
      %1210 = vmatprep.subr.bf16.mxu0 0
      %1211 = vmatpush2.bf16.msra.mxu0 0
      %1212 = vmatprep.subr.bf16.mxu0 0
      %1213 = vmatpush2.bf16.msra.mxu0 0
      %1214 = vmatprep.subr.bf16.mxu0 0
      %1215 = vmatpush2.bf16.msra.mxu0 0
      %1216 = vmatprep.subr.bf16.mxu0 0
      %1217 = vmatpush2.bf16.msra.mxu0 0
      %1218 = vmatprep.subr.bf16.mxu0 0
      %1219 = vmatpush2.bf16.msra.mxu0 0
      %1220 = vmatprep.mubr.bf16.mxu0 0
      %1221 = vmatmul.mubr.bf16.gmra.mxu0 %v809
      %v1222 = vpop.f32.mrf.mxu0
      %v1223 = vadd.f32 0.0, %v1222
      %v1224 = vpop.f32.mrf.mxu0
      %v1225 = vpop.f32.mrf.mxu0
      %v1226 = vadd.f32 0.0, %v1225
      %v1227 = vpop.f32.mrf.mxu0
      %1228 = vmatprep.mubr.bf16.mxu0 0
      %1229 = vmatmul.mubr.bf16.gmra.mxu0 %v1183
      %v1230 = vpop.f32.mrf.mxu0
      %v1231 = vadd.f32 0.0, %v1230
      %v1232 = vpop.f32.mrf.mxu0
      %v1233 = vpop.f32.mrf.mxu0
      %v1234 = vadd.f32 0.0, %v1233
      %v1235 = vpop.f32.mrf.mxu0
      %1236 = vdwg.mxu0
      %v1237 = vadd.f32 %v1173, %v1223
      %v1238 = vadd.f32 %v1174, %v1226
      %v1239 = vadd.f32 %v1175, %v1231
      %v1240 = vadd.f32 %v1176, %v1234
      %v1242 = vshrl.u32 %v665, 16
      %v1244 = vrot.slane %v1242, 4
      %v1245 = vshll.u32 %v665, 16
      %v1247 = vrot.slane %v1245, 5
      %v1248 = vor.u32 %v1244, %v1247
      %v1249 = vrot.slane %v1248, 4
      %v1251 = vshll.u32 %v666, 16
      %v1253 = vrot.slane %v1251, 5
      %v1254 = vsel %vm670, %v1249, %v1253
      %s1255 = scalar_lea.vmem %s3, 14
      %v1256 = vld [vmem:[%s1255] sm:$0x3]
      %v1257 = vunpack.c.l.b16 %v1254
      %v1258 = vpack.c.b16 %v1257, %v1040
      %v1260 = vsel %vm735, %v1258, 0
      %v1263 = vsel %vm742, %v1256, 0
      %1265 = vmatprep.subr.bf16.mxu0 0
      %1266 = vmatpush1.bf16.msra.mxu0 0
      %1267 = vmatprep.subr.bf16.mxu0 0
      %1268 = vmatpush1.bf16.msra.mxu0 0
      %1269 = vmatprep.subr.bf16.mxu0 0
      %1270 = vmatpush1.bf16.msra.mxu0 0
      %1271 = vmatprep.subr.bf16.mxu0 0
      %1272 = vmatpush1.bf16.msra.mxu0 0
      %1273 = vmatprep.subr.bf16.mxu0 0
      %1274 = vmatpush1.bf16.msra.mxu0 0
      %1275 = vmatprep.subr.bf16.mxu0 0
      %1276 = vmatpush1.bf16.msra.mxu0 0
      %1277 = vmatprep.subr.bf16.mxu0 0
      %1278 = vmatpush1.bf16.msra.mxu0 0
      %1279 = vmatprep.subr.bf16.mxu0 0
      %1280 = vmatpush1.bf16.msra.mxu0 %v1263
      %1281 = vmatprep.subr.bf16.mxu0 0
      %1282 = vmatpush2.bf16.msra.mxu0 0
      %1283 = vmatprep.subr.bf16.mxu0 0
      %1284 = vmatpush2.bf16.msra.mxu0 0
      %1285 = vmatprep.subr.bf16.mxu0 0
      %1286 = vmatpush2.bf16.msra.mxu0 0
      %1287 = vmatprep.subr.bf16.mxu0 0
      %1288 = vmatpush2.bf16.msra.mxu0 0
      %1289 = vmatprep.subr.bf16.mxu0 0
      %1290 = vmatpush2.bf16.msra.mxu0 0
      %1291 = vmatprep.subr.bf16.mxu0 0
      %1292 = vmatpush2.bf16.msra.mxu0 0
      %1293 = vmatprep.subr.bf16.mxu0 0
      %1294 = vmatpush2.bf16.msra.mxu0 0
      %1295 = vmatprep.subr.bf16.mxu0 0
      %1296 = vmatpush2.bf16.msra.mxu0 0
      %1297 = vmatprep.mubr.bf16.mxu0 0
      %1298 = vmatmul.mubr.bf16.gmra.mxu0 %v740
      %v1299 = vpop.f32.mrf.mxu0
      %v1300 = vadd.f32 0.0, %v1299
      %v1301 = vpop.f32.mrf.mxu0
      %v1302 = vpop.f32.mrf.mxu0
      %v1303 = vadd.f32 0.0, %v1302
      %v1304 = vpop.f32.mrf.mxu0
      %1305 = vmatprep.mubr.bf16.mxu0 0
      %1306 = vmatmul.mubr.bf16.gmra.mxu0 %v1260
      %v1307 = vpop.f32.mrf.mxu0
      %v1308 = vadd.f32 0.0, %v1307
      %v1309 = vpop.f32.mrf.mxu0
      %v1310 = vpop.f32.mrf.mxu0
      %v1311 = vadd.f32 0.0, %v1310
      %v1312 = vpop.f32.mrf.mxu0
      %1313 = vdwg.mxu0
      %v1314 = vadd.f32 %v1237, %v1300
      %v1315 = vadd.f32 %v1238, %v1303
      %v1316 = vadd.f32 %v1239, %v1308
      %v1317 = vadd.f32 %v1240, %v1311
      %v1319 = vrot.slane %v665, 5
      %v1320 = vrot.slane %v1319, 4
      %v1321 = vrot.slane %v666, 5
      %v1322 = vsel %vm869, %v1320, %v1321
      %s1323 = scalar_lea.vmem %s3, 16
      %v1324 = vld [vmem:[%s1323] sm:$0x3]
      %v1325 = vunpack.c.l.b16 %v1322
      %v1326 = vpack.c.b16 %v1325, %v1112
      %v1328 = vsel %vm735, %v1326, 0
      %v1331 = vsel %vm742, %v1324, 0
      %1333 = vmatprep.subr.bf16.mxu0 0
      %1334 = vmatpush1.bf16.msra.mxu0 0
      %1335 = vmatprep.subr.bf16.mxu0 0
      %1336 = vmatpush1.bf16.msra.mxu0 0
      %1337 = vmatprep.subr.bf16.mxu0 0
      %1338 = vmatpush1.bf16.msra.mxu0 0
      %1339 = vmatprep.subr.bf16.mxu0 0
      %1340 = vmatpush1.bf16.msra.mxu0 0
      %1341 = vmatprep.subr.bf16.mxu0 0
      %1342 = vmatpush1.bf16.msra.mxu0 0
      %1343 = vmatprep.subr.bf16.mxu0 0
      %1344 = vmatpush1.bf16.msra.mxu0 0
      %1345 = vmatprep.subr.bf16.mxu0 0
      %1346 = vmatpush1.bf16.msra.mxu0 0
      %1347 = vmatprep.subr.bf16.mxu0 0
      %1348 = vmatpush1.bf16.msra.mxu0 %v1331
      %1349 = vmatprep.subr.bf16.mxu0 0
      %1350 = vmatpush2.bf16.msra.mxu0 0
      %1351 = vmatprep.subr.bf16.mxu0 0
      %1352 = vmatpush2.bf16.msra.mxu0 0
      %1353 = vmatprep.subr.bf16.mxu0 0
      %1354 = vmatpush2.bf16.msra.mxu0 0
      %1355 = vmatprep.subr.bf16.mxu0 0
      %1356 = vmatpush2.bf16.msra.mxu0 0
      %1357 = vmatprep.subr.bf16.mxu0 0
      %1358 = vmatpush2.bf16.msra.mxu0 0
      %1359 = vmatprep.subr.bf16.mxu0 0
      %1360 = vmatpush2.bf16.msra.mxu0 0
      %1361 = vmatprep.subr.bf16.mxu0 0
      %1362 = vmatpush2.bf16.msra.mxu0 0
      %1363 = vmatprep.subr.bf16.mxu0 0
      %1364 = vmatpush2.bf16.msra.mxu0 0
      %1365 = vmatprep.mubr.bf16.mxu0 0
      %1366 = vmatmul.mubr.bf16.gmra.mxu0 %v898
      %v1367 = vpop.f32.mrf.mxu0
      %v1368 = vadd.f32 0.0, %v1367
      %v1369 = vpop.f32.mrf.mxu0
      %v1370 = vpop.f32.mrf.mxu0
      %v1371 = vadd.f32 0.0, %v1370
      %v1372 = vpop.f32.mrf.mxu0
      %1373 = vmatprep.mubr.bf16.mxu0 0
      %1374 = vmatmul.mubr.bf16.gmra.mxu0 %v1328
      %v1375 = vpop.f32.mrf.mxu0
      %v1376 = vadd.f32 0.0, %v1375
      %v1377 = vpop.f32.mrf.mxu0
      %v1378 = vpop.f32.mrf.mxu0
      %v1379 = vadd.f32 0.0, %v1378
      %v1380 = vpop.f32.mrf.mxu0
      %1381 = vdwg.mxu0
      %v1382 = vadd.f32 %v1314, %v1368
      %v1383 = vadd.f32 %v1315, %v1371
      %v1384 = vadd.f32 %v1316, %v1376
      %v1385 = vadd.f32 %v1317, %v1379
      %v1386 = vpack.c.bf16 %v1382, %v1382
      %v1387 = vpack.c.bf16 %v1383, %v1383
      %v1388 = vpack.c.bf16 %v1384, %v1384
      %v1389 = vpack.c.bf16 %v1385, %v1385
      %1390 = vst [vmem:[%s439] sm:$0xf] %v1386
      %1391 = vst [vmem:[%s439 + $0x4] sm:$0xf] %v1387
      %1392 = vst [vmem:[%s439 + $0x8] sm:$0xf] %v1388
      %1393 = vst [vmem:[%s439 + $0xc] sm:$0xf] %v1389
      %v1394 = vadd.f32 %v1382, %v1383
      %v1395 = vadd.f32 %v1394, %v1384
      %v1396 = vadd.f32 %v1395, %v1385
      %v1397 = vrot.slane %v1396, 4
      %v1398 = vadd.f32 %v1396, %v1397
      %v1399 = vrot.slane %v1398, 2
      %v1400 = vadd.f32 %v1398, %v1399
      %v1401 = vrot.slane %v1400, 1
      %v1402 = vadd.f32 %v1400, %v1401
      %v1403 = vmul.f32 %v1402, 0.03125
      %v1404 = vsub.f32 %v1382, %v1403
      %v1405 = vsub.f32 %v1383, %v1403
      %v1406 = vsub.f32 %v1384, %v1403
      %v1407 = vsub.f32 %v1385, %v1403
      %v1408 = vmul.f32 %v1404, %v1404
      %v1409 = vmul.f32 %v1405, %v1405
      %v1410 = vmul.f32 %v1406, %v1406
      %v1411 = vmul.f32 %v1407, %v1407
      %v1412 = vadd.f32 %v1408, %v1409
      %v1413 = vadd.f32 %v1412, %v1410
      %v1414 = vadd.f32 %v1413, %v1411
      %v1415 = vrot.slane %v1414, 4
      %v1416 = vadd.f32 %v1414, %v1415
      %v1417 = vrot.slane %v1416, 2
      %v1418 = vadd.f32 %v1416, %v1417
      %v1419 = vrot.slane %v1418, 1
      %v1420 = vadd.f32 %v1418, %v1419
      %1421 = vst [vmem:[%s447] sm:$0x1] %v1402
      %1422 = vst [vmem:[%s454] sm:$0x1] %v1420
      %s1423 = smul.u32 4, %s23
      %p1424 = scmp.lt.s32.totalorder %s22, 1
      %s1425 = scalar_select %p1424, %s22, 1
      %p1426 = scmp.lt.s32.totalorder %s1423, 7
      %s1427 = scalar_select %p1426, %s1423, 7
      %s1428 = smul.addr %s1425, 8
      %s1429 = sadd.s32 %s1427, %s1428
      %s1430 = smul.addr %s1429, 4
      %s1431 = scalar_lea.vmem %s4, %s1430
      %p1432 = scmp.lt.s32.totalorder %s22, 1
      %s1433 = scalar_select %p1432, %s22, 1
      %p1434 = scmp.lt.s32.totalorder %s23, 1
      %s1435 = scalar_select %p1434, %s23, 1
      %s1436 = smul.addr %s1433, 2
      %s1437 = sadd.s32 %s1435, %s1436
      %s1438 = scalar_lea.vmem %s5, %s1437
      %p1439 = scmp.lt.s32.totalorder %s22, 1
      %s1440 = scalar_select %p1439, %s22, 1
      %p1441 = scmp.lt.s32.totalorder %s23, 1
      %s1442 = scalar_select %p1441, %s23, 1
      %s1443 = smul.addr %s1440, 2
      %s1444 = sadd.s32 %s1442, %s1443
      %s1445 = scalar_lea.vmem %s6, %s1444
      // Predicated region
      $region37: #{down_forward.3} parent=35 // pred_check
        %p1446 = pneg %p171
      $region38: #{down_forward.3} parent=35 // pred_check_branch
        %1448 = sbr.rel (%p1446) target = $region40
      $region39: #{down_forward.3} parent=35 // pred_region
        %s1449 = smul.u32 4, %s23
      $region40: #{down_forward.3} parent=35 // pred_fallthru
        _
      // Predicated region
      $region41: #{down_forward.3} parent=35 // pred_check
        %p1450 = pneg %p199
      $region42: #{down_forward.3} parent=35 // pred_check_branch
        %1452 = sbr.rel (%p1450) target = $region44
      $region43: #{down_forward.3} parent=35 // pred_region
        _
      $region44: #{down_forward.3} parent=35 // pred_fallthru
        _
      // Predicated region
      $region45: #{down_forward.3} parent=35 // pred_check
        %p1453 = pneg %p227
      $region46: #{down_forward.3} parent=35 // pred_check_branch
        %1455 = sbr.rel (%p1453) target = $region48
      $region47: #{down_forward.3} parent=35 // pred_region
        _
      $region48: #{down_forward.3} parent=35 // pred_fallthru
        _
    $region36: #{down_forward.3} parent=5 // pred_fallthru
      _
    %p1456 = scmp.le.s32.totalorder 2, %s13
    // Predicated region
    $region49: #{down_forward.3} parent=5 // pred_check
      %p1457 = pneg %p1456
    $region50: #{down_forward.3} parent=5 // pred_check_branch
      %1459 = sbr.rel (%p1457) target = $region52
    $region51: #{down_forward.3} parent=5 // pred_region
      %s1460 = ssub.s32 %s13, 2
      // Predicated region
      $region53: #{down_forward.3} parent=51 // pred_check
        %p1461 = pneg %p177
      $region54: #{down_forward.3} parent=51 // pred_check_branch
        %1463 = sbr.rel (%p1461) target = $region56
      $region55: #{down_forward.3} parent=51 // pred_region
        %s1464 = smul.u32 4, %s25
        %p1465 = scmp.lt.s32.totalorder %s24, 1
        %s1466 = scalar_select %p1465, %s24, 1
        %p1467 = scmp.lt.s32.totalorder %s1464, 7
        %s1468 = scalar_select %p1467, %s1464, 7
        %s1469 = smul.addr %s1466, 8
        %s1470 = sadd.s32 %s1468, %s1469
        %s1471 = smul.addr %s1470, 4
        %s1472 = scalar_lea.vmem %s4, %s1471
      $region56: #{down_forward.3} parent=51 // pred_fallthru
        _
      // Predicated region
      $region57: #{down_forward.3} parent=51 // pred_check
        %p1473 = pneg %p205
      $region58: #{down_forward.3} parent=51 // pred_check_branch
        %1475 = sbr.rel (%p1473) target = $region60
      $region59: #{down_forward.3} parent=51 // pred_region
        %p1476 = scmp.lt.s32.totalorder %s24, 1
        %s1477 = scalar_select %p1476, %s24, 1
        %p1478 = scmp.lt.s32.totalorder %s25, 1
        %s1479 = scalar_select %p1478, %s25, 1
        %s1480 = smul.addr %s1477, 2
        %s1481 = sadd.s32 %s1479, %s1480
        %s1482 = scalar_lea.vmem %s5, %s1481
      $region60: #{down_forward.3} parent=51 // pred_fallthru
        _
      // Predicated region
      $region61: #{down_forward.3} parent=51 // pred_check
        %p1483 = pneg %p233
      $region62: #{down_forward.3} parent=51 // pred_check_branch
        %1485 = sbr.rel (%p1483) target = $region64
      $region63: #{down_forward.3} parent=51 // pred_region
        %p1486 = scmp.lt.s32.totalorder %s24, 1
        %s1487 = scalar_select %p1486, %s24, 1
        %p1488 = scmp.lt.s32.totalorder %s25, 1
        %s1489 = scalar_select %p1488, %s25, 1
        %s1490 = smul.addr %s1487, 2
        %s1491 = sadd.s32 %s1489, %s1490
        %s1492 = scalar_lea.vmem %s6, %s1491
      $region64: #{down_forward.3} parent=51 // pred_fallthru
        _
    $region52: #{down_forward.3} parent=5 // pred_fallthru
      _
  $region6: #{down_forward.3} parent=0 // loop_footer
    %s17 = sadd.s32 1, %s13
  $region7: #{down_forward.3} parent=0 // loop_footer_branch
    %12 = sbr.rel target = $region3
  $region8: #{down_forward.3} parent=0 // loop_exit
    _

// kernel: down_forward.4
$region0: #{down_forward.4}
  #allocation0 [shape = 'u32[]', space=smem, size = 0x4, offset = 0x4, fixed_abs, tag = 'smem constant byte address 0x4 - core index']
  #allocation1 [shape = 'u32[144,128]{1,0:T(1,128)}', space=vmem, size = 0x12000, scoped, tag = 'internal scratch']
  #allocation2 [shape = 'bf16[6,10,128]{2,1,0:T(8,128)(2,1)}', space=vmem, size = 0x6000, scoped, tag = 'scratch operand']
  %s0 = inlined_call_operand.vmem [shape: bf16[2,8,8,128], index: 0, kind: input, shape index: {}, may-alias: {0,1,2}]
  %s1 = inlined_call_operand.vmem [shape: bf16[2,8,8,128], index: 1, kind: input, shape index: {}, may-alias: {0,1,2}]
  %s2 = inlined_call_operand.vmem [shape: bf16[2,8,8,128], index: 2, kind: input, shape index: {}, may-alias: {0,1,2}]
  %s3 = inlined_call_operand.vmem [shape: f32[1,128], index: 3, kind: input, shape index: {}]
  %s4 = inlined_call_operand.vmem [shape: f32[1,128], index: 4, kind: input, shape index: {}]
  %s5 = inlined_call_operand.vmem [shape: bf16[9,128,128], index: 5, kind: input, shape index: {}]
  %s6 = inlined_call_operand.vmem [shape: bf16[2,8,8,128], index: 6, kind: output, shape index: {0}]
  %s7 = inlined_call_operand.vmem [shape: f32[2,2,1,128], index: 7, kind: output, shape index: {1}]
  %s8 = inlined_call_operand.vmem [shape: f32[2,2,1,128], index: 8, kind: output, shape index: {2}]
  %9 = xla_tuple %s6, %s7, %s8
  %s10 = sld [smem:[#allocation0]]
  $region73: #{down_forward.4} parent=0
    _
  %s12 = ssub.s32 1, %s10
  %s13 = scalar_select 0, %s12, %s10
  loop: start=0, step=1, limit=6
  $region2: #{down_forward.4} parent=0 // loop_pre_header
    _
  $region3: #{down_forward.4} parent=0 // loop_header
    %s15 = sphi 0, %s19
    %p16 = scmp.ge.s32.totalorder %s15, 6
    %s22 = sphi 0, %s34
    %s23 = sphi 0, %s30
    %s24 = sphi 0, %s22
    %s25 = sphi 0, %s23
    %s26 = sphi 0, %s24
    %s27 = sphi 0, %s25
    %s39 = sphi 0, %s41
    %s42 = sphi 0, %s39
    %s43 = sphi 0, %s42
    %s59 = sphi 0, %s43
    %s75 = sphi 0, %s77
    %s78 = sphi 0, %s75
    %s79 = sphi 0, %s78
    %s95 = sphi 0, %s79
    %s111 = sphi 0, %s113
    %s114 = sphi 0, %s111
    %s115 = sphi 0, %s114
    %s131 = sphi 0, %s115
    %s135 = sphi 0, %s135
    %s137 = sphi 0, %s135
    %s138 = sphi 0, %s137
    %s152 = sphi 0, %s138
    %s156 = sphi 0, %s156
    %s158 = sphi 0, %s156
    %s159 = sphi 0, %s158
    %s173 = sphi 0, %s159
    %s177 = sphi 0, %s177
    %s179 = sphi 0, %s177
    %s180 = sphi 0, %s179
    %s194 = sphi 0, %s180
    %s202 = sphi 0, %s204
    %s205 = sphi 0, %s202
    %s206 = sphi 0, %s205
    %s222 = sphi 0, %s206
    %s230 = sphi 0, %s232
    %s233 = sphi 0, %s230
    %s234 = sphi 0, %s233
    %s250 = sphi 0, %s234
    %s258 = sphi 0, %s260
    %s261 = sphi 0, %s258
    %s262 = sphi 0, %s261
    %s278 = sphi 0, %s262
  $region4: #{down_forward.4} parent=0 // loop_header_branch
    %18 = sbr.rel (%p16) target = $region8
  $region5: #{down_forward.4} parent=0 // loop_body
    %s20 = ssub.s32 %s15, 1
    %s21 = ssub.s32 %s15, 2
    %s28 = sadd.s32 1, %s23
    %p29 = scmp.ge.s32.totalorder %s28, 2
    %s30 = scalar_select %p29, 0, %s28
    %s31 = sadd.s32 1, %s22
    %s32 = scalar_select %p29, %s31, %s22
    %p33 = scmp.ge.s32.totalorder %s32, 2
    %s34 = scalar_select %p33, 0, %s32
    %s35 = ssub.s32 %s22, %s34
    %s36 = ssub.s32 %s23, %s30
    %s37 = sor.u32 %s35, %s36
    %p38 = scmp.eq.s32.totalorder %s37, 0
    %s40 = sadd.s32 %s39, 1
    %s41 = scalar_select %p38, %s39, %s40
    %p44 = pneg %p38
    %p45 = scmp.eq.s32.totalorder %s15, 3
    %p46 = por %p44, %p45
    %p47 = scmp.ne.s32.totalorder %s39, %s42
    %p48 = scmp.eq.s32.totalorder %s15, 0
    %p49 = por %p47, %p48
    %p50 = scmp.ne.s32.totalorder %s39, %s42
    %p51 = scmp.eq.s32.totalorder %s20, 3
    %p52 = por %p50, %p51
    %p53 = scmp.ne.s32.totalorder %s42, %s43
    %p54 = scmp.eq.s32.totalorder %s20, 0
    %p55 = por %p53, %p54
    %p56 = scmp.ne.s32.totalorder %s42, %s43
    %p57 = scmp.eq.s32.totalorder %s21, 3
    %p58 = por %p56, %p57
    %p60 = scmp.ne.s32.totalorder %s43, %s59
    %p61 = scmp.eq.s32.totalorder %s21, 0
    %p62 = por %p60, %p61
    %s63 = smul.u32 %s23, 4
    %s64 = ssub.s32 %s63, 1
    %p65 = scmp.gt.s32.totalorder %s64, 0
    %s66 = scalar_select %p65, %s64, 0
    %s67 = smul.u32 %s30, 4
    %s68 = ssub.s32 %s67, 1
    %p69 = scmp.gt.s32.totalorder %s68, 0
    %s70 = scalar_select %p69, %s68, 0
    %s71 = ssub.s32 %s22, %s34
    %s72 = ssub.s32 %s66, %s70
    %s73 = sor.u32 %s71, %s72
    %p74 = scmp.eq.s32.totalorder %s73, 0
    %s76 = sadd.s32 %s75, 1
    %s77 = scalar_select %p74, %s75, %s76
    %p80 = pneg %p74
    %p81 = scmp.eq.s32.totalorder %s15, 3
    %p82 = por %p80, %p81
    %p83 = scmp.ne.s32.totalorder %s75, %s78
    %p84 = scmp.eq.s32.totalorder %s15, 0
    %p85 = por %p83, %p84
    %p86 = scmp.ne.s32.totalorder %s75, %s78
    %p87 = scmp.eq.s32.totalorder %s20, 3
    %p88 = por %p86, %p87
    %p89 = scmp.ne.s32.totalorder %s78, %s79
    %p90 = scmp.eq.s32.totalorder %s20, 0
    %p91 = por %p89, %p90
    %p92 = scmp.ne.s32.totalorder %s78, %s79
    %p93 = scmp.eq.s32.totalorder %s21, 3
    %p94 = por %p92, %p93
    %p96 = scmp.ne.s32.totalorder %s79, %s95
    %p97 = scmp.eq.s32.totalorder %s21, 0
    %p98 = por %p96, %p97
    %s99 = smul.u32 %s23, 4
    %s100 = sadd.s32 %s99, 4
    %p101 = scmp.lt.s32.totalorder %s100, 7
    %s102 = scalar_select %p101, %s100, 7
    %s103 = smul.u32 %s30, 4
    %s104 = sadd.s32 %s103, 4
    %p105 = scmp.lt.s32.totalorder %s104, 7
    %s106 = scalar_select %p105, %s104, 7
    %s107 = ssub.s32 %s22, %s34
    %s108 = ssub.s32 %s102, %s106
    %s109 = sor.u32 %s107, %s108
    %p110 = scmp.eq.s32.totalorder %s109, 0
    %s112 = sadd.s32 %s111, 1
    %s113 = scalar_select %p110, %s111, %s112
    %p116 = pneg %p110
    %p117 = scmp.eq.s32.totalorder %s15, 3
    %p118 = por %p116, %p117
    %p119 = scmp.ne.s32.totalorder %s111, %s114
    %p120 = scmp.eq.s32.totalorder %s15, 0
    %p121 = por %p119, %p120
    %p122 = scmp.ne.s32.totalorder %s111, %s114
    %p123 = scmp.eq.s32.totalorder %s20, 3
    %p124 = por %p122, %p123
    %p125 = scmp.ne.s32.totalorder %s114, %s115
    %p126 = scmp.eq.s32.totalorder %s20, 0
    %p127 = por %p125, %p126
    %p128 = scmp.ne.s32.totalorder %s114, %s115
    %p129 = scmp.eq.s32.totalorder %s21, 3
    %p130 = por %p128, %p129
    %p132 = scmp.ne.s32.totalorder %s115, %s131
    %p133 = scmp.eq.s32.totalorder %s21, 0
    %p134 = por %p132, %p133
    %s136 = sadd.s32 %s135, 1
    %p139 = scmp.eq.s32.totalorder %s15, 3
    %p140 = scmp.ne.s32.totalorder %s135, %s137
    %p141 = scmp.eq.s32.totalorder %s15, 0
    %p142 = por %p140, %p141
    %p143 = scmp.ne.s32.totalorder %s135, %s137
    %p144 = scmp.eq.s32.totalorder %s20, 3
    %p145 = por %p143, %p144
    %p146 = scmp.ne.s32.totalorder %s137, %s138
    %p147 = scmp.eq.s32.totalorder %s20, 0
    %p148 = por %p146, %p147
    %p149 = scmp.ne.s32.totalorder %s137, %s138
    %p150 = scmp.eq.s32.totalorder %s21, 3
    %p151 = por %p149, %p150
    %p153 = scmp.ne.s32.totalorder %s138, %s152
    %p154 = scmp.eq.s32.totalorder %s21, 0
    %p155 = por %p153, %p154
    %s157 = sadd.s32 %s156, 1
    %p160 = scmp.eq.s32.totalorder %s15, 3
    %p161 = scmp.ne.s32.totalorder %s156, %s158
    %p162 = scmp.eq.s32.totalorder %s15, 0
    %p163 = por %p161, %p162
    %p164 = scmp.ne.s32.totalorder %s156, %s158
    %p165 = scmp.eq.s32.totalorder %s20, 3
    %p166 = por %p164, %p165
    %p167 = scmp.ne.s32.totalorder %s158, %s159
    %p168 = scmp.eq.s32.totalorder %s20, 0
    %p169 = por %p167, %p168
    %p170 = scmp.ne.s32.totalorder %s158, %s159
    %p171 = scmp.eq.s32.totalorder %s21, 3
    %p172 = por %p170, %p171
    %p174 = scmp.ne.s32.totalorder %s159, %s173
    %p175 = scmp.eq.s32.totalorder %s21, 0
    %p176 = por %p174, %p175
    %s178 = sadd.s32 %s177, 1
    %p181 = scmp.eq.s32.totalorder %s15, 3
    %p182 = scmp.ne.s32.totalorder %s177, %s179
    %p183 = scmp.eq.s32.totalorder %s15, 0
    %p184 = por %p182, %p183
    %p185 = scmp.ne.s32.totalorder %s177, %s179
    %p186 = scmp.eq.s32.totalorder %s20, 3
    %p187 = por %p185, %p186
    %p188 = scmp.ne.s32.totalorder %s179, %s180
    %p189 = scmp.eq.s32.totalorder %s20, 0
    %p190 = por %p188, %p189
    %p191 = scmp.ne.s32.totalorder %s179, %s180
    %p192 = scmp.eq.s32.totalorder %s21, 3
    %p193 = por %p191, %p192
    %p195 = scmp.ne.s32.totalorder %s180, %s194
    %p196 = scmp.eq.s32.totalorder %s21, 0
    %p197 = por %p195, %p196
    %s198 = ssub.s32 %s22, %s34
    %s199 = ssub.s32 %s23, %s30
    %s200 = sor.u32 %s198, %s199
    %p201 = scmp.eq.s32.totalorder %s200, 0
    %s203 = sadd.s32 %s202, 1
    %s204 = scalar_select %p201, %s202, %s203
    %p207 = pneg %p201
    %p208 = scmp.eq.s32.totalorder %s15, 3
    %p209 = por %p207, %p208
    %p210 = scmp.ne.s32.totalorder %s202, %s205
    %p211 = scmp.eq.s32.totalorder %s15, 0
    %p212 = por %p210, %p211
    %p213 = scmp.ne.s32.totalorder %s202, %s205
    %p214 = scmp.eq.s32.totalorder %s20, 3
    %p215 = por %p213, %p214
    %p216 = scmp.ne.s32.totalorder %s205, %s206
    %p217 = scmp.eq.s32.totalorder %s20, 0
    %p218 = por %p216, %p217
    %p219 = scmp.ne.s32.totalorder %s205, %s206
    %p220 = scmp.eq.s32.totalorder %s21, 3
    %p221 = por %p219, %p220
    %p223 = scmp.ne.s32.totalorder %s206, %s222
    %p224 = scmp.eq.s32.totalorder %s21, 0
    %p225 = por %p223, %p224
    %s226 = ssub.s32 %s22, %s34
    %s227 = ssub.s32 %s23, %s30
    %s228 = sor.u32 %s226, %s227
    %p229 = scmp.eq.s32.totalorder %s228, 0
    %s231 = sadd.s32 %s230, 1
    %s232 = scalar_select %p229, %s230, %s231
    %p235 = pneg %p229
    %p236 = scmp.eq.s32.totalorder %s15, 3
    %p237 = por %p235, %p236
    %p238 = scmp.ne.s32.totalorder %s230, %s233
    %p239 = scmp.eq.s32.totalorder %s15, 0
    %p240 = por %p238, %p239
    %p241 = scmp.ne.s32.totalorder %s230, %s233
    %p242 = scmp.eq.s32.totalorder %s20, 3
    %p243 = por %p241, %p242
    %p244 = scmp.ne.s32.totalorder %s233, %s234
    %p245 = scmp.eq.s32.totalorder %s20, 0
    %p246 = por %p244, %p245
    %p247 = scmp.ne.s32.totalorder %s233, %s234
    %p248 = scmp.eq.s32.totalorder %s21, 3
    %p249 = por %p247, %p248
    %p251 = scmp.ne.s32.totalorder %s234, %s250
    %p252 = scmp.eq.s32.totalorder %s21, 0
    %p253 = por %p251, %p252
    %s254 = ssub.s32 %s22, %s34
    %s255 = ssub.s32 %s23, %s30
    %s256 = sor.u32 %s254, %s255
    %p257 = scmp.eq.s32.totalorder %s256, 0
    %s259 = sadd.s32 %s258, 1
    %s260 = scalar_select %p257, %s258, %s259
    %p263 = pneg %p257
    %p264 = scmp.eq.s32.totalorder %s15, 3
    %p265 = por %p263, %p264
    %p266 = scmp.ne.s32.totalorder %s258, %s261
    %p267 = scmp.eq.s32.totalorder %s15, 0
    %p268 = por %p266, %p267
    %p269 = scmp.ne.s32.totalorder %s258, %s261
    %p270 = scmp.eq.s32.totalorder %s20, 3
    %p271 = por %p269, %p270
    %p272 = scmp.ne.s32.totalorder %s261, %s262
    %p273 = scmp.eq.s32.totalorder %s20, 0
    %p274 = por %p272, %p273
    %p275 = scmp.ne.s32.totalorder %s261, %s262
    %p276 = scmp.eq.s32.totalorder %s21, 3
    %p277 = por %p275, %p276
    %p279 = scmp.ne.s32.totalorder %s262, %s278
    %p280 = scmp.eq.s32.totalorder %s21, 0
    %p281 = por %p279, %p280
    %p282 = scmp.le.s32.totalorder 1, %s15
    %p283 = scmp.lt.s32.totalorder %s15, 5
    %p284 = pnand %p282, %p283
    %p285 = pneg %p284
    // Predicated region
    $region9: #{down_forward.4} parent=5 // pred_check
      _
    $region10: #{down_forward.4} parent=5 // pred_check_branch
      %287 = sbr.rel (%p284) target = $region12
    $region11: #{down_forward.4} parent=5 // pred_region
      %s288 = ssub.s32 %s15, 1
      // Predicated region
      $region13: #{down_forward.4} parent=11 // pred_check
        %p289 = pneg %p148
      $region14: #{down_forward.4} parent=11 // pred_check_branch
        %291 = sbr.rel (%p289) target = $region16
      $region15: #{down_forward.4} parent=11 // pred_region
        _
      $region16: #{down_forward.4} parent=11 // pred_fallthru
        _
      // Predicated region
      $region17: #{down_forward.4} parent=11 // pred_check
        %p292 = pneg %p169
      $region18: #{down_forward.4} parent=11 // pred_check_branch
        %294 = sbr.rel (%p292) target = $region20
      $region19: #{down_forward.4} parent=11 // pred_region
        _
      $region20: #{down_forward.4} parent=11 // pred_fallthru
        _
      // Predicated region
      $region21: #{down_forward.4} parent=11 // pred_check
        %p295 = pneg %p190
      $region22: #{down_forward.4} parent=11 // pred_check_branch
        %297 = sbr.rel (%p295) target = $region24
      $region23: #{down_forward.4} parent=11 // pred_region
        _
      $region24: #{down_forward.4} parent=11 // pred_fallthru
        _
    $region12: #{down_forward.4} parent=5 // pred_fallthru
      _
    %p298 = scmp.lt.s32.totalorder %s15, 4
    // Predicated region
    $region25: #{down_forward.4} parent=5 // pred_check
      %p299 = pneg %p298
    $region26: #{down_forward.4} parent=5 // pred_check_branch
      %301 = sbr.rel (%p299) target = $region28
    $region27: #{down_forward.4} parent=5 // pred_region
      // Predicated region
      $region29: #{down_forward.4} parent=27 // pred_check
        %p302 = pneg %p49
      $region30: #{down_forward.4} parent=27 // pred_check_branch
        %304 = sbr.rel (%p302) target = $region32
      $region31: #{down_forward.4} parent=27 // pred_region
        %s305 = smul.u32 4, %s23
        %p306 = scmp.lt.s32.totalorder %s22, 1
        %s307 = scalar_select %p306, %s22, 1
        %p308 = scmp.lt.s32.totalorder %s305, 7
        %s309 = scalar_select %p308, %s305, 7
        %s310 = smul.addr %s307, 8
        %s311 = sadd.s32 %s309, %s310
        %s312 = smul.addr %s311, 4
        %s313 = scalar_lea.vmem %s0, %s312
        %s314 = smul.u32 4, %s23
      $region32: #{down_forward.4} parent=27 // pred_fallthru
        _
      // Predicated region
      $region33: #{down_forward.4} parent=27 // pred_check
        %p315 = pneg %p85
      $region34: #{down_forward.4} parent=27 // pred_check_branch
        %317 = sbr.rel (%p315) target = $region36
      $region35: #{down_forward.4} parent=27 // pred_region
        %s318 = smul.u32 %s23, 4
        %s319 = ssub.s32 %s318, 1
        %p320 = scmp.gt.s32.totalorder %s319, 0
        %s321 = scalar_select %p320, %s319, 0
        %p322 = scmp.lt.s32.totalorder %s22, 1
        %s323 = scalar_select %p322, %s22, 1
        %p324 = scmp.lt.s32.totalorder %s321, 7
        %s325 = scalar_select %p324, %s321, 7
        %s326 = smul.addr %s323, 8
        %s327 = sadd.s32 %s325, %s326
        %s328 = smul.addr %s327, 4
        %s329 = scalar_lea.vmem %s1, %s328
        %s330 = smul.u32 %s23, 4
        %s331 = ssub.s32 %s330, 1
        %p332 = scmp.gt.s32.totalorder %s331, 0
        %s333 = scalar_select %p332, %s331, 0
      $region36: #{down_forward.4} parent=27 // pred_fallthru
        _
      // Predicated region
      $region37: #{down_forward.4} parent=27 // pred_check
        %p334 = pneg %p121
      $region38: #{down_forward.4} parent=27 // pred_check_branch
        %336 = sbr.rel (%p334) target = $region40
      $region39: #{down_forward.4} parent=27 // pred_region
        %s337 = smul.u32 %s23, 4
        %s338 = sadd.s32 %s337, 4
        %p339 = scmp.lt.s32.totalorder %s338, 7
        %s340 = scalar_select %p339, %s338, 7
        %p341 = scmp.lt.s32.totalorder %s22, 1
        %s342 = scalar_select %p341, %s22, 1
        %p343 = scmp.lt.s32.totalorder %s340, 7
        %s344 = scalar_select %p343, %s340, 7
        %s345 = smul.addr %s342, 8
        %s346 = sadd.s32 %s344, %s345
        %s347 = smul.addr %s346, 4
        %s348 = scalar_lea.vmem %s2, %s347
        %s349 = smul.u32 %s23, 4
        %s350 = sadd.s32 %s349, 4
        %p351 = scmp.lt.s32.totalorder %s350, 7
        %s352 = scalar_select %p351, %s350, 7
      $region40: #{down_forward.4} parent=27 // pred_fallthru
        _
    $region28: #{down_forward.4} parent=5 // pred_fallthru
      _
    %p353 = scmp.le.s32.totalorder 1, %s15
    %p354 = scmp.lt.s32.totalorder %s15, 5
    %p355 = pnand %p353, %p354
    %p356 = pneg %p355
    // Predicated region
    $region41: #{down_forward.4} parent=5 // pred_check
      _
    $region42: #{down_forward.4} parent=5 // pred_check_branch
      %358 = sbr.rel (%p355) target = $region44
    $region43: #{down_forward.4} parent=5 // pred_region
      %s359 = ssub.s32 %s15, 1
      %s360 = smul.u32 4, %s25
      %p361 = scmp.lt.s32.totalorder %s24, 1
      %s362 = scalar_select %p361, %s24, 1
      %p363 = scmp.lt.s32.totalorder %s360, 7
      %s364 = scalar_select %p363, %s360, 7
      %s365 = smul.addr %s362, 8
      %s366 = sadd.s32 %s364, %s365
      %s367 = smul.addr %s366, 4
      %s368 = scalar_lea.vmem %s0, %s367
      %p369 = pneg %p55
      %p370 = pneg %p52
      %s371 = smul.u32 %s25, 4
      %s372 = ssub.s32 %s371, 1
      %p373 = scmp.gt.s32.totalorder %s372, 0
      %s374 = scalar_select %p373, %s372, 0
      %p375 = scmp.lt.s32.totalorder %s24, 1
      %s376 = scalar_select %p375, %s24, 1
      %p377 = scmp.lt.s32.totalorder %s374, 7
      %s378 = scalar_select %p377, %s374, 7
      %s379 = smul.addr %s376, 8
      %s380 = sadd.s32 %s378, %s379
      %s381 = smul.addr %s380, 4
      %s382 = scalar_lea.vmem %s1, %s381
      %p383 = pneg %p91
      %p384 = pneg %p88
      %s385 = smul.u32 %s25, 4
      %s386 = sadd.s32 %s385, 4
      %p387 = scmp.lt.s32.totalorder %s386, 7
      %s388 = scalar_select %p387, %s386, 7
      %p389 = scmp.lt.s32.totalorder %s24, 1
      %s390 = scalar_select %p389, %s24, 1
      %p391 = scmp.lt.s32.totalorder %s388, 7
      %s392 = scalar_select %p391, %s388, 7
      %s393 = smul.addr %s390, 8
      %s394 = sadd.s32 %s392, %s393
      %s395 = smul.addr %s394, 4
      %s396 = scalar_lea.vmem %s2, %s395
      %p397 = pneg %p127
      %p398 = pneg %p124
      %p399 = pneg %p148
      %p400 = pneg %p145
      %p401 = pneg %p169
      %p402 = pneg %p166
      %p403 = pneg %p190
      %p404 = pneg %p187
      %p405 = pneg %p218
      %p406 = pneg %p215
      %s407 = smul.u32 4, %s25
      %p408 = scmp.lt.s32.totalorder %s24, 1
      %s409 = scalar_select %p408, %s24, 1
      %p410 = scmp.lt.s32.totalorder %s407, 7
      %s411 = scalar_select %p410, %s407, 7
      %s412 = smul.addr %s409, 8
      %s413 = sadd.s32 %s411, %s412
      %s414 = smul.addr %s413, 4
      %s415 = scalar_lea.vmem %s6, %s414
      %p416 = pneg %p246
      %p417 = pneg %p243
      %p418 = scmp.lt.s32.totalorder %s24, 1
      %s419 = scalar_select %p418, %s24, 1
      %p420 = scmp.lt.s32.totalorder %s25, 1
      %s421 = scalar_select %p420, %s25, 1
      %s422 = smul.addr %s419, 2
      %s423 = sadd.s32 %s421, %s422
      %s424 = scalar_lea.vmem %s7, %s423
      %p425 = pneg %p274
      %p426 = pneg %p271
      %p427 = scmp.lt.s32.totalorder %s24, 1
      %s428 = scalar_select %p427, %s24, 1
      %p429 = scmp.lt.s32.totalorder %s25, 1
      %s430 = scalar_select %p429, %s25, 1
      %s431 = smul.addr %s428, 2
      %s432 = sadd.s32 %s430, %s431
      %s433 = scalar_lea.vmem %s8, %s432
      %s434 = smul.u32 4, %s25
      %p435 = scmp.lt.s32.totalorder %s24, 1
      %s436 = scalar_select %p435, %s24, 1
      %p437 = scmp.lt.s32.totalorder %s434, 7
      %s438 = scalar_select %p437, %s434, 7
      %s439 = smul.addr %s436, 8
      %s440 = sadd.s32 %s438, %s439
      %s441 = smul.addr %s440, 4
      %s442 = scalar_lea.vmem %s0, %s441
      %s443 = smul.u32 4, %s25
      %s444 = smul.u32 %s25, 4
      %s445 = ssub.s32 %s444, 1
      %p446 = scmp.gt.s32.totalorder %s445, 0
      %s447 = scalar_select %p446, %s445, 0
      %p448 = scmp.lt.s32.totalorder %s24, 1
      %s449 = scalar_select %p448, %s24, 1
      %p450 = scmp.lt.s32.totalorder %s447, 7
      %s451 = scalar_select %p450, %s447, 7
      %s452 = smul.addr %s449, 8
      %s453 = sadd.s32 %s451, %s452
      %s454 = smul.addr %s453, 4
      %s455 = scalar_lea.vmem %s1, %s454
      %s456 = smul.u32 %s25, 4
      %s457 = ssub.s32 %s456, 1
      %p458 = scmp.gt.s32.totalorder %s457, 0
      %s459 = scalar_select %p458, %s457, 0
      %s460 = smul.u32 %s25, 4
      %s461 = sadd.s32 %s460, 4
      %p462 = scmp.lt.s32.totalorder %s461, 7
      %s463 = scalar_select %p462, %s461, 7
      %p464 = scmp.lt.s32.totalorder %s24, 1
      %s465 = scalar_select %p464, %s24, 1
      %p466 = scmp.lt.s32.totalorder %s463, 7
      %s467 = scalar_select %p466, %s463, 7
      %s468 = smul.addr %s465, 8
      %s469 = sadd.s32 %s467, %s468
      %s470 = smul.addr %s469, 4
      %s471 = scalar_lea.vmem %s2, %s470
      %s472 = smul.u32 %s25, 4
      %s473 = sadd.s32 %s472, 4
      %p474 = scmp.lt.s32.totalorder %s473, 7
      %s475 = scalar_select %p474, %s473, 7
      %s476 = smul.u32 4, %s25
      %p477 = scmp.lt.s32.totalorder %s24, 1
      %s478 = scalar_select %p477, %s24, 1
      %p479 = scmp.lt.s32.totalorder %s476, 7
      %s480 = scalar_select %p479, %s476, 7
      %s481 = smul.addr %s478, 8
      %s482 = sadd.s32 %s480, %s481
      %s483 = smul.addr %s482, 4
      %s484 = scalar_lea.vmem %s6, %s483
      %s485 = smul.u32 4, %s25
      %p486 = scmp.lt.s32.totalorder %s24, 1
      %s487 = scalar_select %p486, %s24, 1
      %p488 = scmp.lt.s32.totalorder %s25, 1
      %s489 = scalar_select %p488, %s25, 1
      %s490 = smul.addr %s487, 2
      %s491 = sadd.s32 %s489, %s490
      %s492 = scalar_lea.vmem %s7, %s491
      %p493 = scmp.lt.s32.totalorder %s24, 1
      %s494 = scalar_select %p493, %s24, 1
      %p495 = scmp.lt.s32.totalorder %s25, 1
      %s496 = scalar_select %p495, %s25, 1
      %s497 = smul.addr %s494, 2
      %s498 = sadd.s32 %s496, %s497
      %s499 = scalar_lea.vmem %s8, %s498
      %v501 = vld [vmem:[%s3] sm:$0x1]
      %v502 = vld [vmem:[%s4] sm:$0x1]
      %v503 = vld [vmem:[%s442] sm:$0xf]
      %v504 = vld [vmem:[%s442 + $0x4] sm:$0xf]
      %v505 = vld [vmem:[%s442 + $0x8] sm:$0xf]
      %v506 = vld [vmem:[%s442 + $0xc] sm:$0xf]
      %v507 = vunpack.c.l.bf16 %v503
      %v508 = vunpack.c.l.bf16 %v504
      %v509 = vunpack.c.l.bf16 %v505
      %v510 = vunpack.c.l.bf16 %v506
      %v512 = vlaneseq
      %v513 = vshrl.u32 %v512, 7
      %v514 = vsub.s32 0, %v513
      %v515 = vrot.slane %v501, %v514
      %v517 = vmul.f32 %v507, %v515
      %v518 = vmul.f32 %v508, %v515
      %v519 = vmul.f32 %v509, %v515
      %v520 = vmul.f32 %v510, %v515
      %v522 = vlaneseq
      %v523 = vshrl.u32 %v522, 7
      %v524 = vsub.s32 0, %v523
      %v525 = vrot.slane %v502, %v524
      %v527 = vadd.f32 %v517, %v525
      %v528 = vadd.f32 %v518, %v525
      %v529 = vadd.f32 %v519, %v525
      %v530 = vadd.f32 %v520, %v525
      %v531 = vmax.f32 %v527, 0.0
      %v532 = vmax.f32 %v528, 0.0
      %v533 = vmax.f32 %v529, 0.0
      %v534 = vmax.f32 %v530, 0.0
      %v535 = vpack.c.bf16 %v531, %v531
      %v536 = vpack.c.bf16 %v532, %v532
      %v537 = vpack.c.bf16 %v533, %v533
      %v538 = vpack.c.bf16 %v534, %v534
      %v539 = vld [vmem:[%s455] sm:$0xf]
      %v540 = vunpack.c.l.bf16 %v539
      %v541 = vmul.f32 %v540, %v515
      %v542 = vadd.f32 %v541, %v525
      %v543 = vmax.f32 %v542, 0.0
      %v544 = vpack.c.bf16 %v543, %v543
      %v545 = vld [vmem:[%s471] sm:$0xf]
      %v546 = vunpack.c.l.bf16 %v545
      %v547 = vmul.f32 %v546, %v515
      %v548 = vadd.f32 %v547, %v525
      %v549 = vmax.f32 %v548, 0.0
      %v550 = vpack.c.bf16 %v549, %v549
      %p551 = scmp.eq.s32.totalorder %s25, 0
      %s552 = scalar_select %p551, 1, 0
      %v553 = vstv %s552
      %vm554 = vcmp.eq.s32.totalorder %v553, 1
      %v555 = vsel %vm554, 0, %v544
      %p556 = scmp.eq.s32.totalorder %s25, 1
      %s557 = scalar_select %p556, 1, 0
      %v558 = vstv %s557
      %vm559 = vcmp.eq.s32.totalorder %v558, 1
      %v560 = vsel %vm559, 0, %v550
      %vm561 = vcmask 1040384
      %vm562 = vsmask.f32 256
      %vm563 = vmand %vm561, %vm562
      %v564 = vld [vmem:[#allocation2] sm:$0x1]
      %v565 = vsel %vm563, 0, %v564
      %566 = vst [vmem:[#allocation2] sm:$0x1] %v565
      %v567 = vld [vmem:[#allocation2 + $0x8] sm:$0x1]
      %v568 = vsel %vm563, 0, %v567
      %569 = vst [vmem:[#allocation2 + $0x8] sm:$0x1] %v568
      %v570 = vld [vmem:[#allocation2 + $0x10] sm:$0x1]
      %v571 = vsel %vm563, 0, %v570
      %572 = vst [vmem:[#allocation2 + $0x10] sm:$0x1] %v571
      %v573 = vld [vmem:[#allocation2 + $0x18] sm:$0x1]
      %v574 = vsel %vm563, 0, %v573
      %575 = vst [vmem:[#allocation2 + $0x18] sm:$0x1] %v574
      %v576 = vld [vmem:[#allocation2 + $0x20] sm:$0x1]
      %v577 = vsel %vm563, 0, %v576
      %578 = vst [vmem:[#allocation2 + $0x20] sm:$0x1] %v577
      %v579 = vld [vmem:[#allocation2 + $0x28] sm:$0x1]
      %v580 = vsel %vm563, 0, %v579
      %581 = vst [vmem:[#allocation2 + $0x28] sm:$0x1] %v580
      %vm582 = vsmask.f32 7938
      %vm583 = vmand %vm561, %vm582
      %v584 = vld [vmem:[#allocation2 + $0x4] sm:$0x1]
      %v585 = vsel %vm583, 0, %v584
      %586 = vst [vmem:[#allocation2 + $0x4] sm:$0x1] %v585
      %v587 = vld [vmem:[#allocation2 + $0xc] sm:$0x1]
      %v588 = vsel %vm583, 0, %v587
      %589 = vst [vmem:[#allocation2 + $0xc] sm:$0x1] %v588
      %v590 = vld [vmem:[#allocation2 + $0x14] sm:$0x1]
      %v591 = vsel %vm583, 0, %v590
      %592 = vst [vmem:[#allocation2 + $0x14] sm:$0x1] %v591
      %v593 = vld [vmem:[#allocation2 + $0x1c] sm:$0x1]
      %v594 = vsel %vm583, 0, %v593
      %595 = vst [vmem:[#allocation2 + $0x1c] sm:$0x1] %v594
      %v596 = vld [vmem:[#allocation2 + $0x24] sm:$0x1]
      %v597 = vsel %vm583, 0, %v596
      %598 = vst [vmem:[#allocation2 + $0x24] sm:$0x1] %v597
      %v599 = vld [vmem:[#allocation2 + $0x2c] sm:$0x1]
      %v600 = vsel %vm583, 0, %v599
      %601 = vst [vmem:[#allocation2 + $0x2c] sm:$0x1] %v600
      %v603 = vunpack.c.l.b16 %v555
      %v604 = vpack.c.b16 %v603, %v603
      %v606 = vshrl.u32 %v604, 16
      %v608 = vrot.slane %v606, 7
      %v609 = vshll.u32 %v604, 16
      %v611 = vor.u32 %v608, %v609
      %v612 = vrot.slane %v608, 4
      %vm615 = vcmask 1043456
      %vm616 = vmand %vm615, %vm582
      %v617 = vld [vmem:[#allocation2] sm:$0xf]
      %v618 = vsel %vm616, %v611, %v617
      %619 = vst [vmem:[#allocation2] sm:$0xf] %v618
      %v620 = vld [vmem:[#allocation2 + $0x4] sm:$0x1]
      %v621 = vsel %vm563, %v612, %v620
      %622 = vst [vmem:[#allocation2 + $0x4] sm:$0x1] %v621
      %v624 = vunpack.c.l.b16 %v560
      %v625 = vpack.c.b16 %v624, %v624
      %v627 = vshrl.u32 %v625, 16
      %v629 = vrot.slane %v627, 7
      %v630 = vshll.u32 %v625, 16
      %v632 = vor.u32 %v629, %v630
      %v633 = vrot.slane %v629, 4
      %s636 = scalar_lea.vmem [#allocation2], 40
      %v637 = vld [vmem:[%s636] sm:$0xf]
      %v638 = vsel %vm616, %v632, %v637
      %639 = vst [vmem:[%s636] sm:$0xf] %v638
      %v640 = vld [vmem:[%s636 + $0x4] sm:$0x1]
      %v641 = vsel %vm563, %v633, %v640
      %642 = vst [vmem:[%s636 + $0x4] sm:$0x1] %v641
      %v647 = vunpack.c.l.b16 %v535
      %v648 = vunpack.c.l.b16 %v536
      %v649 = vunpack.c.l.b16 %v537
      %v650 = vunpack.c.l.b16 %v538
      %v651 = vpack.c.b16 %v647, %v647
      %v652 = vpack.c.b16 %v648, %v648
      %v653 = vpack.c.b16 %v649, %v649
      %v654 = vpack.c.b16 %v650, %v650
      %v656 = vshrl.u32 %v651, 16
      %v658 = vrot.slane %v656, 7
      %v659 = vshll.u32 %v651, 16
      %v661 = vor.u32 %v658, %v659
      %v662 = vrot.slane %v658, 4
      %v664 = vshrl.u32 %v652, 16
      %v666 = vrot.slane %v664, 7
      %v667 = vshll.u32 %v652, 16
      %v669 = vor.u32 %v666, %v667
      %v670 = vrot.slane %v666, 4
      %v672 = vshrl.u32 %v653, 16
      %v674 = vrot.slane %v672, 7
      %v675 = vshll.u32 %v653, 16
      %v677 = vor.u32 %v674, %v675
      %v678 = vrot.slane %v674, 4
      %v680 = vshrl.u32 %v654, 16
      %v682 = vrot.slane %v680, 7
      %v683 = vshll.u32 %v654, 16
      %v685 = vor.u32 %v682, %v683
      %v686 = vrot.slane %v682, 4
      %s695 = scalar_lea.vmem [#allocation2], 8
      %v696 = vld [vmem:[%s695] sm:$0xf]
      %v697 = vsel %vm616, %v661, %v696
      %698 = vst [vmem:[%s695] sm:$0xf] %v697
      %v699 = vld [vmem:[%s695 + $0x4] sm:$0x1]
      %v700 = vsel %vm563, %v662, %v699
      %701 = vst [vmem:[%s695 + $0x4] sm:$0x1] %v700
      %v702 = vld [vmem:[%s695 + $0x8] sm:$0xf]
      %v703 = vsel %vm616, %v669, %v702
      %704 = vst [vmem:[%s695 + $0x8] sm:$0xf] %v703
      %v705 = vld [vmem:[%s695 + $0xc] sm:$0x1]
      %v706 = vsel %vm563, %v670, %v705
      %707 = vst [vmem:[%s695 + $0xc] sm:$0x1] %v706
      %v708 = vld [vmem:[%s695 + $0x10] sm:$0xf]
      %v709 = vsel %vm616, %v677, %v708
      %710 = vst [vmem:[%s695 + $0x10] sm:$0xf] %v709
      %v711 = vld [vmem:[%s695 + $0x14] sm:$0x1]
      %v712 = vsel %vm563, %v678, %v711
      %713 = vst [vmem:[%s695 + $0x14] sm:$0x1] %v712
      %v714 = vld [vmem:[%s695 + $0x18] sm:$0xf]
      %v715 = vsel %vm616, %v685, %v714
      %716 = vst [vmem:[%s695 + $0x18] sm:$0xf] %v715
      %v717 = vld [vmem:[%s695 + $0x1c] sm:$0x1]
      %v718 = vsel %vm563, %v686, %v717
      %719 = vst [vmem:[%s695 + $0x1c] sm:$0x1] %v718
      %v720 = vld [vmem:[#allocation2] sm:$0xf]
      %v721 = vld [vmem:[#allocation2 + $0x4] sm:$0x1]
      %v722 = vld [vmem:[#allocation2 + $0x8] sm:$0xf]
      %v723 = vld [vmem:[#allocation2 + $0xc] sm:$0x1]
      %v724 = vld [vmem:[#allocation2 + $0x10] sm:$0xf]
      %v725 = vld [vmem:[#allocation2 + $0x14] sm:$0x1]
      %v726 = vld [vmem:[#allocation2 + $0x18] sm:$0xf]
      %v727 = vld [vmem:[#allocation2 + $0x1c] sm:$0x1]
      %v728 = vld [vmem:[#allocation2 + $0x20] sm:$0xf]
      %v729 = vld [vmem:[#allocation2 + $0x24] sm:$0x1]
      %v730 = vld [vmem:[#allocation2 + $0x28] sm:$0xf]
      %v731 = vld [vmem:[#allocation2 + $0x2c] sm:$0x1]
      %v732 = vld [vmem:[%s5] sm:$0xf]
      %v733 = vld [vmem:[%s5 + $0x4] sm:$0xf]
      %v734 = vld [vmem:[%s5 + $0x8] sm:$0xf]
      %v735 = vld [vmem:[%s5 + $0xc] sm:$0xf]
      %v736 = vld [vmem:[%s5 + $0x10] sm:$0xf]
      %v737 = vld [vmem:[%s5 + $0x14] sm:$0xf]
      %v738 = vld [vmem:[%s5 + $0x18] sm:$0xf]
      %v739 = vld [vmem:[%s5 + $0x1c] sm:$0xf]
      %v740 = vld [vmem:[%s5 + $0x20] sm:$0xf]
      %v741 = vld [vmem:[%s5 + $0x24] sm:$0xf]
      %v742 = vld [vmem:[%s5 + $0x28] sm:$0xf]
      %v743 = vld [vmem:[%s5 + $0x2c] sm:$0xf]
      %v744 = vld [vmem:[%s5 + $0x30] sm:$0xf]
      %v745 = vld [vmem:[%s5 + $0x34] sm:$0xf]
      %v746 = vld [vmem:[%s5 + $0x38] sm:$0xf]
      %v747 = vld [vmem:[%s5 + $0x3c] sm:$0xf]
      %vm748 = vsmask.f32 3328
      %vm749 = vsmask.f32 7440
      %vm750 = vmor %vm748, %vm749
      %v752 = vshrl.u32 %v720, 16
      %v754 = vrot.slane %v752, 4
      %v755 = vshll.u32 %v720, 16
      %v757 = vrot.slane %v755, 5
      %v758 = vor.u32 %v754, %v757
      %v759 = vrot.slane %v758, 4
      %v761 = vshll.u32 %v721, 16
      %v763 = vrot.slane %v761, 5
      %v764 = vsel %vm750, %v759, %v763
      %v766 = vshrl.u32 %v722, 16
      %v768 = vrot.slane %v766, 4
      %v769 = vshll.u32 %v722, 16
      %v771 = vrot.slane %v769, 5
      %v772 = vor.u32 %v768, %v771
      %v773 = vrot.slane %v772, 4
      %v775 = vshll.u32 %v723, 16
      %v777 = vrot.slane %v775, 5
      %v778 = vsel %vm750, %v773, %v777
      %v780 = vshrl.u32 %v724, 16
      %v782 = vrot.slane %v780, 4
      %v783 = vshll.u32 %v724, 16
      %v785 = vrot.slane %v783, 5
      %v786 = vor.u32 %v782, %v785
      %v787 = vrot.slane %v786, 4
      %v789 = vshll.u32 %v725, 16
      %v791 = vrot.slane %v789, 5
      %v792 = vsel %vm750, %v787, %v791
      %v794 = vshrl.u32 %v726, 16
      %v796 = vrot.slane %v794, 4
      %v797 = vshll.u32 %v726, 16
      %v799 = vrot.slane %v797, 5
      %v800 = vor.u32 %v796, %v799
      %v801 = vrot.slane %v800, 4
      %v803 = vshll.u32 %v727, 16
      %v805 = vrot.slane %v803, 5
      %v806 = vsel %vm750, %v801, %v805
      %s807 = scalar_lea.vmem %s5, 64
      %v808 = vld [vmem:[%s807] sm:$0xf]
      %v809 = vld [vmem:[%s807 + $0x4] sm:$0xf]
      %v810 = vld [vmem:[%s807 + $0x8] sm:$0xf]
      %v811 = vld [vmem:[%s807 + $0xc] sm:$0xf]
      %v812 = vld [vmem:[%s807 + $0x10] sm:$0xf]
      %v813 = vld [vmem:[%s807 + $0x14] sm:$0xf]
      %v814 = vld [vmem:[%s807 + $0x18] sm:$0xf]
      %v815 = vld [vmem:[%s807 + $0x1c] sm:$0xf]
      %v816 = vld [vmem:[%s807 + $0x20] sm:$0xf]
      %v817 = vld [vmem:[%s807 + $0x24] sm:$0xf]
      %v818 = vld [vmem:[%s807 + $0x28] sm:$0xf]
      %v819 = vld [vmem:[%s807 + $0x2c] sm:$0xf]
      %v820 = vld [vmem:[%s807 + $0x30] sm:$0xf]
      %v821 = vld [vmem:[%s807 + $0x34] sm:$0xf]
      %v822 = vld [vmem:[%s807 + $0x38] sm:$0xf]
      %v823 = vld [vmem:[%s807 + $0x3c] sm:$0xf]
      %v824 = vunpack.c.l.b16 %v764
      %v825 = vunpack.c.l.b16 %v778
      %v826 = vunpack.c.l.b16 %v792
      %v827 = vunpack.c.l.b16 %v806
      %v828 = vpack.c.b16 %v825, %v824
      %v829 = vpack.c.b16 %v827, %v826
      %v848 = vunpack.c.l.b16 %v808
      %v849 = vunpack.c.l.b16 %v809
      %v850 = vunpack.c.l.b16 %v810
      %v851 = vunpack.c.l.b16 %v811
      %v852 = vunpack.c.l.b16 %v812
      %v853 = vunpack.c.l.b16 %v813
      %v854 = vunpack.c.l.b16 %v814
      %v855 = vunpack.c.l.b16 %v815
      %v856 = vunpack.c.l.b16 %v816
      %v857 = vunpack.c.l.b16 %v817
      %v858 = vunpack.c.l.b16 %v818
      %v859 = vunpack.c.l.b16 %v819
      %v860 = vunpack.c.l.b16 %v820
      %v861 = vunpack.c.l.b16 %v821
      %v862 = vunpack.c.l.b16 %v822
      %v863 = vunpack.c.l.b16 %v823
      %v864 = vpack.c.b16 %v849, %v848
      %v865 = vpack.c.b16 %v851, %v850
      %v866 = vpack.c.b16 %v853, %v852
      %v867 = vpack.c.b16 %v855, %v854
      %v868 = vpack.c.b16 %v857, %v856
      %v869 = vpack.c.b16 %v859, %v858
      %v870 = vpack.c.b16 %v861, %v860
      %v871 = vpack.c.b16 %v863, %v862
      %880 = vmatprep.subr.bf16.mxu0 0
      %881 = vmatpush1.bf16.msra.mxu0 %v871
      %882 = vmatprep.subr.bf16.mxu0 0
      %883 = vmatpush1.bf16.msra.mxu0 %v870
      %884 = vmatprep.subr.bf16.mxu0 0
      %885 = vmatpush1.bf16.msra.mxu0 %v869
      %886 = vmatprep.subr.bf16.mxu0 0
      %887 = vmatpush1.bf16.msra.mxu0 %v868
      %888 = vmatprep.subr.bf16.mxu0 0
      %889 = vmatpush1.bf16.msra.mxu0 %v867
      %890 = vmatprep.subr.bf16.mxu0 0
      %891 = vmatpush1.bf16.msra.mxu0 %v866
      %892 = vmatprep.subr.bf16.mxu0 0
      %893 = vmatpush1.bf16.msra.mxu0 %v865
      %894 = vmatprep.subr.bf16.mxu0 0
      %895 = vmatpush1.bf16.msra.mxu0 %v864
      %896 = vmatprep.subr.bf16.mxu0 0
      %897 = vmatpush2.bf16.msra.mxu0 0
      %898 = vmatprep.subr.bf16.mxu0 0
      %899 = vmatpush2.bf16.msra.mxu0 0
      %900 = vmatprep.subr.bf16.mxu0 0
      %901 = vmatpush2.bf16.msra.mxu0 0
      %902 = vmatprep.subr.bf16.mxu0 0
      %903 = vmatpush2.bf16.msra.mxu0 0
      %904 = vmatprep.subr.bf16.mxu0 0
      %905 = vmatpush2.bf16.msra.mxu0 0
      %906 = vmatprep.subr.bf16.mxu0 0
      %907 = vmatpush2.bf16.msra.mxu0 0
      %908 = vmatprep.subr.bf16.mxu0 0
      %909 = vmatpush2.bf16.msra.mxu0 0
      %910 = vmatprep.subr.bf16.mxu0 0
      %911 = vmatpush2.bf16.msra.mxu0 0
      %912 = vmatprep.mubr.bf16.mxu0 0
      %913 = vmatmul.mubr.bf16.gmra.mxu0 %v828
      %v914 = vpop.f32.mrf.mxu0
      %v915 = vadd.f32 0.0, %v914
      %v916 = vpop.f32.mrf.mxu0
      %v917 = vpop.f32.mrf.mxu0
      %v918 = vadd.f32 0.0, %v917
      %v919 = vpop.f32.mrf.mxu0
      %920 = vmatprep.mubr.bf16.mxu0 0
      %921 = vmatmul.mubr.bf16.gmra.mxu0 %v829
      %v922 = vpop.f32.mrf.mxu0
      %v923 = vadd.f32 0.0, %v922
      %v924 = vpop.f32.mrf.mxu0
      %v925 = vpop.f32.mrf.mxu0
      %v926 = vadd.f32 0.0, %v925
      %v927 = vpop.f32.mrf.mxu0
      %928 = vdwg.mxu0
      %v933 = vunpack.c.l.b16 %v720
      %v934 = vunpack.c.l.b16 %v722
      %v935 = vunpack.c.l.b16 %v724
      %v936 = vunpack.c.l.b16 %v726
      %v937 = vpack.c.b16 %v934, %v933
      %v938 = vpack.c.b16 %v936, %v935
      %v957 = vunpack.c.l.b16 %v732
      %v958 = vunpack.c.l.b16 %v733
      %v959 = vunpack.c.l.b16 %v734
      %v960 = vunpack.c.l.b16 %v735
      %v961 = vunpack.c.l.b16 %v736
      %v962 = vunpack.c.l.b16 %v737
      %v963 = vunpack.c.l.b16 %v738
      %v964 = vunpack.c.l.b16 %v739
      %v965 = vunpack.c.l.b16 %v740
      %v966 = vunpack.c.l.b16 %v741
      %v967 = vunpack.c.l.b16 %v742
      %v968 = vunpack.c.l.b16 %v743
      %v969 = vunpack.c.l.b16 %v744
      %v970 = vunpack.c.l.b16 %v745
      %v971 = vunpack.c.l.b16 %v746
      %v972 = vunpack.c.l.b16 %v747
      %v973 = vpack.c.b16 %v958, %v957
      %v974 = vpack.c.b16 %v960, %v959
      %v975 = vpack.c.b16 %v962, %v961
      %v976 = vpack.c.b16 %v964, %v963
      %v977 = vpack.c.b16 %v966, %v965
      %v978 = vpack.c.b16 %v968, %v967
      %v979 = vpack.c.b16 %v970, %v969
      %v980 = vpack.c.b16 %v972, %v971
      %989 = vmatprep.subr.bf16.mxu0 0
      %990 = vmatpush1.bf16.msra.mxu0 %v980
      %991 = vmatprep.subr.bf16.mxu0 0
      %992 = vmatpush1.bf16.msra.mxu0 %v979
      %993 = vmatprep.subr.bf16.mxu0 0
      %994 = vmatpush1.bf16.msra.mxu0 %v978
      %995 = vmatprep.subr.bf16.mxu0 0
      %996 = vmatpush1.bf16.msra.mxu0 %v977
      %997 = vmatprep.subr.bf16.mxu0 0
      %998 = vmatpush1.bf16.msra.mxu0 %v976
      %999 = vmatprep.subr.bf16.mxu0 0
      %1000 = vmatpush1.bf16.msra.mxu0 %v975
      %1001 = vmatprep.subr.bf16.mxu0 0
      %1002 = vmatpush1.bf16.msra.mxu0 %v974
      %1003 = vmatprep.subr.bf16.mxu0 0
      %1004 = vmatpush1.bf16.msra.mxu0 %v973
      %1005 = vmatprep.subr.bf16.mxu0 0
      %1006 = vmatpush2.bf16.msra.mxu0 0
      %1007 = vmatprep.subr.bf16.mxu0 0
      %1008 = vmatpush2.bf16.msra.mxu0 0
      %1009 = vmatprep.subr.bf16.mxu0 0
      %1010 = vmatpush2.bf16.msra.mxu0 0
      %1011 = vmatprep.subr.bf16.mxu0 0
      %1012 = vmatpush2.bf16.msra.mxu0 0
      %1013 = vmatprep.subr.bf16.mxu0 0
      %1014 = vmatpush2.bf16.msra.mxu0 0
      %1015 = vmatprep.subr.bf16.mxu0 0
      %1016 = vmatpush2.bf16.msra.mxu0 0
      %1017 = vmatprep.subr.bf16.mxu0 0
      %1018 = vmatpush2.bf16.msra.mxu0 0
      %1019 = vmatprep.subr.bf16.mxu0 0
      %1020 = vmatpush2.bf16.msra.mxu0 0
      %1021 = vmatprep.mubr.bf16.mxu0 0
      %1022 = vmatmul.mubr.bf16.gmra.mxu0 %v937
      %v1023 = vpop.f32.mrf.mxu0
      %v1024 = vadd.f32 %v915, %v1023
      %v1025 = vpop.f32.mrf.mxu0
      %v1026 = vpop.f32.mrf.mxu0
      %v1027 = vadd.f32 %v918, %v1026
      %v1028 = vpop.f32.mrf.mxu0
      %1029 = vmatprep.mubr.bf16.mxu0 0
      %1030 = vmatmul.mubr.bf16.gmra.mxu0 %v938
      %v1031 = vpop.f32.mrf.mxu0
      %v1032 = vadd.f32 %v923, %v1031
      %v1033 = vpop.f32.mrf.mxu0
      %v1034 = vpop.f32.mrf.mxu0
      %v1035 = vadd.f32 %v926, %v1034
      %v1036 = vpop.f32.mrf.mxu0
      %1037 = vdwg.mxu0
      %vm1042 = vcmask 1042432
      %vm1043 = vcmask 1046532
      %vm1044 = vmor %vm1042, %vm1043
      %v1045 = vrot.slane %v720, 5
      %v1046 = vrot.slane %v1045, 4
      %v1047 = vrot.slane %v721, 5
      %v1048 = vsel %vm1044, %v1046, %v1047
      %v1049 = vrot.slane %v722, 5
      %v1050 = vrot.slane %v1049, 4
      %v1051 = vrot.slane %v723, 5
      %v1052 = vsel %vm1044, %v1050, %v1051
      %v1053 = vrot.slane %v724, 5
      %v1054 = vrot.slane %v1053, 4
      %v1055 = vrot.slane %v725, 5
      %v1056 = vsel %vm1044, %v1054, %v1055
      %v1057 = vrot.slane %v726, 5
      %v1058 = vrot.slane %v1057, 4
      %v1059 = vrot.slane %v727, 5
      %v1060 = vsel %vm1044, %v1058, %v1059
      %s1061 = scalar_lea.vmem %s5, 128
      %v1062 = vld [vmem:[%s1061] sm:$0xf]
      %v1063 = vld [vmem:[%s1061 + $0x4] sm:$0xf]
      %v1064 = vld [vmem:[%s1061 + $0x8] sm:$0xf]
      %v1065 = vld [vmem:[%s1061 + $0xc] sm:$0xf]
      %v1066 = vld [vmem:[%s1061 + $0x10] sm:$0xf]
      %v1067 = vld [vmem:[%s1061 + $0x14] sm:$0xf]
      %v1068 = vld [vmem:[%s1061 + $0x18] sm:$0xf]
      %v1069 = vld [vmem:[%s1061 + $0x1c] sm:$0xf]
      %v1070 = vld [vmem:[%s1061 + $0x20] sm:$0xf]
      %v1071 = vld [vmem:[%s1061 + $0x24] sm:$0xf]
      %v1072 = vld [vmem:[%s1061 + $0x28] sm:$0xf]
      %v1073 = vld [vmem:[%s1061 + $0x2c] sm:$0xf]
      %v1074 = vld [vmem:[%s1061 + $0x30] sm:$0xf]
      %v1075 = vld [vmem:[%s1061 + $0x34] sm:$0xf]
      %v1076 = vld [vmem:[%s1061 + $0x38] sm:$0xf]
      %v1077 = vld [vmem:[%s1061 + $0x3c] sm:$0xf]
      %v1078 = vunpack.c.l.b16 %v1048
      %v1079 = vunpack.c.l.b16 %v1052
      %v1080 = vunpack.c.l.b16 %v1056
      %v1081 = vunpack.c.l.b16 %v1060
      %v1082 = vpack.c.b16 %v1079, %v1078
      %v1083 = vpack.c.b16 %v1081, %v1080
      %v1102 = vunpack.c.l.b16 %v1062
      %v1103 = vunpack.c.l.b16 %v1063
      %v1104 = vunpack.c.l.b16 %v1064
      %v1105 = vunpack.c.l.b16 %v1065
      %v1106 = vunpack.c.l.b16 %v1066
      %v1107 = vunpack.c.l.b16 %v1067
      %v1108 = vunpack.c.l.b16 %v1068
      %v1109 = vunpack.c.l.b16 %v1069
      %v1110 = vunpack.c.l.b16 %v1070
      %v1111 = vunpack.c.l.b16 %v1071
      %v1112 = vunpack.c.l.b16 %v1072
      %v1113 = vunpack.c.l.b16 %v1073
      %v1114 = vunpack.c.l.b16 %v1074
      %v1115 = vunpack.c.l.b16 %v1075
      %v1116 = vunpack.c.l.b16 %v1076
      %v1117 = vunpack.c.l.b16 %v1077
      %v1118 = vpack.c.b16 %v1103, %v1102
      %v1119 = vpack.c.b16 %v1105, %v1104
      %v1120 = vpack.c.b16 %v1107, %v1106
      %v1121 = vpack.c.b16 %v1109, %v1108
      %v1122 = vpack.c.b16 %v1111, %v1110
      %v1123 = vpack.c.b16 %v1113, %v1112
      %v1124 = vpack.c.b16 %v1115, %v1114
      %v1125 = vpack.c.b16 %v1117, %v1116
      %1134 = vmatprep.subr.bf16.mxu0 0
      %1135 = vmatpush1.bf16.msra.mxu0 %v1125
      %1136 = vmatprep.subr.bf16.mxu0 0
      %1137 = vmatpush1.bf16.msra.mxu0 %v1124
      %1138 = vmatprep.subr.bf16.mxu0 0
      %1139 = vmatpush1.bf16.msra.mxu0 %v1123
      %1140 = vmatprep.subr.bf16.mxu0 0
      %1141 = vmatpush1.bf16.msra.mxu0 %v1122
      %1142 = vmatprep.subr.bf16.mxu0 0
      %1143 = vmatpush1.bf16.msra.mxu0 %v1121
      %1144 = vmatprep.subr.bf16.mxu0 0
      %1145 = vmatpush1.bf16.msra.mxu0 %v1120
      %1146 = vmatprep.subr.bf16.mxu0 0
      %1147 = vmatpush1.bf16.msra.mxu0 %v1119
      %1148 = vmatprep.subr.bf16.mxu0 0
      %1149 = vmatpush1.bf16.msra.mxu0 %v1118
      %1150 = vmatprep.subr.bf16.mxu0 0
      %1151 = vmatpush2.bf16.msra.mxu0 0
      %1152 = vmatprep.subr.bf16.mxu0 0
      %1153 = vmatpush2.bf16.msra.mxu0 0
      %1154 = vmatprep.subr.bf16.mxu0 0
      %1155 = vmatpush2.bf16.msra.mxu0 0
      %1156 = vmatprep.subr.bf16.mxu0 0
      %1157 = vmatpush2.bf16.msra.mxu0 0
      %1158 = vmatprep.subr.bf16.mxu0 0
      %1159 = vmatpush2.bf16.msra.mxu0 0
      %1160 = vmatprep.subr.bf16.mxu0 0
      %1161 = vmatpush2.bf16.msra.mxu0 0
      %1162 = vmatprep.subr.bf16.mxu0 0
      %1163 = vmatpush2.bf16.msra.mxu0 0
      %1164 = vmatprep.subr.bf16.mxu0 0
      %1165 = vmatpush2.bf16.msra.mxu0 0
      %1166 = vmatprep.mubr.bf16.mxu0 0
      %1167 = vmatmul.mubr.bf16.gmra.mxu0 %v1082
      %v1168 = vpop.f32.mrf.mxu0
      %v1169 = vadd.f32 0.0, %v1168
      %v1170 = vpop.f32.mrf.mxu0
      %v1171 = vpop.f32.mrf.mxu0
      %v1172 = vadd.f32 0.0, %v1171
      %v1173 = vpop.f32.mrf.mxu0
      %1174 = vmatprep.mubr.bf16.mxu0 0
      %1175 = vmatmul.mubr.bf16.gmra.mxu0 %v1083
      %v1176 = vpop.f32.mrf.mxu0
      %v1177 = vadd.f32 0.0, %v1176
      %v1178 = vpop.f32.mrf.mxu0
      %v1179 = vpop.f32.mrf.mxu0
      %v1180 = vadd.f32 0.0, %v1179
      %v1181 = vpop.f32.mrf.mxu0
      %1182 = vdwg.mxu0
      %v1183 = vadd.f32 %v1024, %v1169
      %v1184 = vadd.f32 %v1027, %v1172
      %v1185 = vadd.f32 %v1032, %v1177
      %v1186 = vadd.f32 %v1035, %v1180
      %s1187 = scalar_lea.vmem %s5, 192
      %v1188 = vld [vmem:[%s1187] sm:$0xf]
      %v1189 = vld [vmem:[%s1187 + $0x4] sm:$0xf]
      %v1190 = vld [vmem:[%s1187 + $0x8] sm:$0xf]
      %v1191 = vld [vmem:[%s1187 + $0xc] sm:$0xf]
      %v1192 = vld [vmem:[%s1187 + $0x10] sm:$0xf]
      %v1193 = vld [vmem:[%s1187 + $0x14] sm:$0xf]
      %v1194 = vld [vmem:[%s1187 + $0x18] sm:$0xf]
      %v1195 = vld [vmem:[%s1187 + $0x1c] sm:$0xf]
      %v1196 = vld [vmem:[%s1187 + $0x20] sm:$0xf]
      %v1197 = vld [vmem:[%s1187 + $0x24] sm:$0xf]
      %v1198 = vld [vmem:[%s1187 + $0x28] sm:$0xf]
      %v1199 = vld [vmem:[%s1187 + $0x2c] sm:$0xf]
      %v1200 = vld [vmem:[%s1187 + $0x30] sm:$0xf]
      %v1201 = vld [vmem:[%s1187 + $0x34] sm:$0xf]
      %v1202 = vld [vmem:[%s1187 + $0x38] sm:$0xf]
      %v1203 = vld [vmem:[%s1187 + $0x3c] sm:$0xf]
      %v1205 = vunpack.c.l.b16 %v728
      %v1206 = vpack.c.b16 %v935, %v934
      %v1207 = vpack.c.b16 %v1205, %v936
      %v1226 = vunpack.c.l.b16 %v1188
      %v1227 = vunpack.c.l.b16 %v1189
      %v1228 = vunpack.c.l.b16 %v1190
      %v1229 = vunpack.c.l.b16 %v1191
      %v1230 = vunpack.c.l.b16 %v1192
      %v1231 = vunpack.c.l.b16 %v1193
      %v1232 = vunpack.c.l.b16 %v1194
      %v1233 = vunpack.c.l.b16 %v1195
      %v1234 = vunpack.c.l.b16 %v1196
      %v1235 = vunpack.c.l.b16 %v1197
      %v1236 = vunpack.c.l.b16 %v1198
      %v1237 = vunpack.c.l.b16 %v1199
      %v1238 = vunpack.c.l.b16 %v1200
      %v1239 = vunpack.c.l.b16 %v1201
      %v1240 = vunpack.c.l.b16 %v1202
      %v1241 = vunpack.c.l.b16 %v1203
      %v1242 = vpack.c.b16 %v1227, %v1226
      %v1243 = vpack.c.b16 %v1229, %v1228
      %v1244 = vpack.c.b16 %v1231, %v1230
      %v1245 = vpack.c.b16 %v1233, %v1232
      %v1246 = vpack.c.b16 %v1235, %v1234
      %v1247 = vpack.c.b16 %v1237, %v1236
      %v1248 = vpack.c.b16 %v1239, %v1238
      %v1249 = vpack.c.b16 %v1241, %v1240
      %1258 = vmatprep.subr.bf16.mxu0 0
      %1259 = vmatpush1.bf16.msra.mxu0 %v1249
      %1260 = vmatprep.subr.bf16.mxu0 0
      %1261 = vmatpush1.bf16.msra.mxu0 %v1248
      %1262 = vmatprep.subr.bf16.mxu0 0
      %1263 = vmatpush1.bf16.msra.mxu0 %v1247
      %1264 = vmatprep.subr.bf16.mxu0 0
      %1265 = vmatpush1.bf16.msra.mxu0 %v1246
      %1266 = vmatprep.subr.bf16.mxu0 0
      %1267 = vmatpush1.bf16.msra.mxu0 %v1245
      %1268 = vmatprep.subr.bf16.mxu0 0
      %1269 = vmatpush1.bf16.msra.mxu0 %v1244
      %1270 = vmatprep.subr.bf16.mxu0 0
      %1271 = vmatpush1.bf16.msra.mxu0 %v1243
      %1272 = vmatprep.subr.bf16.mxu0 0
      %1273 = vmatpush1.bf16.msra.mxu0 %v1242
      %1274 = vmatprep.subr.bf16.mxu0 0
      %1275 = vmatpush2.bf16.msra.mxu0 0
      %1276 = vmatprep.subr.bf16.mxu0 0
      %1277 = vmatpush2.bf16.msra.mxu0 0
      %1278 = vmatprep.subr.bf16.mxu0 0
      %1279 = vmatpush2.bf16.msra.mxu0 0
      %1280 = vmatprep.subr.bf16.mxu0 0
      %1281 = vmatpush2.bf16.msra.mxu0 0
      %1282 = vmatprep.subr.bf16.mxu0 0
      %1283 = vmatpush2.bf16.msra.mxu0 0
      %1284 = vmatprep.subr.bf16.mxu0 0
      %1285 = vmatpush2.bf16.msra.mxu0 0
      %1286 = vmatprep.subr.bf16.mxu0 0
      %1287 = vmatpush2.bf16.msra.mxu0 0
      %1288 = vmatprep.subr.bf16.mxu0 0
      %1289 = vmatpush2.bf16.msra.mxu0 0
      %1290 = vmatprep.mubr.bf16.mxu0 0
      %1291 = vmatmul.mubr.bf16.gmra.mxu0 %v1206
      %v1292 = vpop.f32.mrf.mxu0
      %v1293 = vadd.f32 0.0, %v1292
      %v1294 = vpop.f32.mrf.mxu0
      %v1295 = vpop.f32.mrf.mxu0
      %v1296 = vadd.f32 0.0, %v1295
      %v1297 = vpop.f32.mrf.mxu0
      %1298 = vmatprep.mubr.bf16.mxu0 0
      %1299 = vmatmul.mubr.bf16.gmra.mxu0 %v1207
      %v1300 = vpop.f32.mrf.mxu0
      %v1301 = vadd.f32 0.0, %v1300
      %v1302 = vpop.f32.mrf.mxu0
      %v1303 = vpop.f32.mrf.mxu0
      %v1304 = vadd.f32 0.0, %v1303
      %v1305 = vpop.f32.mrf.mxu0
      %1306 = vdwg.mxu0
      %v1307 = vadd.f32 %v1183, %v1293
      %v1308 = vadd.f32 %v1184, %v1296
      %v1309 = vadd.f32 %v1185, %v1301
      %v1310 = vadd.f32 %v1186, %v1304
      %v1312 = vshrl.u32 %v728, 16
      %v1314 = vrot.slane %v1312, 4
      %v1315 = vshll.u32 %v728, 16
      %v1317 = vrot.slane %v1315, 5
      %v1318 = vor.u32 %v1314, %v1317
      %v1319 = vrot.slane %v1318, 4
      %v1321 = vshll.u32 %v729, 16
      %v1323 = vrot.slane %v1321, 5
      %v1324 = vsel %vm750, %v1319, %v1323
      %s1325 = scalar_lea.vmem %s5, 256
      %v1326 = vld [vmem:[%s1325] sm:$0xf]
      %v1327 = vld [vmem:[%s1325 + $0x4] sm:$0xf]
      %v1328 = vld [vmem:[%s1325 + $0x8] sm:$0xf]
      %v1329 = vld [vmem:[%s1325 + $0xc] sm:$0xf]
      %v1330 = vld [vmem:[%s1325 + $0x10] sm:$0xf]
      %v1331 = vld [vmem:[%s1325 + $0x14] sm:$0xf]
      %v1332 = vld [vmem:[%s1325 + $0x18] sm:$0xf]
      %v1333 = vld [vmem:[%s1325 + $0x1c] sm:$0xf]
      %v1334 = vld [vmem:[%s1325 + $0x20] sm:$0xf]
      %v1335 = vld [vmem:[%s1325 + $0x24] sm:$0xf]
      %v1336 = vld [vmem:[%s1325 + $0x28] sm:$0xf]
      %v1337 = vld [vmem:[%s1325 + $0x2c] sm:$0xf]
      %v1338 = vld [vmem:[%s1325 + $0x30] sm:$0xf]
      %v1339 = vld [vmem:[%s1325 + $0x34] sm:$0xf]
      %v1340 = vld [vmem:[%s1325 + $0x38] sm:$0xf]
      %v1341 = vld [vmem:[%s1325 + $0x3c] sm:$0xf]
      %v1342 = vunpack.c.l.b16 %v1324
      %v1343 = vpack.c.b16 %v826, %v825
      %v1344 = vpack.c.b16 %v1342, %v827
      %v1363 = vunpack.c.l.b16 %v1326
      %v1364 = vunpack.c.l.b16 %v1327
      %v1365 = vunpack.c.l.b16 %v1328
      %v1366 = vunpack.c.l.b16 %v1329
      %v1367 = vunpack.c.l.b16 %v1330
      %v1368 = vunpack.c.l.b16 %v1331
      %v1369 = vunpack.c.l.b16 %v1332
      %v1370 = vunpack.c.l.b16 %v1333
      %v1371 = vunpack.c.l.b16 %v1334
      %v1372 = vunpack.c.l.b16 %v1335
      %v1373 = vunpack.c.l.b16 %v1336
      %v1374 = vunpack.c.l.b16 %v1337
      %v1375 = vunpack.c.l.b16 %v1338
      %v1376 = vunpack.c.l.b16 %v1339
      %v1377 = vunpack.c.l.b16 %v1340
      %v1378 = vunpack.c.l.b16 %v1341
      %v1379 = vpack.c.b16 %v1364, %v1363
      %v1380 = vpack.c.b16 %v1366, %v1365
      %v1381 = vpack.c.b16 %v1368, %v1367
      %v1382 = vpack.c.b16 %v1370, %v1369
      %v1383 = vpack.c.b16 %v1372, %v1371
      %v1384 = vpack.c.b16 %v1374, %v1373
      %v1385 = vpack.c.b16 %v1376, %v1375
      %v1386 = vpack.c.b16 %v1378, %v1377
      %1395 = vmatprep.subr.bf16.mxu0 0
      %1396 = vmatpush1.bf16.msra.mxu0 %v1386
      %1397 = vmatprep.subr.bf16.mxu0 0
      %1398 = vmatpush1.bf16.msra.mxu0 %v1385
      %1399 = vmatprep.subr.bf16.mxu0 0
      %1400 = vmatpush1.bf16.msra.mxu0 %v1384
      %1401 = vmatprep.subr.bf16.mxu0 0
      %1402 = vmatpush1.bf16.msra.mxu0 %v1383
      %1403 = vmatprep.subr.bf16.mxu0 0
      %1404 = vmatpush1.bf16.msra.mxu0 %v1382
      %1405 = vmatprep.subr.bf16.mxu0 0
      %1406 = vmatpush1.bf16.msra.mxu0 %v1381
      %1407 = vmatprep.subr.bf16.mxu0 0
      %1408 = vmatpush1.bf16.msra.mxu0 %v1380
      %1409 = vmatprep.subr.bf16.mxu0 0
      %1410 = vmatpush1.bf16.msra.mxu0 %v1379
      %1411 = vmatprep.subr.bf16.mxu0 0
      %1412 = vmatpush2.bf16.msra.mxu0 0
      %1413 = vmatprep.subr.bf16.mxu0 0
      %1414 = vmatpush2.bf16.msra.mxu0 0
      %1415 = vmatprep.subr.bf16.mxu0 0
      %1416 = vmatpush2.bf16.msra.mxu0 0
      %1417 = vmatprep.subr.bf16.mxu0 0
      %1418 = vmatpush2.bf16.msra.mxu0 0
      %1419 = vmatprep.subr.bf16.mxu0 0
      %1420 = vmatpush2.bf16.msra.mxu0 0
      %1421 = vmatprep.subr.bf16.mxu0 0
      %1422 = vmatpush2.bf16.msra.mxu0 0
      %1423 = vmatprep.subr.bf16.mxu0 0
      %1424 = vmatpush2.bf16.msra.mxu0 0
      %1425 = vmatprep.subr.bf16.mxu0 0
      %1426 = vmatpush2.bf16.msra.mxu0 0
      %1427 = vmatprep.mubr.bf16.mxu0 0
      %1428 = vmatmul.mubr.bf16.gmra.mxu0 %v1343
      %v1429 = vpop.f32.mrf.mxu0
      %v1430 = vadd.f32 0.0, %v1429
      %v1431 = vpop.f32.mrf.mxu0
      %v1432 = vpop.f32.mrf.mxu0
      %v1433 = vadd.f32 0.0, %v1432
      %v1434 = vpop.f32.mrf.mxu0
      %1435 = vmatprep.mubr.bf16.mxu0 0
      %1436 = vmatmul.mubr.bf16.gmra.mxu0 %v1344
      %v1437 = vpop.f32.mrf.mxu0
      %v1438 = vadd.f32 0.0, %v1437
      %v1439 = vpop.f32.mrf.mxu0
      %v1440 = vpop.f32.mrf.mxu0
      %v1441 = vadd.f32 0.0, %v1440
      %v1442 = vpop.f32.mrf.mxu0
      %1443 = vdwg.mxu0
      %v1444 = vadd.f32 %v1307, %v1430
      %v1445 = vadd.f32 %v1308, %v1433
      %v1446 = vadd.f32 %v1309, %v1438
      %v1447 = vadd.f32 %v1310, %v1441
      %v1449 = vrot.slane %v728, 5
      %v1450 = vrot.slane %v1449, 4
      %v1451 = vrot.slane %v729, 5
      %v1452 = vsel %vm1044, %v1450, %v1451
      %s1453 = scalar_lea.vmem %s5, 320
      %v1454 = vld [vmem:[%s1453] sm:$0xf]
      %v1455 = vld [vmem:[%s1453 + $0x4] sm:$0xf]
      %v1456 = vld [vmem:[%s1453 + $0x8] sm:$0xf]
      %v1457 = vld [vmem:[%s1453 + $0xc] sm:$0xf]
      %v1458 = vld [vmem:[%s1453 + $0x10] sm:$0xf]
      %v1459 = vld [vmem:[%s1453 + $0x14] sm:$0xf]
      %v1460 = vld [vmem:[%s1453 + $0x18] sm:$0xf]
      %v1461 = vld [vmem:[%s1453 + $0x1c] sm:$0xf]
      %v1462 = vld [vmem:[%s1453 + $0x20] sm:$0xf]
      %v1463 = vld [vmem:[%s1453 + $0x24] sm:$0xf]
      %v1464 = vld [vmem:[%s1453 + $0x28] sm:$0xf]
      %v1465 = vld [vmem:[%s1453 + $0x2c] sm:$0xf]
      %v1466 = vld [vmem:[%s1453 + $0x30] sm:$0xf]
      %v1467 = vld [vmem:[%s1453 + $0x34] sm:$0xf]
      %v1468 = vld [vmem:[%s1453 + $0x38] sm:$0xf]
      %v1469 = vld [vmem:[%s1453 + $0x3c] sm:$0xf]
      %v1470 = vunpack.c.l.b16 %v1452
      %v1471 = vpack.c.b16 %v1080, %v1079
      %v1472 = vpack.c.b16 %v1470, %v1081
      %v1491 = vunpack.c.l.b16 %v1454
      %v1492 = vunpack.c.l.b16 %v1455
      %v1493 = vunpack.c.l.b16 %v1456
      %v1494 = vunpack.c.l.b16 %v1457
      %v1495 = vunpack.c.l.b16 %v1458
      %v1496 = vunpack.c.l.b16 %v1459
      %v1497 = vunpack.c.l.b16 %v1460
      %v1498 = vunpack.c.l.b16 %v1461
      %v1499 = vunpack.c.l.b16 %v1462
      %v1500 = vunpack.c.l.b16 %v1463
      %v1501 = vunpack.c.l.b16 %v1464
      %v1502 = vunpack.c.l.b16 %v1465
      %v1503 = vunpack.c.l.b16 %v1466
      %v1504 = vunpack.c.l.b16 %v1467
      %v1505 = vunpack.c.l.b16 %v1468
      %v1506 = vunpack.c.l.b16 %v1469
      %v1507 = vpack.c.b16 %v1492, %v1491
      %v1508 = vpack.c.b16 %v1494, %v1493
      %v1509 = vpack.c.b16 %v1496, %v1495
      %v1510 = vpack.c.b16 %v1498, %v1497
      %v1511 = vpack.c.b16 %v1500, %v1499
      %v1512 = vpack.c.b16 %v1502, %v1501
      %v1513 = vpack.c.b16 %v1504, %v1503
      %v1514 = vpack.c.b16 %v1506, %v1505
      %1523 = vmatprep.subr.bf16.mxu0 0
      %1524 = vmatpush1.bf16.msra.mxu0 %v1514
      %1525 = vmatprep.subr.bf16.mxu0 0
      %1526 = vmatpush1.bf16.msra.mxu0 %v1513
      %1527 = vmatprep.subr.bf16.mxu0 0
      %1528 = vmatpush1.bf16.msra.mxu0 %v1512
      %1529 = vmatprep.subr.bf16.mxu0 0
      %1530 = vmatpush1.bf16.msra.mxu0 %v1511
      %1531 = vmatprep.subr.bf16.mxu0 0
      %1532 = vmatpush1.bf16.msra.mxu0 %v1510
      %1533 = vmatprep.subr.bf16.mxu0 0
      %1534 = vmatpush1.bf16.msra.mxu0 %v1509
      %1535 = vmatprep.subr.bf16.mxu0 0
      %1536 = vmatpush1.bf16.msra.mxu0 %v1508
      %1537 = vmatprep.subr.bf16.mxu0 0
      %1538 = vmatpush1.bf16.msra.mxu0 %v1507
      %1539 = vmatprep.subr.bf16.mxu0 0
      %1540 = vmatpush2.bf16.msra.mxu0 0
      %1541 = vmatprep.subr.bf16.mxu0 0
      %1542 = vmatpush2.bf16.msra.mxu0 0
      %1543 = vmatprep.subr.bf16.mxu0 0
      %1544 = vmatpush2.bf16.msra.mxu0 0
      %1545 = vmatprep.subr.bf16.mxu0 0
      %1546 = vmatpush2.bf16.msra.mxu0 0
      %1547 = vmatprep.subr.bf16.mxu0 0
      %1548 = vmatpush2.bf16.msra.mxu0 0
      %1549 = vmatprep.subr.bf16.mxu0 0
      %1550 = vmatpush2.bf16.msra.mxu0 0
      %1551 = vmatprep.subr.bf16.mxu0 0
      %1552 = vmatpush2.bf16.msra.mxu0 0
      %1553 = vmatprep.subr.bf16.mxu0 0
      %1554 = vmatpush2.bf16.msra.mxu0 0
      %1555 = vmatprep.mubr.bf16.mxu0 0
      %1556 = vmatmul.mubr.bf16.gmra.mxu0 %v1471
      %v1557 = vpop.f32.mrf.mxu0
      %v1558 = vadd.f32 0.0, %v1557
      %v1559 = vpop.f32.mrf.mxu0
      %v1560 = vpop.f32.mrf.mxu0
      %v1561 = vadd.f32 0.0, %v1560
      %v1562 = vpop.f32.mrf.mxu0
      %1563 = vmatprep.mubr.bf16.mxu0 0
      %1564 = vmatmul.mubr.bf16.gmra.mxu0 %v1472
      %v1565 = vpop.f32.mrf.mxu0
      %v1566 = vadd.f32 0.0, %v1565
      %v1567 = vpop.f32.mrf.mxu0
      %v1568 = vpop.f32.mrf.mxu0
      %v1569 = vadd.f32 0.0, %v1568
      %v1570 = vpop.f32.mrf.mxu0
      %1571 = vdwg.mxu0
      %v1572 = vadd.f32 %v1444, %v1558
      %v1573 = vadd.f32 %v1445, %v1561
      %v1574 = vadd.f32 %v1446, %v1566
      %v1575 = vadd.f32 %v1447, %v1569
      %s1576 = scalar_lea.vmem %s5, 384
      %v1577 = vld [vmem:[%s1576] sm:$0xf]
      %v1578 = vld [vmem:[%s1576 + $0x4] sm:$0xf]
      %v1579 = vld [vmem:[%s1576 + $0x8] sm:$0xf]
      %v1580 = vld [vmem:[%s1576 + $0xc] sm:$0xf]
      %v1581 = vld [vmem:[%s1576 + $0x10] sm:$0xf]
      %v1582 = vld [vmem:[%s1576 + $0x14] sm:$0xf]
      %v1583 = vld [vmem:[%s1576 + $0x18] sm:$0xf]
      %v1584 = vld [vmem:[%s1576 + $0x1c] sm:$0xf]
      %v1585 = vld [vmem:[%s1576 + $0x20] sm:$0xf]
      %v1586 = vld [vmem:[%s1576 + $0x24] sm:$0xf]
      %v1587 = vld [vmem:[%s1576 + $0x28] sm:$0xf]
      %v1588 = vld [vmem:[%s1576 + $0x2c] sm:$0xf]
      %v1589 = vld [vmem:[%s1576 + $0x30] sm:$0xf]
      %v1590 = vld [vmem:[%s1576 + $0x34] sm:$0xf]
      %v1591 = vld [vmem:[%s1576 + $0x38] sm:$0xf]
      %v1592 = vld [vmem:[%s1576 + $0x3c] sm:$0xf]
      %v1594 = vunpack.c.l.b16 %v730
      %v1595 = vpack.c.b16 %v1594, %v1205
      %v1613 = vunpack.c.l.b16 %v1577
      %v1614 = vunpack.c.l.b16 %v1578
      %v1615 = vunpack.c.l.b16 %v1579
      %v1616 = vunpack.c.l.b16 %v1580
      %v1617 = vunpack.c.l.b16 %v1581
      %v1618 = vunpack.c.l.b16 %v1582
      %v1619 = vunpack.c.l.b16 %v1583
      %v1620 = vunpack.c.l.b16 %v1584
      %v1621 = vunpack.c.l.b16 %v1585
      %v1622 = vunpack.c.l.b16 %v1586
      %v1623 = vunpack.c.l.b16 %v1587
      %v1624 = vunpack.c.l.b16 %v1588
      %v1625 = vunpack.c.l.b16 %v1589
      %v1626 = vunpack.c.l.b16 %v1590
      %v1627 = vunpack.c.l.b16 %v1591
      %v1628 = vunpack.c.l.b16 %v1592
      %v1629 = vpack.c.b16 %v1614, %v1613
      %v1630 = vpack.c.b16 %v1616, %v1615
      %v1631 = vpack.c.b16 %v1618, %v1617
      %v1632 = vpack.c.b16 %v1620, %v1619
      %v1633 = vpack.c.b16 %v1622, %v1621
      %v1634 = vpack.c.b16 %v1624, %v1623
      %v1635 = vpack.c.b16 %v1626, %v1625
      %v1636 = vpack.c.b16 %v1628, %v1627
      %1645 = vmatprep.subr.bf16.mxu0 0
      %1646 = vmatpush1.bf16.msra.mxu0 %v1636
      %1647 = vmatprep.subr.bf16.mxu0 0
      %1648 = vmatpush1.bf16.msra.mxu0 %v1635
      %1649 = vmatprep.subr.bf16.mxu0 0
      %1650 = vmatpush1.bf16.msra.mxu0 %v1634
      %1651 = vmatprep.subr.bf16.mxu0 0
      %1652 = vmatpush1.bf16.msra.mxu0 %v1633
      %1653 = vmatprep.subr.bf16.mxu0 0
      %1654 = vmatpush1.bf16.msra.mxu0 %v1632
      %1655 = vmatprep.subr.bf16.mxu0 0
      %1656 = vmatpush1.bf16.msra.mxu0 %v1631
      %1657 = vmatprep.subr.bf16.mxu0 0
      %1658 = vmatpush1.bf16.msra.mxu0 %v1630
      %1659 = vmatprep.subr.bf16.mxu0 0
      %1660 = vmatpush1.bf16.msra.mxu0 %v1629
      %1661 = vmatprep.subr.bf16.mxu0 0
      %1662 = vmatpush2.bf16.msra.mxu0 0
      %1663 = vmatprep.subr.bf16.mxu0 0
      %1664 = vmatpush2.bf16.msra.mxu0 0
      %1665 = vmatprep.subr.bf16.mxu0 0
      %1666 = vmatpush2.bf16.msra.mxu0 0
      %1667 = vmatprep.subr.bf16.mxu0 0
      %1668 = vmatpush2.bf16.msra.mxu0 0
      %1669 = vmatprep.subr.bf16.mxu0 0
      %1670 = vmatpush2.bf16.msra.mxu0 0
      %1671 = vmatprep.subr.bf16.mxu0 0
      %1672 = vmatpush2.bf16.msra.mxu0 0
      %1673 = vmatprep.subr.bf16.mxu0 0
      %1674 = vmatpush2.bf16.msra.mxu0 0
      %1675 = vmatprep.subr.bf16.mxu0 0
      %1676 = vmatpush2.bf16.msra.mxu0 0
      %1677 = vmatprep.mubr.bf16.mxu0 0
      %1678 = vmatmul.mubr.bf16.gmra.mxu0 %v938
      %v1679 = vpop.f32.mrf.mxu0
      %v1680 = vadd.f32 0.0, %v1679
      %v1681 = vpop.f32.mrf.mxu0
      %v1682 = vpop.f32.mrf.mxu0
      %v1683 = vadd.f32 0.0, %v1682
      %v1684 = vpop.f32.mrf.mxu0
      %1685 = vmatprep.mubr.bf16.mxu0 0
      %1686 = vmatmul.mubr.bf16.gmra.mxu0 %v1595
      %v1687 = vpop.f32.mrf.mxu0
      %v1688 = vadd.f32 0.0, %v1687
      %v1689 = vpop.f32.mrf.mxu0
      %v1690 = vpop.f32.mrf.mxu0
      %v1691 = vadd.f32 0.0, %v1690
      %v1692 = vpop.f32.mrf.mxu0
      %1693 = vdwg.mxu0
      %v1694 = vadd.f32 %v1572, %v1680
      %v1695 = vadd.f32 %v1573, %v1683
      %v1696 = vadd.f32 %v1574, %v1688
      %v1697 = vadd.f32 %v1575, %v1691
      %v1699 = vshrl.u32 %v730, 16
      %v1701 = vrot.slane %v1699, 4
      %v1702 = vshll.u32 %v730, 16
      %v1704 = vrot.slane %v1702, 5
      %v1705 = vor.u32 %v1701, %v1704
      %v1706 = vrot.slane %v1705, 4
      %v1708 = vshll.u32 %v731, 16
      %v1710 = vrot.slane %v1708, 5
      %v1711 = vsel %vm750, %v1706, %v1710
      %s1712 = scalar_lea.vmem %s5, 448
      %v1713 = vld [vmem:[%s1712] sm:$0xf]
      %v1714 = vld [vmem:[%s1712 + $0x4] sm:$0xf]
      %v1715 = vld [vmem:[%s1712 + $0x8] sm:$0xf]
      %v1716 = vld [vmem:[%s1712 + $0xc] sm:$0xf]
      %v1717 = vld [vmem:[%s1712 + $0x10] sm:$0xf]
      %v1718 = vld [vmem:[%s1712 + $0x14] sm:$0xf]
      %v1719 = vld [vmem:[%s1712 + $0x18] sm:$0xf]
      %v1720 = vld [vmem:[%s1712 + $0x1c] sm:$0xf]
      %v1721 = vld [vmem:[%s1712 + $0x20] sm:$0xf]
      %v1722 = vld [vmem:[%s1712 + $0x24] sm:$0xf]
      %v1723 = vld [vmem:[%s1712 + $0x28] sm:$0xf]
      %v1724 = vld [vmem:[%s1712 + $0x2c] sm:$0xf]
      %v1725 = vld [vmem:[%s1712 + $0x30] sm:$0xf]
      %v1726 = vld [vmem:[%s1712 + $0x34] sm:$0xf]
      %v1727 = vld [vmem:[%s1712 + $0x38] sm:$0xf]
      %v1728 = vld [vmem:[%s1712 + $0x3c] sm:$0xf]
      %v1729 = vunpack.c.l.b16 %v1711
      %v1730 = vpack.c.b16 %v1729, %v1342
      %v1748 = vunpack.c.l.b16 %v1713
      %v1749 = vunpack.c.l.b16 %v1714
      %v1750 = vunpack.c.l.b16 %v1715
      %v1751 = vunpack.c.l.b16 %v1716
      %v1752 = vunpack.c.l.b16 %v1717
      %v1753 = vunpack.c.l.b16 %v1718
      %v1754 = vunpack.c.l.b16 %v1719
      %v1755 = vunpack.c.l.b16 %v1720
      %v1756 = vunpack.c.l.b16 %v1721
      %v1757 = vunpack.c.l.b16 %v1722
      %v1758 = vunpack.c.l.b16 %v1723
      %v1759 = vunpack.c.l.b16 %v1724
      %v1760 = vunpack.c.l.b16 %v1725
      %v1761 = vunpack.c.l.b16 %v1726
      %v1762 = vunpack.c.l.b16 %v1727
      %v1763 = vunpack.c.l.b16 %v1728
      %v1764 = vpack.c.b16 %v1749, %v1748
      %v1765 = vpack.c.b16 %v1751, %v1750
      %v1766 = vpack.c.b16 %v1753, %v1752
      %v1767 = vpack.c.b16 %v1755, %v1754
      %v1768 = vpack.c.b16 %v1757, %v1756
      %v1769 = vpack.c.b16 %v1759, %v1758
      %v1770 = vpack.c.b16 %v1761, %v1760
      %v1771 = vpack.c.b16 %v1763, %v1762
      %1780 = vmatprep.subr.bf16.mxu0 0
      %1781 = vmatpush1.bf16.msra.mxu0 %v1771
      %1782 = vmatprep.subr.bf16.mxu0 0
      %1783 = vmatpush1.bf16.msra.mxu0 %v1770
      %1784 = vmatprep.subr.bf16.mxu0 0
      %1785 = vmatpush1.bf16.msra.mxu0 %v1769
      %1786 = vmatprep.subr.bf16.mxu0 0
      %1787 = vmatpush1.bf16.msra.mxu0 %v1768
      %1788 = vmatprep.subr.bf16.mxu0 0
      %1789 = vmatpush1.bf16.msra.mxu0 %v1767
      %1790 = vmatprep.subr.bf16.mxu0 0
      %1791 = vmatpush1.bf16.msra.mxu0 %v1766
      %1792 = vmatprep.subr.bf16.mxu0 0
      %1793 = vmatpush1.bf16.msra.mxu0 %v1765
      %1794 = vmatprep.subr.bf16.mxu0 0
      %1795 = vmatpush1.bf16.msra.mxu0 %v1764
      %1796 = vmatprep.subr.bf16.mxu0 0
      %1797 = vmatpush2.bf16.msra.mxu0 0
      %1798 = vmatprep.subr.bf16.mxu0 0
      %1799 = vmatpush2.bf16.msra.mxu0 0
      %1800 = vmatprep.subr.bf16.mxu0 0
      %1801 = vmatpush2.bf16.msra.mxu0 0
      %1802 = vmatprep.subr.bf16.mxu0 0
      %1803 = vmatpush2.bf16.msra.mxu0 0
      %1804 = vmatprep.subr.bf16.mxu0 0
      %1805 = vmatpush2.bf16.msra.mxu0 0
      %1806 = vmatprep.subr.bf16.mxu0 0
      %1807 = vmatpush2.bf16.msra.mxu0 0
      %1808 = vmatprep.subr.bf16.mxu0 0
      %1809 = vmatpush2.bf16.msra.mxu0 0
      %1810 = vmatprep.subr.bf16.mxu0 0
      %1811 = vmatpush2.bf16.msra.mxu0 0
      %1812 = vmatprep.mubr.bf16.mxu0 0
      %1813 = vmatmul.mubr.bf16.gmra.mxu0 %v829
      %v1814 = vpop.f32.mrf.mxu0
      %v1815 = vadd.f32 0.0, %v1814
      %v1816 = vpop.f32.mrf.mxu0
      %v1817 = vpop.f32.mrf.mxu0
      %v1818 = vadd.f32 0.0, %v1817
      %v1819 = vpop.f32.mrf.mxu0
      %1820 = vmatprep.mubr.bf16.mxu0 0
      %1821 = vmatmul.mubr.bf16.gmra.mxu0 %v1730
      %v1822 = vpop.f32.mrf.mxu0
      %v1823 = vadd.f32 0.0, %v1822
      %v1824 = vpop.f32.mrf.mxu0
      %v1825 = vpop.f32.mrf.mxu0
      %v1826 = vadd.f32 0.0, %v1825
      %v1827 = vpop.f32.mrf.mxu0
      %1828 = vdwg.mxu0
      %v1829 = vadd.f32 %v1694, %v1815
      %v1830 = vadd.f32 %v1695, %v1818
      %v1831 = vadd.f32 %v1696, %v1823
      %v1832 = vadd.f32 %v1697, %v1826
      %v1834 = vrot.slane %v730, 5
      %v1835 = vrot.slane %v1834, 4
      %v1836 = vrot.slane %v731, 5
      %v1837 = vsel %vm1044, %v1835, %v1836
      %s1838 = scalar_lea.vmem %s5, 512
      %v1839 = vld [vmem:[%s1838] sm:$0xf]
      %v1840 = vld [vmem:[%s1838 + $0x4] sm:$0xf]
      %v1841 = vld [vmem:[%s1838 + $0x8] sm:$0xf]
      %v1842 = vld [vmem:[%s1838 + $0xc] sm:$0xf]
      %v1843 = vld [vmem:[%s1838 + $0x10] sm:$0xf]
      %v1844 = vld [vmem:[%s1838 + $0x14] sm:$0xf]
      %v1845 = vld [vmem:[%s1838 + $0x18] sm:$0xf]
      %v1846 = vld [vmem:[%s1838 + $0x1c] sm:$0xf]
      %v1847 = vld [vmem:[%s1838 + $0x20] sm:$0xf]
      %v1848 = vld [vmem:[%s1838 + $0x24] sm:$0xf]
      %v1849 = vld [vmem:[%s1838 + $0x28] sm:$0xf]
      %v1850 = vld [vmem:[%s1838 + $0x2c] sm:$0xf]
      %v1851 = vld [vmem:[%s1838 + $0x30] sm:$0xf]
      %v1852 = vld [vmem:[%s1838 + $0x34] sm:$0xf]
      %v1853 = vld [vmem:[%s1838 + $0x38] sm:$0xf]
      %v1854 = vld [vmem:[%s1838 + $0x3c] sm:$0xf]
      %v1855 = vunpack.c.l.b16 %v1837
      %v1856 = vpack.c.b16 %v1855, %v1470
      %v1874 = vunpack.c.l.b16 %v1839
      %v1875 = vunpack.c.l.b16 %v1840
      %v1876 = vunpack.c.l.b16 %v1841
      %v1877 = vunpack.c.l.b16 %v1842
      %v1878 = vunpack.c.l.b16 %v1843
      %v1879 = vunpack.c.l.b16 %v1844
      %v1880 = vunpack.c.l.b16 %v1845
      %v1881 = vunpack.c.l.b16 %v1846
      %v1882 = vunpack.c.l.b16 %v1847
      %v1883 = vunpack.c.l.b16 %v1848
      %v1884 = vunpack.c.l.b16 %v1849
      %v1885 = vunpack.c.l.b16 %v1850
      %v1886 = vunpack.c.l.b16 %v1851
      %v1887 = vunpack.c.l.b16 %v1852
      %v1888 = vunpack.c.l.b16 %v1853
      %v1889 = vunpack.c.l.b16 %v1854
      %v1890 = vpack.c.b16 %v1875, %v1874
      %v1891 = vpack.c.b16 %v1877, %v1876
      %v1892 = vpack.c.b16 %v1879, %v1878
      %v1893 = vpack.c.b16 %v1881, %v1880
      %v1894 = vpack.c.b16 %v1883, %v1882
      %v1895 = vpack.c.b16 %v1885, %v1884
      %v1896 = vpack.c.b16 %v1887, %v1886
      %v1897 = vpack.c.b16 %v1889, %v1888
      %1906 = vmatprep.subr.bf16.mxu0 0
      %1907 = vmatpush1.bf16.msra.mxu0 %v1897
      %1908 = vmatprep.subr.bf16.mxu0 0
      %1909 = vmatpush1.bf16.msra.mxu0 %v1896
      %1910 = vmatprep.subr.bf16.mxu0 0
      %1911 = vmatpush1.bf16.msra.mxu0 %v1895
      %1912 = vmatprep.subr.bf16.mxu0 0
      %1913 = vmatpush1.bf16.msra.mxu0 %v1894
      %1914 = vmatprep.subr.bf16.mxu0 0
      %1915 = vmatpush1.bf16.msra.mxu0 %v1893
      %1916 = vmatprep.subr.bf16.mxu0 0
      %1917 = vmatpush1.bf16.msra.mxu0 %v1892
      %1918 = vmatprep.subr.bf16.mxu0 0
      %1919 = vmatpush1.bf16.msra.mxu0 %v1891
      %1920 = vmatprep.subr.bf16.mxu0 0
      %1921 = vmatpush1.bf16.msra.mxu0 %v1890
      %1922 = vmatprep.subr.bf16.mxu0 0
      %1923 = vmatpush2.bf16.msra.mxu0 0
      %1924 = vmatprep.subr.bf16.mxu0 0
      %1925 = vmatpush2.bf16.msra.mxu0 0
      %1926 = vmatprep.subr.bf16.mxu0 0
      %1927 = vmatpush2.bf16.msra.mxu0 0
      %1928 = vmatprep.subr.bf16.mxu0 0
      %1929 = vmatpush2.bf16.msra.mxu0 0
      %1930 = vmatprep.subr.bf16.mxu0 0
      %1931 = vmatpush2.bf16.msra.mxu0 0
      %1932 = vmatprep.subr.bf16.mxu0 0
      %1933 = vmatpush2.bf16.msra.mxu0 0
      %1934 = vmatprep.subr.bf16.mxu0 0
      %1935 = vmatpush2.bf16.msra.mxu0 0
      %1936 = vmatprep.subr.bf16.mxu0 0
      %1937 = vmatpush2.bf16.msra.mxu0 0
      %1938 = vmatprep.mubr.bf16.mxu0 0
      %1939 = vmatmul.mubr.bf16.gmra.mxu0 %v1083
      %v1940 = vpop.f32.mrf.mxu0
      %v1941 = vadd.f32 0.0, %v1940
      %v1942 = vpop.f32.mrf.mxu0
      %v1943 = vpop.f32.mrf.mxu0
      %v1944 = vadd.f32 0.0, %v1943
      %v1945 = vpop.f32.mrf.mxu0
      %1946 = vmatprep.mubr.bf16.mxu0 0
      %1947 = vmatmul.mubr.bf16.gmra.mxu0 %v1856
      %v1948 = vpop.f32.mrf.mxu0
      %v1949 = vadd.f32 0.0, %v1948
      %v1950 = vpop.f32.mrf.mxu0
      %v1951 = vpop.f32.mrf.mxu0
      %v1952 = vadd.f32 0.0, %v1951
      %v1953 = vpop.f32.mrf.mxu0
      %1954 = vdwg.mxu0
      %v1955 = vadd.f32 %v1829, %v1941
      %v1956 = vadd.f32 %v1830, %v1944
      %v1957 = vadd.f32 %v1831, %v1949
      %v1958 = vadd.f32 %v1832, %v1952
      %v1959 = vpack.c.bf16 %v1955, %v1955
      %v1960 = vpack.c.bf16 %v1956, %v1956
      %v1961 = vpack.c.bf16 %v1957, %v1957
      %v1962 = vpack.c.bf16 %v1958, %v1958
      %1963 = vst [vmem:[%s484] sm:$0xf] %v1959
      %1964 = vst [vmem:[%s484 + $0x4] sm:$0xf] %v1960
      %1965 = vst [vmem:[%s484 + $0x8] sm:$0xf] %v1961
      %1966 = vst [vmem:[%s484 + $0xc] sm:$0xf] %v1962
      %v1967 = vadd.f32 %v1955, %v1956
      %v1968 = vadd.f32 %v1967, %v1957
      %v1969 = vadd.f32 %v1968, %v1958
      %v1970 = vrot.slane %v1969, 4
      %v1971 = vadd.f32 %v1969, %v1970
      %v1972 = vrot.slane %v1971, 2
      %v1973 = vadd.f32 %v1971, %v1972
      %v1974 = vrot.slane %v1973, 1
      %v1975 = vadd.f32 %v1973, %v1974
      %v1976 = vmul.f32 %v1975, 0.03125
      %v1977 = vsub.f32 %v1955, %v1976
      %v1978 = vsub.f32 %v1956, %v1976
      %v1979 = vsub.f32 %v1957, %v1976
      %v1980 = vsub.f32 %v1958, %v1976
      %v1981 = vmul.f32 %v1977, %v1977
      %v1982 = vmul.f32 %v1978, %v1978
      %v1983 = vmul.f32 %v1979, %v1979
      %v1984 = vmul.f32 %v1980, %v1980
      %v1985 = vadd.f32 %v1981, %v1982
      %v1986 = vadd.f32 %v1985, %v1983
      %v1987 = vadd.f32 %v1986, %v1984
      %v1988 = vrot.slane %v1987, 4
      %v1989 = vadd.f32 %v1987, %v1988
      %v1990 = vrot.slane %v1989, 2
      %v1991 = vadd.f32 %v1989, %v1990
      %v1992 = vrot.slane %v1991, 1
      %v1993 = vadd.f32 %v1991, %v1992
      %1994 = vst [vmem:[%s492] sm:$0x1] %v1975
      %1995 = vst [vmem:[%s499] sm:$0x1] %v1993
      %s1996 = smul.u32 4, %s25
      %p1997 = scmp.lt.s32.totalorder %s24, 1
      %s1998 = scalar_select %p1997, %s24, 1
      %p1999 = scmp.lt.s32.totalorder %s1996, 7
      %s2000 = scalar_select %p1999, %s1996, 7
      %s2001 = smul.addr %s1998, 8
      %s2002 = sadd.s32 %s2000, %s2001
      %s2003 = smul.addr %s2002, 4
      %s2004 = scalar_lea.vmem %s6, %s2003
      %p2005 = scmp.lt.s32.totalorder %s24, 1
      %s2006 = scalar_select %p2005, %s24, 1
      %p2007 = scmp.lt.s32.totalorder %s25, 1
      %s2008 = scalar_select %p2007, %s25, 1
      %s2009 = smul.addr %s2006, 2
      %s2010 = sadd.s32 %s2008, %s2009
      %s2011 = scalar_lea.vmem %s7, %s2010
      %p2012 = scmp.lt.s32.totalorder %s24, 1
      %s2013 = scalar_select %p2012, %s24, 1
      %p2014 = scmp.lt.s32.totalorder %s25, 1
      %s2015 = scalar_select %p2014, %s25, 1
      %s2016 = smul.addr %s2013, 2
      %s2017 = sadd.s32 %s2015, %s2016
      %s2018 = scalar_lea.vmem %s8, %s2017
      // Predicated region
      $region45: #{down_forward.4} parent=43 // pred_check
        %p2019 = pneg %p215
      $region46: #{down_forward.4} parent=43 // pred_check_branch
        %2021 = sbr.rel (%p2019) target = $region48
      $region47: #{down_forward.4} parent=43 // pred_region
        %s2022 = smul.u32 4, %s25
      $region48: #{down_forward.4} parent=43 // pred_fallthru
        _
      // Predicated region
      $region49: #{down_forward.4} parent=43 // pred_check
        %p2023 = pneg %p243
      $region50: #{down_forward.4} parent=43 // pred_check_branch
        %2025 = sbr.rel (%p2023) target = $region52
      $region51: #{down_forward.4} parent=43 // pred_region
        _
      $region52: #{down_forward.4} parent=43 // pred_fallthru
        _
      // Predicated region
      $region53: #{down_forward.4} parent=43 // pred_check
        %p2026 = pneg %p271
      $region54: #{down_forward.4} parent=43 // pred_check_branch
        %2028 = sbr.rel (%p2026) target = $region56
      $region55: #{down_forward.4} parent=43 // pred_region
        _
      $region56: #{down_forward.4} parent=43 // pred_fallthru
        _
    $region44: #{down_forward.4} parent=5 // pred_fallthru
      _
    %p2029 = scmp.le.s32.totalorder 2, %s15
    // Predicated region
    $region57: #{down_forward.4} parent=5 // pred_check
      %p2030 = pneg %p2029
    $region58: #{down_forward.4} parent=5 // pred_check_branch
      %2032 = sbr.rel (%p2030) target = $region60
    $region59: #{down_forward.4} parent=5 // pred_region
      %s2033 = ssub.s32 %s15, 2
      // Predicated region
      $region61: #{down_forward.4} parent=59 // pred_check
        %p2034 = pneg %p221
      $region62: #{down_forward.4} parent=59 // pred_check_branch
        %2036 = sbr.rel (%p2034) target = $region64
      $region63: #{down_forward.4} parent=59 // pred_region
        %s2037 = smul.u32 4, %s27
        %p2038 = scmp.lt.s32.totalorder %s26, 1
        %s2039 = scalar_select %p2038, %s26, 1
        %p2040 = scmp.lt.s32.totalorder %s2037, 7
        %s2041 = scalar_select %p2040, %s2037, 7
        %s2042 = smul.addr %s2039, 8
        %s2043 = sadd.s32 %s2041, %s2042
        %s2044 = smul.addr %s2043, 4
        %s2045 = scalar_lea.vmem %s6, %s2044
      $region64: #{down_forward.4} parent=59 // pred_fallthru
        _
      // Predicated region
      $region65: #{down_forward.4} parent=59 // pred_check
        %p2046 = pneg %p249
      $region66: #{down_forward.4} parent=59 // pred_check_branch
        %2048 = sbr.rel (%p2046) target = $region68
      $region67: #{down_forward.4} parent=59 // pred_region
        %p2049 = scmp.lt.s32.totalorder %s26, 1
        %s2050 = scalar_select %p2049, %s26, 1
        %p2051 = scmp.lt.s32.totalorder %s27, 1
        %s2052 = scalar_select %p2051, %s27, 1
        %s2053 = smul.addr %s2050, 2
        %s2054 = sadd.s32 %s2052, %s2053
        %s2055 = scalar_lea.vmem %s7, %s2054
      $region68: #{down_forward.4} parent=59 // pred_fallthru
        _
      // Predicated region
      $region69: #{down_forward.4} parent=59 // pred_check
        %p2056 = pneg %p277
      $region70: #{down_forward.4} parent=59 // pred_check_branch
        %2058 = sbr.rel (%p2056) target = $region72
      $region71: #{down_forward.4} parent=59 // pred_region
        %p2059 = scmp.lt.s32.totalorder %s26, 1
        %s2060 = scalar_select %p2059, %s26, 1
        %p2061 = scmp.lt.s32.totalorder %s27, 1
        %s2062 = scalar_select %p2061, %s27, 1
        %s2063 = smul.addr %s2060, 2
        %s2064 = sadd.s32 %s2062, %s2063
        %s2065 = scalar_lea.vmem %s8, %s2064
      $region72: #{down_forward.4} parent=59 // pred_fallthru
        _
    $region60: #{down_forward.4} parent=5 // pred_fallthru
      _
  $region6: #{down_forward.4} parent=0 // loop_footer
    %s19 = sadd.s32 1, %s15
  $region7: #{down_forward.4} parent=0 // loop_footer_branch
    %14 = sbr.rel target = $region3
  $region8: #{down_forward.4} parent=0 // loop_exit
    _

</llo_original>
